<compile_context>
chip_gen: v7x
topology: tpu7x:2x2x1
jax: 0.10.0
libtpu: 0.0.40
codegen_flags: <defaults>
</compile_context>

<pallas_src>
import functools
import math

import jax
import jax.numpy as jnp
from jax.experimental import pallas as pl
from jax.experimental.pallas import tpu as pltpu

_EPS = 1e-5  # torch nn.LayerNorm default


def _row_tile(M):
    """Whole-M block at small sizes; 128-row tiles once M grows."""
    if M <= 256:
        return M
    assert M % 128 == 0, f"M={M} must be a multiple of 128"
    return 128


def _ln(x, g, b, eps=_EPS):
    mean = jnp.mean(x, axis=-1, keepdims=True)
    var = jnp.mean(jnp.square(x - mean), axis=-1, keepdims=True)  # biased, like torch
    return (x - mean) * jax.lax.rsqrt(var + eps) * g + b


# ----------------------------------------------------------------------------
# Pallas kernels
# ----------------------------------------------------------------------------
def _linear_kernel(x_ref, w_ref, b_ref, o_ref, *, activation):
    y = jnp.dot(x_ref[...], w_ref[...], preferred_element_type=jnp.float32)
    y = y + b_ref[...]
    if activation == "relu":
        y = jnp.maximum(y, 0.0)
    o_ref[...] = y


def linear_pallas(x, w, b, activation=None):
    """x: [M, K] @ w: [K, N] + b: [N]  (optionally fused ReLU)."""
    M, K = x.shape
    N = w.shape[1]
    tm = _row_tile(M)
    return pl.pallas_call(
        functools.partial(_linear_kernel, activation=activation),
        out_shape=jax.ShapeDtypeStruct((M, N), jnp.float32),
        grid=(M // tm,),
        in_specs=[
            pl.BlockSpec((tm, K), lambda i: (i, 0)),
            pl.BlockSpec((K, N), lambda i: (0, 0)),
            pl.BlockSpec((1, N), lambda i: (0, 0)),
        ],
        out_specs=pl.BlockSpec((tm, N), lambda i: (i, 0)),
        compiler_params=pltpu.CompilerParams(dimension_semantics=("parallel",)),
    )(x.astype(jnp.float32), w.astype(jnp.float32), b.reshape(1, N).astype(jnp.float32))


def _proj_res_ln_kernel(ctx_ref, res_ref, wo_ref, bo_ref, g_ref, b_ref, o_ref):
    # out-proj + residual add + LayerNorm, fused.
    y = jnp.dot(ctx_ref[...], wo_ref[...], preferred_element_type=jnp.float32) + bo_ref[...]
    o_ref[...] = _ln(y + res_ref[...], g_ref[...], b_ref[...])


def proj_residual_ln_pallas(ctx2d, res2d, wo, bo, gamma, beta):
    M, E = ctx2d.shape
    tm = _row_tile(M)
    row = lambda i: (i, 0)
    rep = lambda i: (0, 0)
    return pl.pallas_call(
        _proj_res_ln_kernel,
        out_shape=jax.ShapeDtypeStruct((M, E), jnp.float32),
        grid=(M // tm,),
        in_specs=[
            pl.BlockSpec((tm, E), row),
            pl.BlockSpec((tm, E), row),
            pl.BlockSpec((E, E), rep),
            pl.BlockSpec((1, E), rep),
            pl.BlockSpec((1, E), rep),
            pl.BlockSpec((1, E), rep),
        ],
        out_specs=pl.BlockSpec((tm, E), row),
        compiler_params=pltpu.CompilerParams(dimension_semantics=("parallel",)),
    )(ctx2d, res2d, wo, bo.reshape(1, E), gamma.reshape(1, E), beta.reshape(1, E))


def _block_epilogue_kernel(ctx_ref, res_ref, wo_ref, bo_ref, g1_ref, b1_ref,
                           w1_ref, bf1_ref, w2_ref, bf2_ref, g2_ref, b2_ref,
                           o_ref):
    # out-proj + residual + LN1 + FF1(ReLU) + FF2 + residual + LN2, fused.
    attn = jnp.dot(ctx_ref[...], wo_ref[...], preferred_element_type=jnp.float32) + bo_ref[...]
    x = _ln(attn + res_ref[...], g1_ref[...], b1_ref[...])
    h = jnp.dot(x, w1_ref[...], preferred_element_type=jnp.float32) + bf1_ref[...]
    h = jnp.maximum(h, 0.0)
    f = jnp.dot(h, w2_ref[...], preferred_element_type=jnp.float32) + bf2_ref[...]
    o_ref[...] = _ln(f + x, g2_ref[...], b2_ref[...])


def block_epilogue_pallas(ctx2d, res2d, attn_p, blk_p):
    M, E = ctx2d.shape
    FF = blk_p["w1"].shape[1]
    tm = _row_tile(M)
    row = lambda i: (i, 0)
    rep = lambda i: (0, 0)
    return pl.pallas_call(
        _block_epilogue_kernel,
        out_shape=jax.ShapeDtypeStruct((M, E), jnp.float32),
        grid=(M // tm,),
        in_specs=[
            pl.BlockSpec((tm, E), row),       # attention context
            pl.BlockSpec((tm, E), row),       # residual (query)
            pl.BlockSpec((E, E), rep),        # wo
            pl.BlockSpec((1, E), rep),        # bo
            pl.BlockSpec((1, E), rep),        # ln1 gamma
            pl.BlockSpec((1, E), rep),        # ln1 beta
            pl.BlockSpec((E, FF), rep),       # w1
            pl.BlockSpec((1, FF), rep),       # b1
            pl.BlockSpec((FF, E), rep),       # w2
            pl.BlockSpec((1, E), rep),        # b2
            pl.BlockSpec((1, E), rep),        # ln2 gamma
            pl.BlockSpec((1, E), rep),        # ln2 beta
        ],
        out_specs=pl.BlockSpec((tm, E), row),
        compiler_params=pltpu.CompilerParams(dimension_semantics=("parallel",)),
    )(ctx2d, res2d,
      attn_p["wo"], attn_p["bo"].reshape(1, E),
      blk_p["ln1_g"].reshape(1, E), blk_p["ln1_b"].reshape(1, E),
      blk_p["w1"], blk_p["b1"].reshape(1, FF),
      blk_p["w2"], blk_p["b2"].reshape(1, E),
      blk_p["ln2_g"].reshape(1, E), blk_p["ln2_b"].reshape(1, E))


def _attention_kernel(q_ref, k_ref, v_ref, m_ref, o_ref, *, scale):
    q = q_ref[...] * scale            # [H, Sq, D]  (scale folded into q)
    k = k_ref[...]                    # [H, Sk, D]
    v = v_ref[...]                    # [H, Sk, D]
    mask = m_ref[...]                 # [Qm, Sk]  (Qm in {1, Sq}; 0.0 == masked)
    s = jnp.einsum("hqd,hkd->hqk", q, k, preferred_element_type=jnp.float32)
    s = jnp.where(mask[None, :, :] == 0.0, jnp.float32(-1e20), s)
    mx = jnp.max(s, axis=-1, keepdims=True)
    p = jnp.exp(s - mx)
    denom = jnp.sum(p, axis=-1, keepdims=True)
    p = p * pl.reciprocal(denom, approx=True)
    o_ref[...] = jnp.einsum("hqk,hkd->hqd", p, v, preferred_element_type=jnp.float32)


def attention_pallas(q, k, v, mask, scale):
    """q: [B,H,Sq,D], k/v: [B,H,Sk,D], mask: [Bm,Qm,Sk] with Bm in {1,B}, Qm in {1,Sq}."""
    B, H, Sq, D = q.shape
    Sk = k.shape[2]
    Bm, Qm, _ = mask.shape
    mask_map = (lambda b: (b, 0, 0)) if Bm == B else (lambda b: (0, 0, 0))
    return pl.pallas_call(
        functools.partial(_attention_kernel, scale=scale),
        out_shape=jax.ShapeDtypeStruct((B, H, Sq, D), jnp.float32),
        grid=(B,),
        in_specs=[
            pl.BlockSpec((None, H, Sq, D), lambda b: (b, 0, 0, 0)),
            pl.BlockSpec((None, H, Sk, D), lambda b: (b, 0, 0, 0)),
            pl.BlockSpec((None, H, Sk, D), lambda b: (b, 0, 0, 0)),
            pl.BlockSpec((None, Qm, Sk), mask_map),
        ],
        out_specs=pl.BlockSpec((None, H, Sq, D), lambda b: (b, 0, 0, 0)),
        compiler_params=pltpu.CompilerParams(dimension_semantics=("parallel",)),
    )(q.astype(jnp.float32), k.astype(jnp.float32), v.astype(jnp.float32),
      mask.astype(jnp.float32))


# ----------------------------------------------------------------------------
# Model (plain-JAX orchestration around the Pallas kernels)
# ----------------------------------------------------------------------------
def self_attention_ctx(attn_p, x, mask, num_heads, embed_size):
    """Fused QKV projection + batched-heads attention; returns context [B*S, E]."""
    B, S, E = x.shape
    D = E // num_heads
    qkv = linear_pallas(x.reshape(B * S, E), attn_p["w_qkv"], attn_p["b_qkv"])
    qkv = qkv.reshape(B, S, 3, num_heads, D)
    q = qkv[:, :, 0].transpose(0, 2, 1, 3)
    k = qkv[:, :, 1].transpose(0, 2, 1, 3)
    v = qkv[:, :, 2].transpose(0, 2, 1, 3)
    ctx = attention_pallas(q, k, v, mask, scale=1.0 / math.sqrt(embed_size))
    return ctx.transpose(0, 2, 1, 3).reshape(B * S, E)


def cross_attention_ctx(attn_p, kv_src, query, mask, num_heads, embed_size):
    """Q projection on `query`, fused KV projection on `kv_src`; returns [B*Sq, E]."""
    B, Sq, E = query.shape
    Sk = kv_src.shape[1]
    D = E // num_heads
    q = linear_pallas(query.reshape(B * Sq, E), attn_p["w_qkv"][:, :E], attn_p["b_qkv"][:E])
    kv = linear_pallas(kv_src.reshape(B * Sk, E), attn_p["w_qkv"][:, E:], attn_p["b_qkv"][E:])
    q = q.reshape(B, Sq, num_heads, D).transpose(0, 2, 1, 3)
    kv = kv.reshape(B, Sk, 2, num_heads, D)
    k = kv[:, :, 0].transpose(0, 2, 1, 3)
    v = kv[:, :, 1].transpose(0, 2, 1, 3)
    ctx = attention_pallas(q, k, v, mask, scale=1.0 / math.sqrt(embed_size))
    return ctx.transpose(0, 2, 1, 3).reshape(B * Sq, E)


def encoder_forward(p, src, src_mask, num_heads, embed_size):
    B, S = src.shape
    # TODO(synk): embedding lookup is a gather; kept in plain JAX (no clean dense Pallas fit at this size).
    x = p["word_emb"][src] + p["pos_emb"][jnp.arange(S)][None, :, :]
    for lp in p["layers"]:
        ctx = self_attention_ctx(lp["attn"], x, src_mask, num_heads, embed_size)
        x = block_epilogue_pallas(ctx, x.reshape(B * S, embed_size),
                                  lp["attn"], lp).reshape(B, S, embed_size)
    return x


def decoder_forward(p, tgt, enc_out, src_mask, tgt_mask, num_heads, embed_size, tgt_vocab):
    B, S = tgt.shape
    E = embed_size
    x = p["word_emb"][tgt] + p["pos_emb"][jnp.arange(S)][None, :, :]
    for lp in p["layers"]:
        # masked self-attention + (out-proj + residual + LN) fused epilogue
        ctx = self_attention_ctx(lp["self_attn"], x, tgt_mask, num_heads, embed_size)
        query = proj_residual_ln_pallas(ctx, x.reshape(B * S, E),
                                        lp["self_attn"]["wo"], lp["self_attn"]["bo"],
                                        lp["ln_g"], lp["ln_b"]).reshape(B, S, E)
        # cross-attention + fused transformer-block epilogue
        ctx2 = cross_attention_ctx(lp["block"]["attn"], enc_out, query, src_mask,
                                   num_heads, embed_size)
        x = block_epilogue_pallas(ctx2, query.reshape(B * S, E),
                                  lp["block"]["attn"], lp["block"]).reshape(B, S, E)
    # lane-dense (padded to 128) vocab projection; slice back to the real vocab.
    logits = linear_pallas(x.reshape(B * S, E), p["fc_w_pad"], p["fc_b_pad"])
    return logits[:, :tgt_vocab].reshape(B, S, tgt_vocab)


def transformer_forward(params, src, tgt, *, num_heads, embed_size, tgt_vocab):
    # src_mask = (src != 0).unsqueeze(1).unsqueeze(2) -> broadcast over heads & query rows
    src_mask = (src != 0).astype(jnp.float32)[:, None, :]                   # [B, 1, S_src]
    S_tgt = tgt.shape[1]
    # tgt_mask = tril(ones(S,S)) broadcast over batch (causal, as in the torch module)
    tgt_mask = jnp.tril(jnp.ones((S_tgt, S_tgt), jnp.float32))[None, :, :]  # [1, S_tgt, S_tgt]
    enc_out = encoder_forward(params["encoder"], src, src_mask, num_heads, embed_size)
    return decoder_forward(params["decoder"], tgt, enc_out, src_mask, tgt_mask,
                           num_heads, embed_size, tgt_vocab)


# ----------------------------------------------------------------------------
# Deterministic parameter init
# ----------------------------------------------------------------------------
def _init_params(key, src_vocab, tgt_vocab, embed, num_layers, ff_hidden, max_len):
    keys = iter(jax.random.split(key, 256))

    def dense(i, o):
        return (0.02 * jax.random.normal(next(keys), (i, o), jnp.float32),
                jnp.zeros((o,), jnp.float32))

    def attn_params():
        # fused [wq | wk | wv] along the output dim
        w_qkv, b_qkv = dense(embed, 3 * embed)
        wo, bo = dense(embed, embed)
        return dict(w_qkv=w_qkv, b_qkv=b_qkv, wo=wo, bo=bo)

    def block_params():
        w1, b1 = dense(embed, ff_hidden)
        w2, b2 = dense(ff_hidden, embed)
        return dict(attn=attn_params(),
                    ln1_g=jnp.ones((embed,), jnp.float32), ln1_b=jnp.zeros((embed,), jnp.float32),
                    w1=w1, b1=b1, w2=w2, b2=b2,
                    ln2_g=jnp.ones((embed,), jnp.float32), ln2_b=jnp.zeros((embed,), jnp.float32))

    enc = dict(
        word_emb=0.02 * jax.random.normal(next(keys), (src_vocab, embed), jnp.float32),
        pos_emb=0.02 * jax.random.normal(next(keys), (max_len, embed), jnp.float32),
        layers=[block_params() for _ in range(num_layers)],
    )
    fc_w, fc_b = dense(embed, tgt_vocab)
    n_pad = max(128, ((tgt_vocab + 127) // 128) * 128)   # lane-dense output
    fc_w_pad = jnp.pad(fc_w, ((0, 0), (0, n_pad - tgt_vocab)))
    fc_b_pad = jnp.pad(fc_b, ((0, n_pad - tgt_vocab),))
    dec = dict(
        word_emb=0.02 * jax.random.normal(next(keys), (tgt_vocab, embed), jnp.float32),
        pos_emb=0.02 * jax.random.normal(next(keys), (max_len, embed), jnp.float32),
        layers=[dict(self_attn=attn_params(),
                     ln_g=jnp.ones((embed,), jnp.float32),
                     ln_b=jnp.zeros((embed,), jnp.float32),
                     block=block_params()) for _ in range(num_layers)],
        fc_w_pad=fc_w_pad, fc_b_pad=fc_b_pad,
    )
    return dict(encoder=enc, decoder=dec)


# ----------------------------------------------------------------------------
if __name__ == "__main__":
    # Small config: src_vocab=11, tgt_vocab=13, embed=32, layers=2, heads=4,
    # ff_hidden=64, dropout=0.0 (identity), max_len=16.
    SRC_VOCAB, TGT_VOCAB = 11, 13
    EMBED, NUM_LAYERS, NUM_HEADS, FF_HIDDEN, MAX_LEN = 32, 2, 4, 64, 16
    B, S_SRC, S_TGT = 2, 8, 8

    root = jax.random.PRNGKey(0)
    k_params, k_src, k_tgt = jax.random.split(root, 3)
    params = _init_params(k_params, SRC_VOCAB, TGT_VOCAB, EMBED, NUM_LAYERS, FF_HIDDEN, MAX_LEN)

    src = jax.random.randint(k_src, (B, S_SRC), 0, SRC_VOCAB, dtype=jnp.int32)
    src = src.at[:, -2:].set(0)  # some padding tokens so src_mask matters
    tgt = jax.random.randint(k_tgt, (B, S_TGT), 1, TGT_VOCAB, dtype=jnp.int32)

    fwd = jax.jit(functools.partial(transformer_forward, num_heads=NUM_HEADS,
                                    embed_size=EMBED, tgt_vocab=TGT_VOCAB))
    out = fwd(params, src, tgt)
    jax.block_until_ready(out)
    assert out.shape == (B, S_TGT, TGT_VOCAB) and out.dtype == jnp.float32
    print("KERNEL_OK")
</pallas_src>

<mosaic_0001>
module attributes {stable_mosaic.version = 11 : i64} {
  func.func @_linear_kernel(%arg0: i32, %arg1: memref<16x32xf32, #tpu.memory_space<vmem>>, %arg2: memref<32x96xf32, #tpu.memory_space<vmem>>, %arg3: memref<1x96xf32, #tpu.memory_space<vmem>>, %arg4: memref<16x96xf32, #tpu.memory_space<vmem>>) attributes {dimension_semantics = [#tpu.dimension_semantics<parallel>], iteration_bounds = array<i64: 1>, scalar_prefetch = 0 : i64, scratch_operands = 0 : i64, tpu.core_type = #tpu.core_type<tc>, window_params = [{transform_indices = @transform_0, window_bounds = array<i64: 16, 32>}, {pipeline_mode = #tpu.pipeline_mode<synchronous>, transform_indices = @transform_1, window_bounds = array<i64: 32, 96>}, {pipeline_mode = #tpu.pipeline_mode<synchronous>, transform_indices = @transform_2, window_bounds = array<i64: 1, 96>}, {transform_indices = @transform_3, window_bounds = array<i64: 16, 96>}]} {
    %c0 = arith.constant 0 : index
    %c0_0 = arith.constant 0 : index
    %0 = vector.load %arg1[%c0, %c0_0] : memref<16x32xf32, #tpu.memory_space<vmem>>, vector<16x32xf32>
    %c0_1 = arith.constant 0 : index
    %c0_2 = arith.constant 0 : index
    %1 = vector.load %arg2[%c0_1, %c0_2] : memref<32x96xf32, #tpu.memory_space<vmem>>, vector<32x96xf32>
    %cst = arith.constant dense<0.000000e+00> : vector<16x96xf32>
    %2 = tpu.matmul %0, %1, %cst {dimension_numbers = #tpu.dot_dimension_numbers<[1], [0], [0], [1], [0, 0, 1, 1], [], []>} : vector<16x32xf32>, vector<32x96xf32>, vector<16x96xf32> -> vector<16x96xf32>
    %c0_3 = arith.constant 0 : index
    %c0_4 = arith.constant 0 : index
    %3 = vector.load %arg3[%c0_3, %c0_4] : memref<1x96xf32, #tpu.memory_space<vmem>>, vector<1x96xf32>
    %4 = vector.broadcast %3 : vector<1x96xf32> to vector<16x96xf32>
    %5 = arith.addf %2, %4 : vector<16x96xf32>
    %c0_5 = arith.constant 0 : index
    %c0_6 = arith.constant 0 : index
    %6 = vector.load %arg4[%c0_5, %c0_6] : memref<16x96xf32, #tpu.memory_space<vmem>>, vector<16x96xf32>
    tpu.vector_store %arg4[%c0_5, %c0_6], %5 {strides = array<i32>} : memref<16x96xf32, #tpu.memory_space<vmem>>, vector<16x96xf32>,
    return
  }
  func.func @transform_0(%arg0: i32) -> (i32, i32) {
    %c0_i32 = arith.constant 0 : i32
    %c0_i32_0 = arith.constant 0 : i32
    return %arg0, %c0_i32 : i32, i32
  }
  func.func @transform_1(%arg0: i32) -> (i32, i32) {
    %c0_i32 = arith.constant 0 : i32
    %c0_i32_0 = arith.constant 0 : i32
    %c0_i32_1 = arith.constant 0 : i32
    return %c0_i32, %c0_i32_0 : i32, i32
  }
  func.func @transform_2(%arg0: i32) -> (i32, i32) {
    %c0_i32 = arith.constant 0 : i32
    %c0_i32_0 = arith.constant 0 : i32
    %c0_i32_1 = arith.constant 0 : i32
    return %c0_i32, %c0_i32_0 : i32, i32
  }
  func.func @transform_3(%arg0: i32) -> (i32, i32) {
    %c0_i32 = arith.constant 0 : i32
    %c0_i32_0 = arith.constant 0 : i32
    return %arg0, %c0_i32 : i32, i32
  }
}

module attributes {stable_mosaic.version = 11 : i64} {
  func.func @_attention_kernel(%arg0: i32, %arg1: memref<1x4x8x8xf32, #tpu.memory_space<vmem>>, %arg2: memref<1x4x8x8xf32, #tpu.memory_space<vmem>>, %arg3: memref<1x4x8x8xf32, #tpu.memory_space<vmem>>, %arg4: memref<1x8x8xf32, #tpu.memory_space<vmem>>, %arg5: memref<1x4x8x8xf32, #tpu.memory_space<vmem>>) attributes {dimension_semantics = [#tpu.dimension_semantics<parallel>], iteration_bounds = array<i64: 2>, scalar_prefetch = 0 : i64, scratch_operands = 0 : i64, tpu.core_type = #tpu.core_type<tc>, window_params = [{transform_indices = @transform_0, window_bounds = array<i64: 1, 4, 8, 8>}, {transform_indices = @transform_1, window_bounds = array<i64: 1, 4, 8, 8>}, {transform_indices = @transform_2, window_bounds = array<i64: 1, 4, 8, 8>}, {pipeline_mode = #tpu.pipeline_mode<synchronous>, transform_indices = @transform_3, window_bounds = array<i64: 1, 8, 8>}, {transform_indices = @transform_4, window_bounds = array<i64: 1, 4, 8, 8>}]} {
    %c0 = arith.constant 0 : index
    %c0_0 = arith.constant 0 : index
    %c0_1 = arith.constant 0 : index
    %c0_2 = arith.constant 0 : index
    %0 = vector.load %arg1[%c0, %c0_0, %c0_1, %c0_2] : memref<1x4x8x8xf32, #tpu.memory_space<vmem>>, vector<1x4x8x8xf32>
    %1 = vector.shape_cast %0 : vector<1x4x8x8xf32> to vector<4x8x8xf32>
    %cst = arith.constant 0.176776692 : f32
    %2 = vector.broadcast %cst : f32 to vector<4x8x8xf32>
    %3 = arith.mulf %1, %2 : vector<4x8x8xf32>
    %c0_3 = arith.constant 0 : index
    %c0_4 = arith.constant 0 : index
    %c0_5 = arith.constant 0 : index
    %c0_6 = arith.constant 0 : index
    %4 = vector.load %arg2[%c0_3, %c0_4, %c0_5, %c0_6] : memref<1x4x8x8xf32, #tpu.memory_space<vmem>>, vector<1x4x8x8xf32>
    %5 = vector.shape_cast %4 : vector<1x4x8x8xf32> to vector<4x8x8xf32>
    %c0_7 = arith.constant 0 : index
    %c0_8 = arith.constant 0 : index
    %c0_9 = arith.constant 0 : index
    %c0_10 = arith.constant 0 : index
    %6 = vector.load %arg3[%c0_7, %c0_8, %c0_9, %c0_10] : memref<1x4x8x8xf32, #tpu.memory_space<vmem>>, vector<1x4x8x8xf32>
    %7 = vector.shape_cast %6 : vector<1x4x8x8xf32> to vector<4x8x8xf32>
    %c0_11 = arith.constant 0 : index
    %c0_12 = arith.constant 0 : index
    %c0_13 = arith.constant 0 : index
    %8 = vector.load %arg4[%c0_11, %c0_12, %c0_13] : memref<1x8x8xf32, #tpu.memory_space<vmem>>, vector<1x8x8xf32>
    %9 = vector.shape_cast %8 : vector<1x8x8xf32> to vector<8x8xf32>
    "tpu.trace_start"() <{level = 10 : i32, message = "hqd,hkd->hqk"}> : () -> ()
    %cst_14 = arith.constant dense<0.000000e+00> : vector<4x8x8xf32>
    %10 = tpu.matmul %3, %5, %cst_14 {dimension_numbers = #tpu.dot_dimension_numbers<[2], [2], [1], [1], [0, 0, 0, 1, 1, 1], [0], [0]>} : vector<4x8x8xf32>, vector<4x8x8xf32>, vector<4x8x8xf32> -> vector<4x8x8xf32>
    "tpu.trace_stop"() : () -> ()
    %11 = vector.shape_cast %9 : vector<8x8xf32> to vector<1x8x8xf32>
    %cst_15 = arith.constant 0.000000e+00 : f32
    %12 = vector.broadcast %cst_15 : f32 to vector<1x8x8xf32>
    %13 = arith.cmpf oeq, %11, %12 : vector<1x8x8xf32>
    %cst_16 = arith.constant -1.000000e+20 : f32
    %14 = vector.shape_cast %13 : vector<1x8x8xi1> to vector<1x8x8xi1>
    %15 = vector.broadcast %14 : vector<1x8x8xi1> to vector<4x8x8xi1>
    %16 = vector.broadcast %cst_16 : f32 to vector<4x8x8xf32>
    %17 = arith.select %15, %16, %10 : vector<4x8x8xi1>, vector<4x8x8xf32>
    %cst_17 = arith.constant dense<0xFF800000> : vector<4x8xf32>
    %18 = vector.multi_reduction <maximumf>, %17, %cst_17 [2] : vector<4x8x8xf32> to vector<4x8xf32>
    %19 = vector.shape_cast %18 : vector<4x8xf32> to vector<4x8x1xf32>
    %20 = vector.broadcast %19 : vector<4x8x1xf32> to vector<4x8x8xf32>
    %21 = arith.subf %17, %20 : vector<4x8x8xf32>
    %22 = math.exp %21 : vector<4x8x8xf32>
    %cst_18 = arith.constant dense<0.000000e+00> : vector<4x8xf32>
    %23 = vector.multi_reduction <add>, %22, %cst_18 [2] : vector<4x8x8xf32> to vector<4x8xf32>
    %24 = vector.shape_cast %23 : vector<4x8xf32> to vector<4x8x1xf32>
    %25 = tpu.reciprocal %24 {approx = true} : vector<4x8x1xf32> -> vector<4x8x1xf32>
    %26 = vector.broadcast %25 : vector<4x8x1xf32> to vector<4x8x8xf32>
    %27 = arith.mulf %22, %26 : vector<4x8x8xf32>
    "tpu.trace_start"() <{level = 10 : i32, message = "hqk,hkd->hqd"}> : () -> ()
    %cst_19 = arith.constant dense<0.000000e+00> : vector<4x8x8xf32>
    %28 = tpu.matmul %27, %7, %cst_19 {dimension_numbers = #tpu.dot_dimension_numbers<[2], [1], [1], [2], [0, 0, 0, 1, 1, 2], [0], [0]>} : vector<4x8x8xf32>, vector<4x8x8xf32>, vector<4x8x8xf32> -> vector<4x8x8xf32>
    "tpu.trace_stop"() : () -> ()
    %c0_20 = arith.constant 0 : index
    %c0_21 = arith.constant 0 : index
    %c0_22 = arith.constant 0 : index
    %c0_23 = arith.constant 0 : index
    %29 = vector.load %arg5[%c0_20, %c0_21, %c0_22, %c0_23] : memref<1x4x8x8xf32, #tpu.memory_space<vmem>>, vector<1x4x8x8xf32>
    %30 = vector.shape_cast %29 : vector<1x4x8x8xf32> to vector<4x8x8xf32>
    %31 = vector.shape_cast %28 : vector<4x8x8xf32> to vector<1x4x8x8xf32>
    tpu.vector_store %arg5[%c0_20, %c0_21, %c0_22, %c0_23], %31 {strides = array<i32>} : memref<1x4x8x8xf32, #tpu.memory_space<vmem>>, vector<1x4x8x8xf32>,
    return
  }
  func.func @transform_0(%arg0: i32) -> (i32, i32, i32, i32) {
    %c0_i32 = arith.constant 0 : i32
    %c0_i32_0 = arith.constant 0 : i32
    %c0_i32_1 = arith.constant 0 : i32
    %c0_i32_2 = arith.constant 0 : i32
    return %arg0, %c0_i32, %c0_i32_0, %c0_i32_1 : i32, i32, i32, i32
  }
  func.func @transform_1(%arg0: i32) -> (i32, i32, i32, i32) {
    %c0_i32 = arith.constant 0 : i32
    %c0_i32_0 = arith.constant 0 : i32
    %c0_i32_1 = arith.constant 0 : i32
    %c0_i32_2 = arith.constant 0 : i32
    return %arg0, %c0_i32, %c0_i32_0, %c0_i32_1 : i32, i32, i32, i32
  }
  func.func @transform_2(%arg0: i32) -> (i32, i32, i32, i32) {
    %c0_i32 = arith.constant 0 : i32
    %c0_i32_0 = arith.constant 0 : i32
    %c0_i32_1 = arith.constant 0 : i32
    %c0_i32_2 = arith.constant 0 : i32
    return %arg0, %c0_i32, %c0_i32_0, %c0_i32_1 : i32, i32, i32, i32
  }
  func.func @transform_3(%arg0: i32) -> (i32, i32, i32) {
    %c0_i32 = arith.constant 0 : i32
    %c0_i32_0 = arith.constant 0 : i32
    %c0_i32_1 = arith.constant 0 : i32
    %c0_i32_2 = arith.constant 0 : i32
    return %c0_i32, %c0_i32_0, %c0_i32_1 : i32, i32, i32
  }
  func.func @transform_4(%arg0: i32) -> (i32, i32, i32, i32) {
    %c0_i32 = arith.constant 0 : i32
    %c0_i32_0 = arith.constant 0 : i32
    %c0_i32_1 = arith.constant 0 : i32
    %c0_i32_2 = arith.constant 0 : i32
    return %arg0, %c0_i32, %c0_i32_0, %c0_i32_1 : i32, i32, i32, i32
  }
}

module attributes {stable_mosaic.version = 11 : i64} {
  func.func @_proj_res_ln_kernel(%arg0: i32, %arg1: memref<16x32xf32, #tpu.memory_space<vmem>>, %arg2: memref<16x32xf32, #tpu.memory_space<vmem>>, %arg3: memref<32x32xf32, #tpu.memory_space<vmem>>, %arg4: memref<1x32xf32, #tpu.memory_space<vmem>>, %arg5: memref<1x32xf32, #tpu.memory_space<vmem>>, %arg6: memref<1x32xf32, #tpu.memory_space<vmem>>, %arg7: memref<16x32xf32, #tpu.memory_space<vmem>>) attributes {dimension_semantics = [#tpu.dimension_semantics<parallel>], iteration_bounds = array<i64: 1>, scalar_prefetch = 0 : i64, scratch_operands = 0 : i64, tpu.core_type = #tpu.core_type<tc>, window_params = [{transform_indices = @transform_0, window_bounds = array<i64: 16, 32>}, {transform_indices = @transform_1, window_bounds = array<i64: 16, 32>}, {pipeline_mode = #tpu.pipeline_mode<synchronous>, transform_indices = @transform_2, window_bounds = array<i64: 32, 32>}, {pipeline_mode = #tpu.pipeline_mode<synchronous>, transform_indices = @transform_3, window_bounds = array<i64: 1, 32>}, {pipeline_mode = #tpu.pipeline_mode<synchronous>, transform_indices = @transform_4, window_bounds = array<i64: 1, 32>}, {pipeline_mode = #tpu.pipeline_mode<synchronous>, transform_indices = @transform_5, window_bounds = array<i64: 1, 32>}, {transform_indices = @transform_6, window_bounds = array<i64: 16, 32>}]} {
    %c0 = arith.constant 0 : index
    %c0_0 = arith.constant 0 : index
    %0 = vector.load %arg1[%c0, %c0_0] : memref<16x32xf32, #tpu.memory_space<vmem>>, vector<16x32xf32>
    %c0_1 = arith.constant 0 : index
    %c0_2 = arith.constant 0 : index
    %1 = vector.load %arg3[%c0_1, %c0_2] : memref<32x32xf32, #tpu.memory_space<vmem>>, vector<32x32xf32>
    %cst = arith.constant dense<0.000000e+00> : vector<16x32xf32>
    %2 = tpu.matmul %0, %1, %cst {dimension_numbers = #tpu.dot_dimension_numbers<[1], [0], [0], [1], [0, 0, 1, 1], [], []>} : vector<16x32xf32>, vector<32x32xf32>, vector<16x32xf32> -> vector<16x32xf32>
    %c0_3 = arith.constant 0 : index
    %c0_4 = arith.constant 0 : index
    %3 = vector.load %arg4[%c0_3, %c0_4] : memref<1x32xf32, #tpu.memory_space<vmem>>, vector<1x32xf32>
    %4 = vector.broadcast %3 : vector<1x32xf32> to vector<16x32xf32>
    %5 = arith.addf %2, %4 : vector<16x32xf32>
    %c0_5 = arith.constant 0 : index
    %c0_6 = arith.constant 0 : index
    %6 = vector.load %arg2[%c0_5, %c0_6] : memref<16x32xf32, #tpu.memory_space<vmem>>, vector<16x32xf32>
    %7 = arith.addf %5, %6 : vector<16x32xf32>
    %c0_7 = arith.constant 0 : index
    %c0_8 = arith.constant 0 : index
    %8 = vector.load %arg5[%c0_7, %c0_8] : memref<1x32xf32, #tpu.memory_space<vmem>>, vector<1x32xf32>
    %c0_9 = arith.constant 0 : index
    %c0_10 = arith.constant 0 : index
    %9 = vector.load %arg6[%c0_9, %c0_10] : memref<1x32xf32, #tpu.memory_space<vmem>>, vector<1x32xf32>
    %cst_11 = arith.constant dense<0.000000e+00> : vector<16xf32>
    %10 = vector.multi_reduction <add>, %7, %cst_11 [1] : vector<16x32xf32> to vector<16xf32>
    %11 = vector.shape_cast %10 : vector<16xf32> to vector<16x1xf32>
    %cst_12 = arith.constant 3.200000e+01 : f32
    %12 = vector.broadcast %cst_12 : f32 to vector<16x1xf32>
    %13 = arith.divf %11, %12 : vector<16x1xf32>
    %14 = vector.broadcast %13 : vector<16x1xf32> to vector<16x32xf32>
    %15 = arith.subf %7, %14 : vector<16x32xf32>
    %16 = arith.mulf %15, %15 : vector<16x32xf32>
    %cst_13 = arith.constant dense<0.000000e+00> : vector<16xf32>
    %17 = vector.multi_reduction <add>, %16, %cst_13 [1] : vector<16x32xf32> to vector<16xf32>
    %18 = vector.shape_cast %17 : vector<16xf32> to vector<16x1xf32>
    %cst_14 = arith.constant 3.200000e+01 : f32
    %19 = vector.broadcast %cst_14 : f32 to vector<16x1xf32>
    %20 = arith.divf %18, %19 : vector<16x1xf32>
    %21 = vector.broadcast %13 : vector<16x1xf32> to vector<16x32xf32>
    %22 = arith.subf %7, %21 : vector<16x32xf32>
    %cst_15 = arith.constant 9.99999974E-6 : f32
    %23 = vector.broadcast %cst_15 : f32 to vector<16x1xf32>
    %24 = arith.addf %20, %23 : vector<16x1xf32>
    %25 = math.rsqrt %24 : vector<16x1xf32>
    %26 = vector.broadcast %25 : vector<16x1xf32> to vector<16x32xf32>
    %27 = arith.mulf %22, %26 : vector<16x32xf32>
    %28 = vector.broadcast %8 : vector<1x32xf32> to vector<16x32xf32>
    %29 = arith.mulf %27, %28 : vector<16x32xf32>
    %30 = vector.broadcast %9 : vector<1x32xf32> to vector<16x32xf32>
    %31 = arith.addf %29, %30 : vector<16x32xf32>
    %c0_16 = arith.constant 0 : index
    %c0_17 = arith.constant 0 : index
    %32 = vector.load %arg7[%c0_16, %c0_17] : memref<16x32xf32, #tpu.memory_space<vmem>>, vector<16x32xf32>
    tpu.vector_store %arg7[%c0_16, %c0_17], %31 {strides = array<i32>} : memref<16x32xf32, #tpu.memory_space<vmem>>, vector<16x32xf32>,
    return
  }
  func.func @transform_0(%arg0: i32) -> (i32, i32) {
    %c0_i32 = arith.constant 0 : i32
    %c0_i32_0 = arith.constant 0 : i32
    return %arg0, %c0_i32 : i32, i32
  }
  func.func @transform_1(%arg0: i32) -> (i32, i32) {
    %c0_i32 = arith.constant 0 : i32
    %c0_i32_0 = arith.constant 0 : i32
    return %arg0, %c0_i32 : i32, i32
  }
  func.func @transform_2(%arg0: i32) -> (i32, i32) {
    %c0_i32 = arith.constant 0 : i32
    %c0_i32_0 = arith.constant 0 : i32
    %c0_i32_1 = arith.constant 0 : i32
    return %c0_i32, %c0_i32_0 : i32, i32
  }
  func.func @transform_3(%arg0: i32) -> (i32, i32) {
    %c0_i32 = arith.constant 0 : i32
    %c0_i32_0 = arith.constant 0 : i32
    %c0_i32_1 = arith.constant 0 : i32
    return %c0_i32, %c0_i32_0 : i32, i32
  }
  func.func @transform_4(%arg0: i32) -> (i32, i32) {
    %c0_i32 = arith.constant 0 : i32
    %c0_i32_0 = arith.constant 0 : i32
    %c0_i32_1 = arith.constant 0 : i32
    return %c0_i32, %c0_i32_0 : i32, i32
  }
  func.func @transform_5(%arg0: i32) -> (i32, i32) {
    %c0_i32 = arith.constant 0 : i32
    %c0_i32_0 = arith.constant 0 : i32
    %c0_i32_1 = arith.constant 0 : i32
    return %c0_i32, %c0_i32_0 : i32, i32
  }
  func.func @transform_6(%arg0: i32) -> (i32, i32) {
    %c0_i32 = arith.constant 0 : i32
    %c0_i32_0 = arith.constant 0 : i32
    return %arg0, %c0_i32 : i32, i32
  }
}

module attributes {stable_mosaic.version = 11 : i64} {
  func.func @_linear_kernel(%arg0: i32, %arg1: memref<16x32xf32, #tpu.memory_space<vmem>>, %arg2: memref<32x32xf32, #tpu.memory_space<vmem>>, %arg3: memref<1x32xf32, #tpu.memory_space<vmem>>, %arg4: memref<16x32xf32, #tpu.memory_space<vmem>>) attributes {dimension_semantics = [#tpu.dimension_semantics<parallel>], iteration_bounds = array<i64: 1>, scalar_prefetch = 0 : i64, scratch_operands = 0 : i64, tpu.core_type = #tpu.core_type<tc>, window_params = [{transform_indices = @transform_0, window_bounds = array<i64: 16, 32>}, {pipeline_mode = #tpu.pipeline_mode<synchronous>, transform_indices = @transform_1, window_bounds = array<i64: 32, 32>}, {pipeline_mode = #tpu.pipeline_mode<synchronous>, transform_indices = @transform_2, window_bounds = array<i64: 1, 32>}, {transform_indices = @transform_3, window_bounds = array<i64: 16, 32>}]} {
    %c0 = arith.constant 0 : index
    %c0_0 = arith.constant 0 : index
    %0 = vector.load %arg1[%c0, %c0_0] : memref<16x32xf32, #tpu.memory_space<vmem>>, vector<16x32xf32>
    %c0_1 = arith.constant 0 : index
    %c0_2 = arith.constant 0 : index
    %1 = vector.load %arg2[%c0_1, %c0_2] : memref<32x32xf32, #tpu.memory_space<vmem>>, vector<32x32xf32>
    %cst = arith.constant dense<0.000000e+00> : vector<16x32xf32>
    %2 = tpu.matmul %0, %1, %cst {dimension_numbers = #tpu.dot_dimension_numbers<[1], [0], [0], [1], [0, 0, 1, 1], [], []>} : vector<16x32xf32>, vector<32x32xf32>, vector<16x32xf32> -> vector<16x32xf32>
    %c0_3 = arith.constant 0 : index
    %c0_4 = arith.constant 0 : index
    %3 = vector.load %arg3[%c0_3, %c0_4] : memref<1x32xf32, #tpu.memory_space<vmem>>, vector<1x32xf32>
    %4 = vector.broadcast %3 : vector<1x32xf32> to vector<16x32xf32>
    %5 = arith.addf %2, %4 : vector<16x32xf32>
    %c0_5 = arith.constant 0 : index
    %c0_6 = arith.constant 0 : index
    %6 = vector.load %arg4[%c0_5, %c0_6] : memref<16x32xf32, #tpu.memory_space<vmem>>, vector<16x32xf32>
    tpu.vector_store %arg4[%c0_5, %c0_6], %5 {strides = array<i32>} : memref<16x32xf32, #tpu.memory_space<vmem>>, vector<16x32xf32>,
    return
  }
  func.func @transform_0(%arg0: i32) -> (i32, i32) {
    %c0_i32 = arith.constant 0 : i32
    %c0_i32_0 = arith.constant 0 : i32
    return %arg0, %c0_i32 : i32, i32
  }
  func.func @transform_1(%arg0: i32) -> (i32, i32) {
    %c0_i32 = arith.constant 0 : i32
    %c0_i32_0 = arith.constant 0 : i32
    %c0_i32_1 = arith.constant 0 : i32
    return %c0_i32, %c0_i32_0 : i32, i32
  }
  func.func @transform_2(%arg0: i32) -> (i32, i32) {
    %c0_i32 = arith.constant 0 : i32
    %c0_i32_0 = arith.constant 0 : i32
    %c0_i32_1 = arith.constant 0 : i32
    return %c0_i32, %c0_i32_0 : i32, i32
  }
  func.func @transform_3(%arg0: i32) -> (i32, i32) {
    %c0_i32 = arith.constant 0 : i32
    %c0_i32_0 = arith.constant 0 : i32
    return %arg0, %c0_i32 : i32, i32
  }
}

module attributes {stable_mosaic.version = 11 : i64} {
  func.func @_block_epilogue_kernel(%arg0: i32, %arg1: memref<16x32xf32, #tpu.memory_space<vmem>>, %arg2: memref<16x32xf32, #tpu.memory_space<vmem>>, %arg3: memref<32x32xf32, #tpu.memory_space<vmem>>, %arg4: memref<1x32xf32, #tpu.memory_space<vmem>>, %arg5: memref<1x32xf32, #tpu.memory_space<vmem>>, %arg6: memref<1x32xf32, #tpu.memory_space<vmem>>, %arg7: memref<32x64xf32, #tpu.memory_space<vmem>>, %arg8: memref<1x64xf32, #tpu.memory_space<vmem>>, %arg9: memref<64x32xf32, #tpu.memory_space<vmem>>, %arg10: memref<1x32xf32, #tpu.memory_space<vmem>>, %arg11: memref<1x32xf32, #tpu.memory_space<vmem>>, %arg12: memref<1x32xf32, #tpu.memory_space<vmem>>, %arg13: memref<16x32xf32, #tpu.memory_space<vmem>>) attributes {dimension_semantics = [#tpu.dimension_semantics<parallel>], iteration_bounds = array<i64: 1>, scalar_prefetch = 0 : i64, scratch_operands = 0 : i64, tpu.core_type = #tpu.core_type<tc>, window_params = [{transform_indices = @transform_0, window_bounds = array<i64: 16, 32>}, {transform_indices = @transform_1, window_bounds = array<i64: 16, 32>}, {pipeline_mode = #tpu.pipeline_mode<synchronous>, transform_indices = @transform_2, window_bounds = array<i64: 32, 32>}, {pipeline_mode = #tpu.pipeline_mode<synchronous>, transform_indices = @transform_3, window_bounds = array<i64: 1, 32>}, {pipeline_mode = #tpu.pipeline_mode<synchronous>, transform_indices = @transform_4, window_bounds = array<i64: 1, 32>}, {pipeline_mode = #tpu.pipeline_mode<synchronous>, transform_indices = @transform_5, window_bounds = array<i64: 1, 32>}, {pipeline_mode = #tpu.pipeline_mode<synchronous>, transform_indices = @transform_6, window_bounds = array<i64: 32, 64>}, {pipeline_mode = #tpu.pipeline_mode<synchronous>, transform_indices = @transform_7, window_bounds = array<i64: 1, 64>}, {pipeline_mode = #tpu.pipeline_mode<synchronous>, transform_indices = @transform_8, window_bounds = array<i64: 64, 32>}, {pipeline_mode = #tpu.pipeline_mode<synchronous>, transform_indices = @transform_9, window_bounds = array<i64: 1, 32>}, {pipeline_mode = #tpu.pipeline_mode<synchronous>, transform_indices = @transform_10, window_bounds = array<i64: 1, 32>}, {pipeline_mode = #tpu.pipeline_mode<synchronous>, transform_indices = @transform_11, window_bounds = array<i64: 1, 32>}, {transform_indices = @transform_12, window_bounds = array<i64: 16, 32>}]} {
    %c0 = arith.constant 0 : index
    %c0_0 = arith.constant 0 : index
    %0 = vector.load %arg1[%c0, %c0_0] : memref<16x32xf32, #tpu.memory_space<vmem>>, vector<16x32xf32>
    %c0_1 = arith.constant 0 : index
    %c0_2 = arith.constant 0 : index
    %1 = vector.load %arg3[%c0_1, %c0_2] : memref<32x32xf32, #tpu.memory_space<vmem>>, vector<32x32xf32>
    %cst = arith.constant dense<0.000000e+00> : vector<16x32xf32>
    %2 = tpu.matmul %0, %1, %cst {dimension_numbers = #tpu.dot_dimension_numbers<[1], [0], [0], [1], [0, 0, 1, 1], [], []>} : vector<16x32xf32>, vector<32x32xf32>, vector<16x32xf32> -> vector<16x32xf32>
    %c0_3 = arith.constant 0 : index
    %c0_4 = arith.constant 0 : index
    %3 = vector.load %arg4[%c0_3, %c0_4] : memref<1x32xf32, #tpu.memory_space<vmem>>, vector<1x32xf32>
    %4 = vector.broadcast %3 : vector<1x32xf32> to vector<16x32xf32>
    %5 = arith.addf %2, %4 : vector<16x32xf32>
    %c0_5 = arith.constant 0 : index
    %c0_6 = arith.constant 0 : index
    %6 = vector.load %arg2[%c0_5, %c0_6] : memref<16x32xf32, #tpu.memory_space<vmem>>, vector<16x32xf32>
    %7 = arith.addf %5, %6 : vector<16x32xf32>
    %c0_7 = arith.constant 0 : index
    %c0_8 = arith.constant 0 : index
    %8 = vector.load %arg5[%c0_7, %c0_8] : memref<1x32xf32, #tpu.memory_space<vmem>>, vector<1x32xf32>
    %c0_9 = arith.constant 0 : index
    %c0_10 = arith.constant 0 : index
    %9 = vector.load %arg6[%c0_9, %c0_10] : memref<1x32xf32, #tpu.memory_space<vmem>>, vector<1x32xf32>
    %cst_11 = arith.constant dense<0.000000e+00> : vector<16xf32>
    %10 = vector.multi_reduction <add>, %7, %cst_11 [1] : vector<16x32xf32> to vector<16xf32>
    %11 = vector.shape_cast %10 : vector<16xf32> to vector<16x1xf32>
    %cst_12 = arith.constant 3.200000e+01 : f32
    %12 = vector.broadcast %cst_12 : f32 to vector<16x1xf32>
    %13 = arith.divf %11, %12 : vector<16x1xf32>
    %14 = vector.broadcast %13 : vector<16x1xf32> to vector<16x32xf32>
    %15 = arith.subf %7, %14 : vector<16x32xf32>
    %16 = arith.mulf %15, %15 : vector<16x32xf32>
    %cst_13 = arith.constant dense<0.000000e+00> : vector<16xf32>
    %17 = vector.multi_reduction <add>, %16, %cst_13 [1] : vector<16x32xf32> to vector<16xf32>
    %18 = vector.shape_cast %17 : vector<16xf32> to vector<16x1xf32>
    %cst_14 = arith.constant 3.200000e+01 : f32
    %19 = vector.broadcast %cst_14 : f32 to vector<16x1xf32>
    %20 = arith.divf %18, %19 : vector<16x1xf32>
    %21 = vector.broadcast %13 : vector<16x1xf32> to vector<16x32xf32>
    %22 = arith.subf %7, %21 : vector<16x32xf32>
    %cst_15 = arith.constant 9.99999974E-6 : f32
    %23 = vector.broadcast %cst_15 : f32 to vector<16x1xf32>
    %24 = arith.addf %20, %23 : vector<16x1xf32>
    %25 = math.rsqrt %24 : vector<16x1xf32>
    %26 = vector.broadcast %25 : vector<16x1xf32> to vector<16x32xf32>
    %27 = arith.mulf %22, %26 : vector<16x32xf32>
    %28 = vector.broadcast %8 : vector<1x32xf32> to vector<16x32xf32>
    %29 = arith.mulf %27, %28 : vector<16x32xf32>
    %30 = vector.broadcast %9 : vector<1x32xf32> to vector<16x32xf32>
    %31 = arith.addf %29, %30 : vector<16x32xf32>
    %c0_16 = arith.constant 0 : index
    %c0_17 = arith.constant 0 : index
    %32 = vector.load %arg7[%c0_16, %c0_17] : memref<32x64xf32, #tpu.memory_space<vmem>>, vector<32x64xf32>
    %cst_18 = arith.constant dense<0.000000e+00> : vector<16x64xf32>
    %33 = tpu.matmul %31, %32, %cst_18 {dimension_numbers = #tpu.dot_dimension_numbers<[1], [0], [0], [1], [0, 0, 1, 1], [], []>} : vector<16x32xf32>, vector<32x64xf32>, vector<16x64xf32> -> vector<16x64xf32>
    %c0_19 = arith.constant 0 : index
    %c0_20 = arith.constant 0 : index
    %34 = vector.load %arg8[%c0_19, %c0_20] : memref<1x64xf32, #tpu.memory_space<vmem>>, vector<1x64xf32>
    %35 = vector.broadcast %34 : vector<1x64xf32> to vector<16x64xf32>
    %36 = arith.addf %33, %35 : vector<16x64xf32>
    %cst_21 = arith.constant 0.000000e+00 : f32
    %37 = vector.broadcast %cst_21 : f32 to vector<16x64xf32>
    %38 = arith.maximumf %36, %37 : vector<16x64xf32>
    %c0_22 = arith.constant 0 : index
    %c0_23 = arith.constant 0 : index
    %39 = vector.load %arg9[%c0_22, %c0_23] : memref<64x32xf32, #tpu.memory_space<vmem>>, vector<64x32xf32>
    %cst_24 = arith.constant dense<0.000000e+00> : vector<16x32xf32>
    %40 = tpu.matmul %38, %39, %cst_24 {dimension_numbers = #tpu.dot_dimension_numbers<[1], [0], [0], [1], [0, 0, 1, 1], [], []>} : vector<16x64xf32>, vector<64x32xf32>, vector<16x32xf32> -> vector<16x32xf32>
    %c0_25 = arith.constant 0 : index
    %c0_26 = arith.constant 0 : index
    %41 = vector.load %arg10[%c0_25, %c0_26] : memref<1x32xf32, #tpu.memory_space<vmem>>, vector<1x32xf32>
    %42 = vector.broadcast %41 : vector<1x32xf32> to vector<16x32xf32>
    %43 = arith.addf %40, %42 : vector<16x32xf32>
    %44 = arith.addf %43, %31 : vector<16x32xf32>
    %c0_27 = arith.constant 0 : index
    %c0_28 = arith.constant 0 : index
    %45 = vector.load %arg11[%c0_27, %c0_28] : memref<1x32xf32, #tpu.memory_space<vmem>>, vector<1x32xf32>
    %c0_29 = arith.constant 0 : index
    %c0_30 = arith.constant 0 : index
    %46 = vector.load %arg12[%c0_29, %c0_30] : memref<1x32xf32, #tpu.memory_space<vmem>>, vector<1x32xf32>
    %cst_31 = arith.constant dense<0.000000e+00> : vector<16xf32>
    %47 = vector.multi_reduction <add>, %44, %cst_31 [1] : vector<16x32xf32> to vector<16xf32>
    %48 = vector.shape_cast %47 : vector<16xf32> to vector<16x1xf32>
    %cst_32 = arith.constant 3.200000e+01 : f32
    %49 = vector.broadcast %cst_32 : f32 to vector<16x1xf32>
    %50 = arith.divf %48, %49 : vector<16x1xf32>
    %51 = vector.broadcast %50 : vector<16x1xf32> to vector<16x32xf32>
    %52 = arith.subf %44, %51 : vector<16x32xf32>
    %53 = arith.mulf %52, %52 : vector<16x32xf32>
    %cst_33 = arith.constant dense<0.000000e+00> : vector<16xf32>
    %54 = vector.multi_reduction <add>, %53, %cst_33 [1] : vector<16x32xf32> to vector<16xf32>
    %55 = vector.shape_cast %54 : vector<16xf32> to vector<16x1xf32>
    %cst_34 = arith.constant 3.200000e+01 : f32
    %56 = vector.broadcast %cst_34 : f32 to vector<16x1xf32>
    %57 = arith.divf %55, %56 : vector<16x1xf32>
    %58 = vector.broadcast %50 : vector<16x1xf32> to vector<16x32xf32>
    %59 = arith.subf %44, %58 : vector<16x32xf32>
    %cst_35 = arith.constant 9.99999974E-6 : f32
    %60 = vector.broadcast %cst_35 : f32 to vector<16x1xf32>
    %61 = arith.addf %57, %60 : vector<16x1xf32>
    %62 = math.rsqrt %61 : vector<16x1xf32>
    %63 = vector.broadcast %62 : vector<16x1xf32> to vector<16x32xf32>
    %64 = arith.mulf %59, %63 : vector<16x32xf32>
    %65 = vector.broadcast %45 : vector<1x32xf32> to vector<16x32xf32>
    %66 = arith.mulf %64, %65 : vector<16x32xf32>
    %67 = vector.broadcast %46 : vector<1x32xf32> to vector<16x32xf32>
    %68 = arith.addf %66, %67 : vector<16x32xf32>
    %c0_36 = arith.constant 0 : index
    %c0_37 = arith.constant 0 : index
    %69 = vector.load %arg13[%c0_36, %c0_37] : memref<16x32xf32, #tpu.memory_space<vmem>>, vector<16x32xf32>
    tpu.vector_store %arg13[%c0_36, %c0_37], %68 {strides = array<i32>} : memref<16x32xf32, #tpu.memory_space<vmem>>, vector<16x32xf32>,
    return
  }
  func.func @transform_0(%arg0: i32) -> (i32, i32) {
    %c0_i32 = arith.constant 0 : i32
    %c0_i32_0 = arith.constant 0 : i32
    return %arg0, %c0_i32 : i32, i32
  }
  func.func @transform_1(%arg0: i32) -> (i32, i32) {
    %c0_i32 = arith.constant 0 : i32
    %c0_i32_0 = arith.constant 0 : i32
    return %arg0, %c0_i32 : i32, i32
  }
  func.func @transform_2(%arg0: i32) -> (i32, i32) {
    %c0_i32 = arith.constant 0 : i32
    %c0_i32_0 = arith.constant 0 : i32
    %c0_i32_1 = arith.constant 0 : i32
    return %c0_i32, %c0_i32_0 : i32, i32
  }
  func.func @transform_3(%arg0: i32) -> (i32, i32) {
    %c0_i32 = arith.constant 0 : i32
    %c0_i32_0 = arith.constant 0 : i32
    %c0_i32_1 = arith.constant 0 : i32
    return %c0_i32, %c0_i32_0 : i32, i32
  }
  func.func @transform_4(%arg0: i32) -> (i32, i32) {
    %c0_i32 = arith.constant 0 : i32
    %c0_i32_0 = arith.constant 0 : i32
    %c0_i32_1 = arith.constant 0 : i32
    return %c0_i32, %c0_i32_0 : i32, i32
  }
  func.func @transform_5(%arg0: i32) -> (i32, i32) {
    %c0_i32 = arith.constant 0 : i32
    %c0_i32_0 = arith.constant 0 : i32
    %c0_i32_1 = arith.constant 0 : i32
    return %c0_i32, %c0_i32_0 : i32, i32
  }
  func.func @transform_6(%arg0: i32) -> (i32, i32) {
    %c0_i32 = arith.constant 0 : i32
    %c0_i32_0 = arith.constant 0 : i32
    %c0_i32_1 = arith.constant 0 : i32
    return %c0_i32, %c0_i32_0 : i32, i32
  }
  func.func @transform_7(%arg0: i32) -> (i32, i32) {
    %c0_i32 = arith.constant 0 : i32
    %c0_i32_0 = arith.constant 0 : i32
    %c0_i32_1 = arith.constant 0 : i32
    return %c0_i32, %c0_i32_0 : i32, i32
  }
  func.func @transform_8(%arg0: i32) -> (i32, i32) {
    %c0_i32 = arith.constant 0 : i32
    %c0_i32_0 = arith.constant 0 : i32
    %c0_i32_1 = arith.constant 0 : i32
    return %c0_i32, %c0_i32_0 : i32, i32
  }
  func.func @transform_9(%arg0: i32) -> (i32, i32) {
    %c0_i32 = arith.constant 0 : i32
    %c0_i32_0 = arith.constant 0 : i32
    %c0_i32_1 = arith.constant 0 : i32
    return %c0_i32, %c0_i32_0 : i32, i32
  }
  func.func @transform_10(%arg0: i32) -> (i32, i32) {
    %c0_i32 = arith.constant 0 : i32
    %c0_i32_0 = arith.constant 0 : i32
    %c0_i32_1 = arith.constant 0 : i32
    return %c0_i32, %c0_i32_0 : i32, i32
  }
  func.func @transform_11(%arg0: i32) -> (i32, i32) {
    %c0_i32 = arith.constant 0 : i32
    %c0_i32_0 = arith.constant 0 : i32
    %c0_i32_1 = arith.constant 0 : i32
    return %c0_i32, %c0_i32_0 : i32, i32
  }
  func.func @transform_12(%arg0: i32) -> (i32, i32) {
    %c0_i32 = arith.constant 0 : i32
    %c0_i32_0 = arith.constant 0 : i32
    return %arg0, %c0_i32 : i32, i32
  }
}

module attributes {stable_mosaic.version = 11 : i64} {
  func.func @_attention_kernel(%arg0: i32, %arg1: memref<1x4x8x8xf32, #tpu.memory_space<vmem>>, %arg2: memref<1x4x8x8xf32, #tpu.memory_space<vmem>>, %arg3: memref<1x4x8x8xf32, #tpu.memory_space<vmem>>, %arg4: memref<1x1x8xf32, #tpu.memory_space<vmem>>, %arg5: memref<1x4x8x8xf32, #tpu.memory_space<vmem>>) attributes {dimension_semantics = [#tpu.dimension_semantics<parallel>], iteration_bounds = array<i64: 2>, scalar_prefetch = 0 : i64, scratch_operands = 0 : i64, tpu.core_type = #tpu.core_type<tc>, window_params = [{transform_indices = @transform_0, window_bounds = array<i64: 1, 4, 8, 8>}, {transform_indices = @transform_1, window_bounds = array<i64: 1, 4, 8, 8>}, {transform_indices = @transform_2, window_bounds = array<i64: 1, 4, 8, 8>}, {transform_indices = @transform_3, window_bounds = array<i64: 1, 1, 8>}, {transform_indices = @transform_4, window_bounds = array<i64: 1, 4, 8, 8>}]} {
    %c0 = arith.constant 0 : index
    %c0_0 = arith.constant 0 : index
    %c0_1 = arith.constant 0 : index
    %c0_2 = arith.constant 0 : index
    %0 = vector.load %arg1[%c0, %c0_0, %c0_1, %c0_2] : memref<1x4x8x8xf32, #tpu.memory_space<vmem>>, vector<1x4x8x8xf32>
    %1 = vector.shape_cast %0 : vector<1x4x8x8xf32> to vector<4x8x8xf32>
    %cst = arith.constant 0.176776692 : f32
    %2 = vector.broadcast %cst : f32 to vector<4x8x8xf32>
    %3 = arith.mulf %1, %2 : vector<4x8x8xf32>
    %c0_3 = arith.constant 0 : index
    %c0_4 = arith.constant 0 : index
    %c0_5 = arith.constant 0 : index
    %c0_6 = arith.constant 0 : index
    %4 = vector.load %arg2[%c0_3, %c0_4, %c0_5, %c0_6] : memref<1x4x8x8xf32, #tpu.memory_space<vmem>>, vector<1x4x8x8xf32>
    %5 = vector.shape_cast %4 : vector<1x4x8x8xf32> to vector<4x8x8xf32>
    %c0_7 = arith.constant 0 : index
    %c0_8 = arith.constant 0 : index
    %c0_9 = arith.constant 0 : index
    %c0_10 = arith.constant 0 : index
    %6 = vector.load %arg3[%c0_7, %c0_8, %c0_9, %c0_10] : memref<1x4x8x8xf32, #tpu.memory_space<vmem>>, vector<1x4x8x8xf32>
    %7 = vector.shape_cast %6 : vector<1x4x8x8xf32> to vector<4x8x8xf32>
    %c0_11 = arith.constant 0 : index
    %c0_12 = arith.constant 0 : index
    %c0_13 = arith.constant 0 : index
    %8 = vector.load %arg4[%c0_11, %c0_12, %c0_13] : memref<1x1x8xf32, #tpu.memory_space<vmem>>, vector<1x1x8xf32>
    %9 = vector.shape_cast %8 : vector<1x1x8xf32> to vector<1x8xf32>
    "tpu.trace_start"() <{level = 10 : i32, message = "hqd,hkd->hqk"}> : () -> ()
    %cst_14 = arith.constant dense<0.000000e+00> : vector<4x8x8xf32>
    %10 = tpu.matmul %3, %5, %cst_14 {dimension_numbers = #tpu.dot_dimension_numbers<[2], [2], [1], [1], [0, 0, 0, 1, 1, 1], [0], [0]>} : vector<4x8x8xf32>, vector<4x8x8xf32>, vector<4x8x8xf32> -> vector<4x8x8xf32>
    "tpu.trace_stop"() : () -> ()
    %11 = vector.shape_cast %9 : vector<1x8xf32> to vector<1x1x8xf32>
    %cst_15 = arith.constant 0.000000e+00 : f32
    %12 = vector.broadcast %cst_15 : f32 to vector<1x1x8xf32>
    %13 = arith.cmpf oeq, %11, %12 : vector<1x1x8xf32>
    %cst_16 = arith.constant -1.000000e+20 : f32
    %14 = vector.shape_cast %13 : vector<1x1x8xi1> to vector<1x1x8xi1>
    %15 = vector.broadcast %14 : vector<1x1x8xi1> to vector<4x8x8xi1>
    %16 = vector.broadcast %cst_16 : f32 to vector<4x8x8xf32>
    %17 = arith.select %15, %16, %10 : vector<4x8x8xi1>, vector<4x8x8xf32>
    %cst_17 = arith.constant dense<0xFF800000> : vector<4x8xf32>
    %18 = vector.multi_reduction <maximumf>, %17, %cst_17 [2] : vector<4x8x8xf32> to vector<4x8xf32>
    %19 = vector.shape_cast %18 : vector<4x8xf32> to vector<4x8x1xf32>
    %20 = vector.broadcast %19 : vector<4x8x1xf32> to vector<4x8x8xf32>
    %21 = arith.subf %17, %20 : vector<4x8x8xf32>
    %22 = math.exp %21 : vector<4x8x8xf32>
    %cst_18 = arith.constant dense<0.000000e+00> : vector<4x8xf32>
    %23 = vector.multi_reduction <add>, %22, %cst_18 [2] : vector<4x8x8xf32> to vector<4x8xf32>
    %24 = vector.shape_cast %23 : vector<4x8xf32> to vector<4x8x1xf32>
    %25 = tpu.reciprocal %24 {approx = true} : vector<4x8x1xf32> -> vector<4x8x1xf32>
    %26 = vector.broadcast %25 : vector<4x8x1xf32> to vector<4x8x8xf32>
    %27 = arith.mulf %22, %26 : vector<4x8x8xf32>
    "tpu.trace_start"() <{level = 10 : i32, message = "hqk,hkd->hqd"}> : () -> ()
    %cst_19 = arith.constant dense<0.000000e+00> : vector<4x8x8xf32>
    %28 = tpu.matmul %27, %7, %cst_19 {dimension_numbers = #tpu.dot_dimension_numbers<[2], [1], [1], [2], [0, 0, 0, 1, 1, 2], [0], [0]>} : vector<4x8x8xf32>, vector<4x8x8xf32>, vector<4x8x8xf32> -> vector<4x8x8xf32>
    "tpu.trace_stop"() : () -> ()
    %c0_20 = arith.constant 0 : index
    %c0_21 = arith.constant 0 : index
    %c0_22 = arith.constant 0 : index
    %c0_23 = arith.constant 0 : index
    %29 = vector.load %arg5[%c0_20, %c0_21, %c0_22, %c0_23] : memref<1x4x8x8xf32, #tpu.memory_space<vmem>>, vector<1x4x8x8xf32>
    %30 = vector.shape_cast %29 : vector<1x4x8x8xf32> to vector<4x8x8xf32>
    %31 = vector.shape_cast %28 : vector<4x8x8xf32> to vector<1x4x8x8xf32>
    tpu.vector_store %arg5[%c0_20, %c0_21, %c0_22, %c0_23], %31 {strides = array<i32>} : memref<1x4x8x8xf32, #tpu.memory_space<vmem>>, vector<1x4x8x8xf32>,
    return
  }
  func.func @transform_0(%arg0: i32) -> (i32, i32, i32, i32) {
    %c0_i32 = arith.constant 0 : i32
    %c0_i32_0 = arith.constant 0 : i32
    %c0_i32_1 = arith.constant 0 : i32
    %c0_i32_2 = arith.constant 0 : i32
    return %arg0, %c0_i32, %c0_i32_0, %c0_i32_1 : i32, i32, i32, i32
  }
  func.func @transform_1(%arg0: i32) -> (i32, i32, i32, i32) {
    %c0_i32 = arith.constant 0 : i32
    %c0_i32_0 = arith.constant 0 : i32
    %c0_i32_1 = arith.constant 0 : i32
    %c0_i32_2 = arith.constant 0 : i32
    return %arg0, %c0_i32, %c0_i32_0, %c0_i32_1 : i32, i32, i32, i32
  }
  func.func @transform_2(%arg0: i32) -> (i32, i32, i32, i32) {
    %c0_i32 = arith.constant 0 : i32
    %c0_i32_0 = arith.constant 0 : i32
    %c0_i32_1 = arith.constant 0 : i32
    %c0_i32_2 = arith.constant 0 : i32
    return %arg0, %c0_i32, %c0_i32_0, %c0_i32_1 : i32, i32, i32, i32
  }
  func.func @transform_3(%arg0: i32) -> (i32, i32, i32) {
    %c0_i32 = arith.constant 0 : i32
    %c0_i32_0 = arith.constant 0 : i32
    %c0_i32_1 = arith.constant 0 : i32
    return %arg0, %c0_i32, %c0_i32_0 : i32, i32, i32
  }
  func.func @transform_4(%arg0: i32) -> (i32, i32, i32, i32) {
    %c0_i32 = arith.constant 0 : i32
    %c0_i32_0 = arith.constant 0 : i32
    %c0_i32_1 = arith.constant 0 : i32
    %c0_i32_2 = arith.constant 0 : i32
    return %arg0, %c0_i32, %c0_i32_0, %c0_i32_1 : i32, i32, i32, i32
  }
}

module attributes {stable_mosaic.version = 11 : i64} {
  func.func @_linear_kernel(%arg0: i32, %arg1: memref<16x32xf32, #tpu.memory_space<vmem>>, %arg2: memref<32x64xf32, #tpu.memory_space<vmem>>, %arg3: memref<1x64xf32, #tpu.memory_space<vmem>>, %arg4: memref<16x64xf32, #tpu.memory_space<vmem>>) attributes {dimension_semantics = [#tpu.dimension_semantics<parallel>], iteration_bounds = array<i64: 1>, scalar_prefetch = 0 : i64, scratch_operands = 0 : i64, tpu.core_type = #tpu.core_type<tc>, window_params = [{transform_indices = @transform_0, window_bounds = array<i64: 16, 32>}, {pipeline_mode = #tpu.pipeline_mode<synchronous>, transform_indices = @transform_1, window_bounds = array<i64: 32, 64>}, {pipeline_mode = #tpu.pipeline_mode<synchronous>, transform_indices = @transform_2, window_bounds = array<i64: 1, 64>}, {transform_indices = @transform_3, window_bounds = array<i64: 16, 64>}]} {
    %c0 = arith.constant 0 : index
    %c0_0 = arith.constant 0 : index
    %0 = vector.load %arg1[%c0, %c0_0] : memref<16x32xf32, #tpu.memory_space<vmem>>, vector<16x32xf32>
    %c0_1 = arith.constant 0 : index
    %c0_2 = arith.constant 0 : index
    %1 = vector.load %arg2[%c0_1, %c0_2] : memref<32x64xf32, #tpu.memory_space<vmem>>, vector<32x64xf32>
    %cst = arith.constant dense<0.000000e+00> : vector<16x64xf32>
    %2 = tpu.matmul %0, %1, %cst {dimension_numbers = #tpu.dot_dimension_numbers<[1], [0], [0], [1], [0, 0, 1, 1], [], []>} : vector<16x32xf32>, vector<32x64xf32>, vector<16x64xf32> -> vector<16x64xf32>
    %c0_3 = arith.constant 0 : index
    %c0_4 = arith.constant 0 : index
    %3 = vector.load %arg3[%c0_3, %c0_4] : memref<1x64xf32, #tpu.memory_space<vmem>>, vector<1x64xf32>
    %4 = vector.broadcast %3 : vector<1x64xf32> to vector<16x64xf32>
    %5 = arith.addf %2, %4 : vector<16x64xf32>
    %c0_5 = arith.constant 0 : index
    %c0_6 = arith.constant 0 : index
    %6 = vector.load %arg4[%c0_5, %c0_6] : memref<16x64xf32, #tpu.memory_space<vmem>>, vector<16x64xf32>
    tpu.vector_store %arg4[%c0_5, %c0_6], %5 {strides = array<i32>} : memref<16x64xf32, #tpu.memory_space<vmem>>, vector<16x64xf32>,
    return
  }
  func.func @transform_0(%arg0: i32) -> (i32, i32) {
    %c0_i32 = arith.constant 0 : i32
    %c0_i32_0 = arith.constant 0 : i32
    return %arg0, %c0_i32 : i32, i32
  }
  func.func @transform_1(%arg0: i32) -> (i32, i32) {
    %c0_i32 = arith.constant 0 : i32
    %c0_i32_0 = arith.constant 0 : i32
    %c0_i32_1 = arith.constant 0 : i32
    return %c0_i32, %c0_i32_0 : i32, i32
  }
  func.func @transform_2(%arg0: i32) -> (i32, i32) {
    %c0_i32 = arith.constant 0 : i32
    %c0_i32_0 = arith.constant 0 : i32
    %c0_i32_1 = arith.constant 0 : i32
    return %c0_i32, %c0_i32_0 : i32, i32
  }
  func.func @transform_3(%arg0: i32) -> (i32, i32) {
    %c0_i32 = arith.constant 0 : i32
    %c0_i32_0 = arith.constant 0 : i32
    return %arg0, %c0_i32 : i32, i32
  }
}

module attributes {stable_mosaic.version = 11 : i64} {
  func.func @_linear_kernel(%arg0: i32, %arg1: memref<16x32xf32, #tpu.memory_space<vmem>>, %arg2: memref<32x128xf32, #tpu.memory_space<vmem>>, %arg3: memref<1x128xf32, #tpu.memory_space<vmem>>, %arg4: memref<16x128xf32, #tpu.memory_space<vmem>>) attributes {dimension_semantics = [#tpu.dimension_semantics<parallel>], iteration_bounds = array<i64: 1>, scalar_prefetch = 0 : i64, scratch_operands = 0 : i64, tpu.core_type = #tpu.core_type<tc>, window_params = [{transform_indices = @transform_0, window_bounds = array<i64: 16, 32>}, {pipeline_mode = #tpu.pipeline_mode<synchronous>, transform_indices = @transform_1, window_bounds = array<i64: 32, 128>}, {pipeline_mode = #tpu.pipeline_mode<synchronous>, transform_indices = @transform_2, window_bounds = array<i64: 1, 128>}, {transform_indices = @transform_3, window_bounds = array<i64: 16, 128>}]} {
    %c0 = arith.constant 0 : index
    %c0_0 = arith.constant 0 : index
    %0 = vector.load %arg1[%c0, %c0_0] : memref<16x32xf32, #tpu.memory_space<vmem>>, vector<16x32xf32>
    %c0_1 = arith.constant 0 : index
    %c0_2 = arith.constant 0 : index
    %1 = vector.load %arg2[%c0_1, %c0_2] : memref<32x128xf32, #tpu.memory_space<vmem>>, vector<32x128xf32>
    %cst = arith.constant dense<0.000000e+00> : vector<16x128xf32>
    %2 = tpu.matmul %0, %1, %cst {dimension_numbers = #tpu.dot_dimension_numbers<[1], [0], [0], [1], [0, 0, 1, 1], [], []>} : vector<16x32xf32>, vector<32x128xf32>, vector<16x128xf32> -> vector<16x128xf32>
    %c0_3 = arith.constant 0 : index
    %c0_4 = arith.constant 0 : index
    %3 = vector.load %arg3[%c0_3, %c0_4] : memref<1x128xf32, #tpu.memory_space<vmem>>, vector<1x128xf32>
    %4 = vector.broadcast %3 : vector<1x128xf32> to vector<16x128xf32>
    %5 = arith.addf %2, %4 : vector<16x128xf32>
    %c0_5 = arith.constant 0 : index
    %c0_6 = arith.constant 0 : index
    %6 = vector.load %arg4[%c0_5, %c0_6] : memref<16x128xf32, #tpu.memory_space<vmem>>, vector<16x128xf32>
    tpu.vector_store %arg4[%c0_5, %c0_6], %5 {strides = array<i32>} : memref<16x128xf32, #tpu.memory_space<vmem>>, vector<16x128xf32>,
    return
  }
  func.func @transform_0(%arg0: i32) -> (i32, i32) {
    %c0_i32 = arith.constant 0 : i32
    %c0_i32_0 = arith.constant 0 : i32
    return %arg0, %c0_i32 : i32, i32
  }
  func.func @transform_1(%arg0: i32) -> (i32, i32) {
    %c0_i32 = arith.constant 0 : i32
    %c0_i32_0 = arith.constant 0 : i32
    %c0_i32_1 = arith.constant 0 : i32
    return %c0_i32, %c0_i32_0 : i32, i32
  }
  func.func @transform_2(%arg0: i32) -> (i32, i32) {
    %c0_i32 = arith.constant 0 : i32
    %c0_i32_0 = arith.constant 0 : i32
    %c0_i32_1 = arith.constant 0 : i32
    return %c0_i32, %c0_i32_0 : i32, i32
  }
  func.func @transform_3(%arg0: i32) -> (i32, i32) {
    %c0_i32 = arith.constant 0 : i32
    %c0_i32_0 = arith.constant 0 : i32
    return %arg0, %c0_i32 : i32, i32
  }
}

</mosaic_0001>

<llo_original>
// kernel: transformer_forward.27
$region0: #{transformer_forward.27}
  #allocation0 [shape = 'u32[]', space=smem, size = 0x4, offset = 0x4, fixed_abs, tag = 'smem constant byte address 0x4 - core index']
  #allocation1 [shape = 'u32[144,128]{1,0:T(1,128)}', space=vmem, size = 0x12000, scoped, tag = 'internal scratch']
  %s0 = inlined_call_operand.vmem [shape: f32[16,32], index: 0, kind: input, shape index: {}]
  %s1 = inlined_call_operand.vmem [shape: f32[32,96], index: 1, kind: input, shape index: {}]
  %s2 = inlined_call_operand.vmem [shape: f32[1,96], index: 2, kind: input, shape index: {}]
  %s3 = inlined_call_operand.vmem [shape: f32[16,96], index: 3, kind: output, shape index: {}]
  %s4 = sld [smem:[#allocation0]]
  $region22: #{transformer_forward.27} parent=0
    _
  %s6 = ssub.s32 1, %s4
  %s7 = scalar_select 0, %s6, %s4
  // Predicated region
  $region2: #{transformer_forward.27} parent=0 // pred_check
    _
  $region3: #{transformer_forward.27} parent=0 // pred_check_branch
    %9 = sbr.rel (0) target = $region5
  $region4: #{transformer_forward.27} parent=0 // pred_region
    _
  $region5: #{transformer_forward.27} parent=0 // pred_fallthru
    _
  // Predicated region
  $region6: #{transformer_forward.27} parent=0 // pred_check
    _
  $region7: #{transformer_forward.27} parent=0 // pred_check_branch
    %11 = sbr.rel (0) target = $region9
  $region8: #{transformer_forward.27} parent=0 // pred_region
    _
  $region9: #{transformer_forward.27} parent=0 // pred_fallthru
    _
  // Predicated region
  $region10: #{transformer_forward.27} parent=0 // pred_check
    _
  $region11: #{transformer_forward.27} parent=0 // pred_check_branch
    %13 = sbr.rel (0) target = $region13
  $region12: #{transformer_forward.27} parent=0 // pred_region
    _
  $region13: #{transformer_forward.27} parent=0 // pred_fallthru
    _
  %v14 = vld [vmem:[%s0] sm:$0xff]
  %v15 = vld [vmem:[%s0 + $0x8] sm:$0xff]
  %v16 = vld [vmem:[%s1] sm:$0xff]
  %v17 = vld [vmem:[%s1 + $0x8] sm:$0xff]
  %v18 = vld [vmem:[%s1 + $0x10] sm:$0xff]
  %v19 = vld [vmem:[%s1 + $0x18] sm:$0xff]
  %v20 = vld [vmem:[%s2] sm:$0x1]
  %v22 = vlaneseq
  %v23 = vshrl.u32 %v22, 7
  %v24 = vsub.s32 0, %v23
  %v25 = vrot.slane %v20, %v24
  %vm27 = vcmask 261120
  %v29 = vsel %vm27, %v14, 0
  %v32 = vsel %vm27, %v15, 0
  %34 = vmatprep.subr.mxu0 0.0
  %35 = vmatpush1.msra.mxu0 %v16
  %36 = vmatprep.subr.mxu0 0.0
  %37 = vmatpush1.msra.mxu0 %v17
  %38 = vmatprep.subr.mxu0 0.0
  %39 = vmatpush1.msra.mxu0 %v18
  %40 = vmatprep.subr.mxu0 0.0
  %41 = vmatpush1.msra.mxu0 %v19
  %42 = vmatprep.subr.mxu0 0.0
  %43 = vmatpush1.msra.mxu0 0.0
  %44 = vmatprep.subr.mxu0 0.0
  %45 = vmatpush1.msra.mxu0 0.0
  %46 = vmatprep.subr.mxu0 0.0
  %47 = vmatpush1.msra.mxu0 0.0
  %48 = vmatprep.subr.mxu0 0.0
  %49 = vmatpush1.msra.mxu0 0.0
  %50 = vmatprep.subr.mxu0 0.0
  %51 = vmatpush1.msra.mxu0 0.0
  %52 = vmatprep.subr.mxu0 0.0
  %53 = vmatpush1.msra.mxu0 0.0
  %54 = vmatprep.subr.mxu0 0.0
  %55 = vmatpush1.msra.mxu0 0.0
  %56 = vmatprep.subr.mxu0 0.0
  %57 = vmatpush1.msra.mxu0 0.0
  %58 = vmatprep.subr.mxu0 0.0
  %59 = vmatpush1.msra.mxu0 0.0
  %60 = vmatprep.subr.mxu0 0.0
  %61 = vmatpush1.msra.mxu0 0.0
  %62 = vmatprep.subr.mxu0 0.0
  %63 = vmatpush1.msra.mxu0 0.0
  %64 = vmatprep.subr.mxu0 0.0
  %65 = vmatpush1.msra.mxu0 0.0
  %66 = vmatprep.subr.mxu0 0.0
  %67 = vmatpush1.msra.mxu0 0.0
  %68 = vmatprep.subr.mxu0 0.0
  %69 = vmatpush1.msra.mxu0 0.0
  %70 = vmatprep.subr.mxu0 0.0
  %71 = vmatpush1.msra.mxu0 0.0
  %72 = vmatprep.subr.mxu0 0.0
  %73 = vmatpush1.msra.mxu0 0.0
  %74 = vmatprep.subr.mxu0 0.0
  %75 = vmatpush1.msra.mxu0 0.0
  %76 = vmatprep.subr.mxu0 0.0
  %77 = vmatpush1.msra.mxu0 0.0
  %78 = vmatprep.subr.mxu0 0.0
  %79 = vmatpush1.msra.mxu0 0.0
  %80 = vmatprep.subr.mxu0 0.0
  %81 = vmatpush1.msra.mxu0 0.0
  %82 = vmatprep.subr.mxu0 0.0
  %83 = vmatpush1.msra.mxu0 0.0
  %84 = vmatprep.subr.mxu0 0.0
  %85 = vmatpush1.msra.mxu0 0.0
  %86 = vmatprep.subr.mxu0 0.0
  %87 = vmatpush1.msra.mxu0 0.0
  %88 = vmatprep.subr.mxu0 0.0
  %89 = vmatpush1.msra.mxu0 0.0
  %90 = vmatprep.subr.mxu0 0.0
  %91 = vmatpush1.msra.mxu0 0.0
  %92 = vmatprep.subr.mxu0 0.0
  %93 = vmatpush1.msra.mxu0 0.0
  %94 = vmatprep.subr.mxu0 0.0
  %95 = vmatpush1.msra.mxu0 0.0
  %96 = vmatprep.subr.mxu0 0.0
  %97 = vmatpush1.msra.mxu0 0.0
  %98 = vmatprep.mubr.f32.mxu0 0.0
  %99 = vmatmul.mubr.f32.gmra.mrb[0].mxu0 %v29
  %v100 = vpop.f32.mrb[0].mxu0
  %v101 = vadd.f32 %v25, %v100
  %v102 = vpop.f32.mrb[0].mxu0
  %103 = vmatprep.mubr.f32.mxu0 0.0
  %104 = vmatmul.mubr.f32.gmra.mrb[0].mxu0 %v32
  %v105 = vpop.f32.mrb[0].mxu0
  %v106 = vadd.f32 %v25, %v105
  %v107 = vpop.f32.mrb[0].mxu0
  %108 = vdwg.mxu0
  %vm109 = vcmask 785408
  %110 = vst.msk [vmem:[%s3] sm:$0xff] %vm109, %v101
  %111 = vst.msk [vmem:[%s3 + $0x8] sm:$0xff] %vm109, %v106
  // Predicated region
  $region14: #{transformer_forward.27} parent=0 // pred_check
    _
  $region15: #{transformer_forward.27} parent=0 // pred_check_branch
    %113 = sbr.rel (0) target = $region17
  $region16: #{transformer_forward.27} parent=0 // pred_region
    _
  $region17: #{transformer_forward.27} parent=0 // pred_fallthru
    _
  // Predicated region
  $region18: #{transformer_forward.27} parent=0 // pred_check
    _
  $region19: #{transformer_forward.27} parent=0 // pred_check_branch
    %115 = sbr.rel (0) target = $region21
  $region20: #{transformer_forward.27} parent=0 // pred_region
    _
  $region21: #{transformer_forward.27} parent=0 // pred_fallthru
    _

// kernel: transformer_forward.29
$region0: #{transformer_forward.29}
  #allocation0 [shape = 'u32[]', space=smem, size = 0x4, offset = 0x4, fixed_abs, tag = 'smem constant byte address 0x4 - core index']
  #allocation1 [shape = 'u32[144,128]{1,0:T(1,128)}', space=vmem, size = 0x12000, scoped, tag = 'internal scratch']
  %s0 = inlined_call_operand.vmem [shape: f32[16,32], index: 0, kind: input, shape index: {}]
  %s1 = inlined_call_operand.vmem [shape: f32[16,32], index: 1, kind: input, shape index: {}]
  %s2 = inlined_call_operand.vmem [shape: f32[32,32], index: 2, kind: input, shape index: {}]
  %s3 = inlined_call_operand.vmem [shape: f32[1,32], index: 3, kind: input, shape index: {}]
  %s4 = inlined_call_operand.vmem [shape: f32[1,32], index: 4, kind: input, shape index: {}]
  %s5 = inlined_call_operand.vmem [shape: f32[1,32], index: 5, kind: input, shape index: {}]
  %s6 = inlined_call_operand.vmem [shape: f32[16,32], index: 6, kind: output, shape index: {}]
  %s7 = sld [smem:[#allocation0]]
  $region34: #{transformer_forward.29} parent=0
    _
  %s9 = ssub.s32 1, %s7
  %s10 = scalar_select 0, %s9, %s7
  // Predicated region
  $region2: #{transformer_forward.29} parent=0 // pred_check
    _
  $region3: #{transformer_forward.29} parent=0 // pred_check_branch
    %12 = sbr.rel (0) target = $region5
  $region4: #{transformer_forward.29} parent=0 // pred_region
    _
  $region5: #{transformer_forward.29} parent=0 // pred_fallthru
    _
  // Predicated region
  $region6: #{transformer_forward.29} parent=0 // pred_check
    _
  $region7: #{transformer_forward.29} parent=0 // pred_check_branch
    %14 = sbr.rel (0) target = $region9
  $region8: #{transformer_forward.29} parent=0 // pred_region
    _
  $region9: #{transformer_forward.29} parent=0 // pred_fallthru
    _
  // Predicated region
  $region10: #{transformer_forward.29} parent=0 // pred_check
    _
  $region11: #{transformer_forward.29} parent=0 // pred_check_branch
    %16 = sbr.rel (0) target = $region13
  $region12: #{transformer_forward.29} parent=0 // pred_region
    _
  $region13: #{transformer_forward.29} parent=0 // pred_fallthru
    _
  // Predicated region
  $region14: #{transformer_forward.29} parent=0 // pred_check
    _
  $region15: #{transformer_forward.29} parent=0 // pred_check_branch
    %18 = sbr.rel (0) target = $region17
  $region16: #{transformer_forward.29} parent=0 // pred_region
    _
  $region17: #{transformer_forward.29} parent=0 // pred_fallthru
    _
  // Predicated region
  $region18: #{transformer_forward.29} parent=0 // pred_check
    _
  $region19: #{transformer_forward.29} parent=0 // pred_check_branch
    %20 = sbr.rel (0) target = $region21
  $region20: #{transformer_forward.29} parent=0 // pred_region
    _
  $region21: #{transformer_forward.29} parent=0 // pred_fallthru
    _
  // Predicated region
  $region22: #{transformer_forward.29} parent=0 // pred_check
    _
  $region23: #{transformer_forward.29} parent=0 // pred_check_branch
    %22 = sbr.rel (0) target = $region25
  $region24: #{transformer_forward.29} parent=0 // pred_region
    _
  $region25: #{transformer_forward.29} parent=0 // pred_fallthru
    _
  %v23 = vld [vmem:[%s0] sm:$0xff]
  %v24 = vld [vmem:[%s0 + $0x8] sm:$0xff]
  %v25 = vld [vmem:[%s2] sm:$0xff]
  %v26 = vld [vmem:[%s2 + $0x8] sm:$0xff]
  %v27 = vld [vmem:[%s2 + $0x10] sm:$0xff]
  %v28 = vld [vmem:[%s2 + $0x18] sm:$0xff]
  %v29 = vld [vmem:[%s3] sm:$0x1]
  %v31 = vlaneseq
  %v32 = vshrl.u32 %v31, 7
  %v33 = vsub.s32 0, %v32
  %v34 = vrot.slane %v29, %v33
  %vm36 = vcmask 261120
  %v38 = vsel %vm36, %v23, 0
  %v41 = vsel %vm36, %v24, 0
  %43 = vmatprep.subr.mxu0 0.0
  %44 = vmatpush1.msra.mxu0 %v25
  %45 = vmatprep.subr.mxu0 0.0
  %46 = vmatpush1.msra.mxu0 %v26
  %47 = vmatprep.subr.mxu0 0.0
  %48 = vmatpush1.msra.mxu0 %v27
  %49 = vmatprep.subr.mxu0 0.0
  %50 = vmatpush1.msra.mxu0 %v28
  %51 = vmatprep.subr.mxu0 0.0
  %52 = vmatpush1.msra.mxu0 0.0
  %53 = vmatprep.subr.mxu0 0.0
  %54 = vmatpush1.msra.mxu0 0.0
  %55 = vmatprep.subr.mxu0 0.0
  %56 = vmatpush1.msra.mxu0 0.0
  %57 = vmatprep.subr.mxu0 0.0
  %58 = vmatpush1.msra.mxu0 0.0
  %59 = vmatprep.subr.mxu0 0.0
  %60 = vmatpush1.msra.mxu0 0.0
  %61 = vmatprep.subr.mxu0 0.0
  %62 = vmatpush1.msra.mxu0 0.0
  %63 = vmatprep.subr.mxu0 0.0
  %64 = vmatpush1.msra.mxu0 0.0
  %65 = vmatprep.subr.mxu0 0.0
  %66 = vmatpush1.msra.mxu0 0.0
  %67 = vmatprep.subr.mxu0 0.0
  %68 = vmatpush1.msra.mxu0 0.0
  %69 = vmatprep.subr.mxu0 0.0
  %70 = vmatpush1.msra.mxu0 0.0
  %71 = vmatprep.subr.mxu0 0.0
  %72 = vmatpush1.msra.mxu0 0.0
  %73 = vmatprep.subr.mxu0 0.0
  %74 = vmatpush1.msra.mxu0 0.0
  %75 = vmatprep.subr.mxu0 0.0
  %76 = vmatpush1.msra.mxu0 0.0
  %77 = vmatprep.subr.mxu0 0.0
  %78 = vmatpush1.msra.mxu0 0.0
  %79 = vmatprep.subr.mxu0 0.0
  %80 = vmatpush1.msra.mxu0 0.0
  %81 = vmatprep.subr.mxu0 0.0
  %82 = vmatpush1.msra.mxu0 0.0
  %83 = vmatprep.subr.mxu0 0.0
  %84 = vmatpush1.msra.mxu0 0.0
  %85 = vmatprep.subr.mxu0 0.0
  %86 = vmatpush1.msra.mxu0 0.0
  %87 = vmatprep.subr.mxu0 0.0
  %88 = vmatpush1.msra.mxu0 0.0
  %89 = vmatprep.subr.mxu0 0.0
  %90 = vmatpush1.msra.mxu0 0.0
  %91 = vmatprep.subr.mxu0 0.0
  %92 = vmatpush1.msra.mxu0 0.0
  %93 = vmatprep.subr.mxu0 0.0
  %94 = vmatpush1.msra.mxu0 0.0
  %95 = vmatprep.subr.mxu0 0.0
  %96 = vmatpush1.msra.mxu0 0.0
  %97 = vmatprep.subr.mxu0 0.0
  %98 = vmatpush1.msra.mxu0 0.0
  %99 = vmatprep.subr.mxu0 0.0
  %100 = vmatpush1.msra.mxu0 0.0
  %101 = vmatprep.subr.mxu0 0.0
  %102 = vmatpush1.msra.mxu0 0.0
  %103 = vmatprep.subr.mxu0 0.0
  %104 = vmatpush1.msra.mxu0 0.0
  %105 = vmatprep.subr.mxu0 0.0
  %106 = vmatpush1.msra.mxu0 0.0
  %107 = vmatprep.mubr.f32.mxu0 0.0
  %108 = vmatmul.mubr.f32.gmra.mrb[0].mxu0 %v38
  %v109 = vpop.f32.mrb[0].mxu0
  %v110 = vadd.f32 %v34, %v109
  %v111 = vpop.f32.mrb[0].mxu0
  %112 = vmatprep.mubr.f32.mxu0 0.0
  %113 = vmatmul.mubr.f32.gmra.mrb[0].mxu0 %v41
  %v114 = vpop.f32.mrb[0].mxu0
  %v115 = vadd.f32 %v34, %v114
  %v116 = vpop.f32.mrb[0].mxu0
  %117 = vdwg.mxu0
  %v118 = vld [vmem:[%s1] sm:$0xff]
  %v119 = vld [vmem:[%s1 + $0x8] sm:$0xff]
  %v120 = vadd.f32 %v110, %v118
  %v121 = vadd.f32 %v115, %v119
  %v122 = vld [vmem:[%s4] sm:$0x1]
  %v123 = vld [vmem:[%s5] sm:$0x1]
  %v124 = vsel %vm36, %v120, 0.0
  %125 = vadd.xlane.f32.xlu0 %v124
  %v126 = vpop.xlane.xlu0 %125
  %v127 = vsel %vm36, %v121, 0.0
  %128 = vadd.xlane.f32.xlu0 %v127
  %v129 = vpop.xlane.xlu0 %128
  %v130 = vrcp.pop 32.0
  %v131 = vmul.f32 %v126, %v130
  %v132 = vmul.f32 %v129, %v130
  %v133 = vsub.f32 %v120, %v131
  %v134 = vsub.f32 %v121, %v132
  %v135 = vmul.f32 %v133, %v133
  %v136 = vmul.f32 %v134, %v134
  %v137 = vsel %vm36, %v135, 0.0
  %138 = vadd.xlane.f32.xlu0 %v137
  %v139 = vpop.xlane.xlu0 %138
  %v140 = vsel %vm36, %v136, 0.0
  %141 = vadd.xlane.f32.xlu0 %v140
  %v142 = vpop.xlane.xlu0 %141
  %v143 = vmul.f32 %v139, %v130
  %v144 = vmul.f32 %v142, %v130
  %v145 = vadd.f32 %v143, 1e-05
  %v146 = vadd.f32 %v144, 1e-05
  %v147 = vrsqrt.pop %v145
  %v148 = vrsqrt.pop %v146
  %v149 = vmul.f32 %v133, %v147
  %v150 = vmul.f32 %v134, %v148
  %v152 = vlaneseq
  %v153 = vshrl.u32 %v152, 7
  %v154 = vsub.s32 0, %v153
  %v155 = vrot.slane %v122, %v154
  %v157 = vmul.f32 %v149, %v155
  %v158 = vmul.f32 %v150, %v155
  %v160 = vlaneseq
  %v161 = vshrl.u32 %v160, 7
  %v162 = vsub.s32 0, %v161
  %v163 = vrot.slane %v123, %v162
  %v165 = vadd.f32 %v157, %v163
  %v166 = vadd.f32 %v158, %v163
  %167 = vst.msk [vmem:[%s6] sm:$0xff] %vm36, %v165
  %168 = vst.msk [vmem:[%s6 + $0x8] sm:$0xff] %vm36, %v166
  // Predicated region
  $region26: #{transformer_forward.29} parent=0 // pred_check
    _
  $region27: #{transformer_forward.29} parent=0 // pred_check_branch
    %170 = sbr.rel (0) target = $region29
  $region28: #{transformer_forward.29} parent=0 // pred_region
    _
  $region29: #{transformer_forward.29} parent=0 // pred_fallthru
    _
  // Predicated region
  $region30: #{transformer_forward.29} parent=0 // pred_check
    _
  $region31: #{transformer_forward.29} parent=0 // pred_check_branch
    %172 = sbr.rel (0) target = $region33
  $region32: #{transformer_forward.29} parent=0 // pred_region
    _
  $region33: #{transformer_forward.29} parent=0 // pred_fallthru
    _

// kernel: transformer_forward.30
$region0: #{transformer_forward.30}
  #allocation0 [shape = 'u32[]', space=smem, size = 0x4, offset = 0x4, fixed_abs, tag = 'smem constant byte address 0x4 - core index']
  #allocation1 [shape = 'u32[144,128]{1,0:T(1,128)}', space=vmem, size = 0x12000, scoped, tag = 'internal scratch']
  %s0 = inlined_call_operand.vmem [shape: f32[16,32], index: 0, kind: input, shape index: {}]
  %s1 = inlined_call_operand.vmem [shape: f32[32,32], index: 1, kind: input, shape index: {}]
  %s2 = inlined_call_operand.vmem [shape: f32[1,32], index: 2, kind: input, shape index: {}]
  %s3 = inlined_call_operand.vmem [shape: f32[16,32], index: 3, kind: output, shape index: {}]
  %s4 = sld [smem:[#allocation0]]
  $region22: #{transformer_forward.30} parent=0
    _
  %s6 = ssub.s32 1, %s4
  %s7 = scalar_select 0, %s6, %s4
  // Predicated region
  $region2: #{transformer_forward.30} parent=0 // pred_check
    _
  $region3: #{transformer_forward.30} parent=0 // pred_check_branch
    %9 = sbr.rel (0) target = $region5
  $region4: #{transformer_forward.30} parent=0 // pred_region
    _
  $region5: #{transformer_forward.30} parent=0 // pred_fallthru
    _
  // Predicated region
  $region6: #{transformer_forward.30} parent=0 // pred_check
    _
  $region7: #{transformer_forward.30} parent=0 // pred_check_branch
    %11 = sbr.rel (0) target = $region9
  $region8: #{transformer_forward.30} parent=0 // pred_region
    _
  $region9: #{transformer_forward.30} parent=0 // pred_fallthru
    _
  // Predicated region
  $region10: #{transformer_forward.30} parent=0 // pred_check
    _
  $region11: #{transformer_forward.30} parent=0 // pred_check_branch
    %13 = sbr.rel (0) target = $region13
  $region12: #{transformer_forward.30} parent=0 // pred_region
    _
  $region13: #{transformer_forward.30} parent=0 // pred_fallthru
    _
  %v14 = vld [vmem:[%s0] sm:$0xff]
  %v15 = vld [vmem:[%s0 + $0x8] sm:$0xff]
  %v16 = vld [vmem:[%s1] sm:$0xff]
  %v17 = vld [vmem:[%s1 + $0x8] sm:$0xff]
  %v18 = vld [vmem:[%s1 + $0x10] sm:$0xff]
  %v19 = vld [vmem:[%s1 + $0x18] sm:$0xff]
  %v20 = vld [vmem:[%s2] sm:$0x1]
  %v22 = vlaneseq
  %v23 = vshrl.u32 %v22, 7
  %v24 = vsub.s32 0, %v23
  %v25 = vrot.slane %v20, %v24
  %vm27 = vcmask 261120
  %v29 = vsel %vm27, %v14, 0
  %v32 = vsel %vm27, %v15, 0
  %34 = vmatprep.subr.mxu0 0.0
  %35 = vmatpush1.msra.mxu0 %v16
  %36 = vmatprep.subr.mxu0 0.0
  %37 = vmatpush1.msra.mxu0 %v17
  %38 = vmatprep.subr.mxu0 0.0
  %39 = vmatpush1.msra.mxu0 %v18
  %40 = vmatprep.subr.mxu0 0.0
  %41 = vmatpush1.msra.mxu0 %v19
  %42 = vmatprep.subr.mxu0 0.0
  %43 = vmatpush1.msra.mxu0 0.0
  %44 = vmatprep.subr.mxu0 0.0
  %45 = vmatpush1.msra.mxu0 0.0
  %46 = vmatprep.subr.mxu0 0.0
  %47 = vmatpush1.msra.mxu0 0.0
  %48 = vmatprep.subr.mxu0 0.0
  %49 = vmatpush1.msra.mxu0 0.0
  %50 = vmatprep.subr.mxu0 0.0
  %51 = vmatpush1.msra.mxu0 0.0
  %52 = vmatprep.subr.mxu0 0.0
  %53 = vmatpush1.msra.mxu0 0.0
  %54 = vmatprep.subr.mxu0 0.0
  %55 = vmatpush1.msra.mxu0 0.0
  %56 = vmatprep.subr.mxu0 0.0
  %57 = vmatpush1.msra.mxu0 0.0
  %58 = vmatprep.subr.mxu0 0.0
  %59 = vmatpush1.msra.mxu0 0.0
  %60 = vmatprep.subr.mxu0 0.0
  %61 = vmatpush1.msra.mxu0 0.0
  %62 = vmatprep.subr.mxu0 0.0
  %63 = vmatpush1.msra.mxu0 0.0
  %64 = vmatprep.subr.mxu0 0.0
  %65 = vmatpush1.msra.mxu0 0.0
  %66 = vmatprep.subr.mxu0 0.0
  %67 = vmatpush1.msra.mxu0 0.0
  %68 = vmatprep.subr.mxu0 0.0
  %69 = vmatpush1.msra.mxu0 0.0
  %70 = vmatprep.subr.mxu0 0.0
  %71 = vmatpush1.msra.mxu0 0.0
  %72 = vmatprep.subr.mxu0 0.0
  %73 = vmatpush1.msra.mxu0 0.0
  %74 = vmatprep.subr.mxu0 0.0
  %75 = vmatpush1.msra.mxu0 0.0
  %76 = vmatprep.subr.mxu0 0.0
  %77 = vmatpush1.msra.mxu0 0.0
  %78 = vmatprep.subr.mxu0 0.0
  %79 = vmatpush1.msra.mxu0 0.0
  %80 = vmatprep.subr.mxu0 0.0
  %81 = vmatpush1.msra.mxu0 0.0
  %82 = vmatprep.subr.mxu0 0.0
  %83 = vmatpush1.msra.mxu0 0.0
  %84 = vmatprep.subr.mxu0 0.0
  %85 = vmatpush1.msra.mxu0 0.0
  %86 = vmatprep.subr.mxu0 0.0
  %87 = vmatpush1.msra.mxu0 0.0
  %88 = vmatprep.subr.mxu0 0.0
  %89 = vmatpush1.msra.mxu0 0.0
  %90 = vmatprep.subr.mxu0 0.0
  %91 = vmatpush1.msra.mxu0 0.0
  %92 = vmatprep.subr.mxu0 0.0
  %93 = vmatpush1.msra.mxu0 0.0
  %94 = vmatprep.subr.mxu0 0.0
  %95 = vmatpush1.msra.mxu0 0.0
  %96 = vmatprep.subr.mxu0 0.0
  %97 = vmatpush1.msra.mxu0 0.0
  %98 = vmatprep.mubr.f32.mxu0 0.0
  %99 = vmatmul.mubr.f32.gmra.mrb[0].mxu0 %v29
  %v100 = vpop.f32.mrb[0].mxu0
  %v101 = vadd.f32 %v25, %v100
  %v102 = vpop.f32.mrb[0].mxu0
  %103 = vmatprep.mubr.f32.mxu0 0.0
  %104 = vmatmul.mubr.f32.gmra.mrb[0].mxu0 %v32
  %v105 = vpop.f32.mrb[0].mxu0
  %v106 = vadd.f32 %v25, %v105
  %v107 = vpop.f32.mrb[0].mxu0
  %108 = vdwg.mxu0
  %109 = vst.msk [vmem:[%s3] sm:$0xff] %vm27, %v101
  %110 = vst.msk [vmem:[%s3 + $0x8] sm:$0xff] %vm27, %v106
  // Predicated region
  $region14: #{transformer_forward.30} parent=0 // pred_check
    _
  $region15: #{transformer_forward.30} parent=0 // pred_check_branch
    %112 = sbr.rel (0) target = $region17
  $region16: #{transformer_forward.30} parent=0 // pred_region
    _
  $region17: #{transformer_forward.30} parent=0 // pred_fallthru
    _
  // Predicated region
  $region18: #{transformer_forward.30} parent=0 // pred_check
    _
  $region19: #{transformer_forward.30} parent=0 // pred_check_branch
    %114 = sbr.rel (0) target = $region21
  $region20: #{transformer_forward.30} parent=0 // pred_region
    _
  $region21: #{transformer_forward.30} parent=0 // pred_fallthru
    _

// kernel: transformer_forward.28
$region0: #{transformer_forward.28}
  #allocation0 [shape = 'u32[]', space=smem, size = 0x4, offset = 0x4, fixed_abs, tag = 'smem constant byte address 0x4 - core index']
  #allocation1 [shape = 'u32[144,128]{1,0:T(1,128)}', space=vmem, size = 0x12000, scoped, tag = 'internal scratch']
  %s0 = inlined_call_operand.vmem [shape: f32[2,4,8,8], index: 0, kind: input, shape index: {}]
  %s1 = inlined_call_operand.vmem [shape: f32[2,4,8,8], index: 1, kind: input, shape index: {}]
  %s2 = inlined_call_operand.vmem [shape: f32[2,4,8,8], index: 2, kind: input, shape index: {}]
  %s3 = inlined_call_operand.vmem [shape: f32[1,8,8], index: 3, kind: input, shape index: {}]
  %s4 = inlined_call_operand.vmem [shape: f32[2,4,8,8], index: 4, kind: output, shape index: {}]
  %s5 = sld [smem:[#allocation0]]
  $region49: #{transformer_forward.28} parent=0
    _
  %s7 = ssub.s32 1, %s5
  %s8 = scalar_select 0, %s7, %s5
  loop: start=0, step=1, limit=4
  $region2: #{transformer_forward.28} parent=0 // loop_pre_header
    _
  $region3: #{transformer_forward.28} parent=0 // loop_header
    %s10 = sphi 0, %s14
    %p11 = scmp.ge.s32.totalorder %s10, 4
    %s20 = sphi 0, %s22
    %s23 = sphi 0, %s20
    %s24 = sphi 0, %s23
    %s40 = sphi 0, %s24
    %s46 = sphi 0, %s48
    %s49 = sphi 0, %s46
    %s50 = sphi 0, %s49
    %s66 = sphi 0, %s50
    %s72 = sphi 0, %s74
    %s75 = sphi 0, %s72
    %s76 = sphi 0, %s75
    %s92 = sphi 0, %s76
    %s96 = sphi 0, %s96
    %s98 = sphi 0, %s96
    %s99 = sphi 0, %s98
    %s113 = sphi 0, %s99
    %s119 = sphi 0, %s121
    %s122 = sphi 0, %s119
    %s123 = sphi 0, %s122
    %s139 = sphi 0, %s123
  $region4: #{transformer_forward.28} parent=0 // loop_header_branch
    %13 = sbr.rel (%p11) target = $region8
  $region5: #{transformer_forward.28} parent=0 // loop_body
    %s15 = ssub.s32 %s10, 1
    %s16 = ssub.s32 %s10, 2
    %s17 = sadd.s32 %s10, 1
    %s18 = ssub.s32 %s10, %s17
    %p19 = scmp.eq.s32.totalorder %s18, 0
    %s21 = sadd.s32 %s20, 1
    %s22 = scalar_select %p19, %s20, %s21
    %p25 = pneg %p19
    %p26 = scmp.eq.s32.totalorder %s10, 1
    %p27 = por %p25, %p26
    %p28 = scmp.ne.s32.totalorder %s20, %s23
    %p29 = scmp.eq.s32.totalorder %s10, 0
    %p30 = por %p28, %p29
    %p31 = scmp.ne.s32.totalorder %s20, %s23
    %p32 = scmp.eq.s32.totalorder %s15, 1
    %p33 = por %p31, %p32
    %p34 = scmp.ne.s32.totalorder %s23, %s24
    %p35 = scmp.eq.s32.totalorder %s15, 0
    %p36 = por %p34, %p35
    %p37 = scmp.ne.s32.totalorder %s23, %s24
    %p38 = scmp.eq.s32.totalorder %s16, 1
    %p39 = por %p37, %p38
    %p41 = scmp.ne.s32.totalorder %s24, %s40
    %p42 = scmp.eq.s32.totalorder %s16, 0
    %p43 = por %p41, %p42
    %s44 = ssub.s32 %s10, %s17
    %p45 = scmp.eq.s32.totalorder %s44, 0
    %s47 = sadd.s32 %s46, 1
    %s48 = scalar_select %p45, %s46, %s47
    %p51 = pneg %p45
    %p52 = scmp.eq.s32.totalorder %s10, 1
    %p53 = por %p51, %p52
    %p54 = scmp.ne.s32.totalorder %s46, %s49
    %p55 = scmp.eq.s32.totalorder %s10, 0
    %p56 = por %p54, %p55
    %p57 = scmp.ne.s32.totalorder %s46, %s49
    %p58 = scmp.eq.s32.totalorder %s15, 1
    %p59 = por %p57, %p58
    %p60 = scmp.ne.s32.totalorder %s49, %s50
    %p61 = scmp.eq.s32.totalorder %s15, 0
    %p62 = por %p60, %p61
    %p63 = scmp.ne.s32.totalorder %s49, %s50
    %p64 = scmp.eq.s32.totalorder %s16, 1
    %p65 = por %p63, %p64
    %p67 = scmp.ne.s32.totalorder %s50, %s66
    %p68 = scmp.eq.s32.totalorder %s16, 0
    %p69 = por %p67, %p68
    %s70 = ssub.s32 %s10, %s17
    %p71 = scmp.eq.s32.totalorder %s70, 0
    %s73 = sadd.s32 %s72, 1
    %s74 = scalar_select %p71, %s72, %s73
    %p77 = pneg %p71
    %p78 = scmp.eq.s32.totalorder %s10, 1
    %p79 = por %p77, %p78
    %p80 = scmp.ne.s32.totalorder %s72, %s75
    %p81 = scmp.eq.s32.totalorder %s10, 0
    %p82 = por %p80, %p81
    %p83 = scmp.ne.s32.totalorder %s72, %s75
    %p84 = scmp.eq.s32.totalorder %s15, 1
    %p85 = por %p83, %p84
    %p86 = scmp.ne.s32.totalorder %s75, %s76
    %p87 = scmp.eq.s32.totalorder %s15, 0
    %p88 = por %p86, %p87
    %p89 = scmp.ne.s32.totalorder %s75, %s76
    %p90 = scmp.eq.s32.totalorder %s16, 1
    %p91 = por %p89, %p90
    %p93 = scmp.ne.s32.totalorder %s76, %s92
    %p94 = scmp.eq.s32.totalorder %s16, 0
    %p95 = por %p93, %p94
    %s97 = sadd.s32 %s96, 1
    %p100 = scmp.eq.s32.totalorder %s10, 1
    %p101 = scmp.ne.s32.totalorder %s96, %s98
    %p102 = scmp.eq.s32.totalorder %s10, 0
    %p103 = por %p101, %p102
    %p104 = scmp.ne.s32.totalorder %s96, %s98
    %p105 = scmp.eq.s32.totalorder %s15, 1
    %p106 = por %p104, %p105
    %p107 = scmp.ne.s32.totalorder %s98, %s99
    %p108 = scmp.eq.s32.totalorder %s15, 0
    %p109 = por %p107, %p108
    %p110 = scmp.ne.s32.totalorder %s98, %s99
    %p111 = scmp.eq.s32.totalorder %s16, 1
    %p112 = por %p110, %p111
    %p114 = scmp.ne.s32.totalorder %s99, %s113
    %p115 = scmp.eq.s32.totalorder %s16, 0
    %p116 = por %p114, %p115
    %s117 = ssub.s32 %s10, %s17
    %p118 = scmp.eq.s32.totalorder %s117, 0
    %s120 = sadd.s32 %s119, 1
    %s121 = scalar_select %p118, %s119, %s120
    %p124 = pneg %p118
    %p125 = scmp.eq.s32.totalorder %s10, 1
    %p126 = por %p124, %p125
    %p127 = scmp.ne.s32.totalorder %s119, %s122
    %p128 = scmp.eq.s32.totalorder %s10, 0
    %p129 = por %p127, %p128
    %p130 = scmp.ne.s32.totalorder %s119, %s122
    %p131 = scmp.eq.s32.totalorder %s15, 1
    %p132 = por %p130, %p131
    %p133 = scmp.ne.s32.totalorder %s122, %s123
    %p134 = scmp.eq.s32.totalorder %s15, 0
    %p135 = por %p133, %p134
    %p136 = scmp.ne.s32.totalorder %s122, %s123
    %p137 = scmp.eq.s32.totalorder %s16, 1
    %p138 = por %p136, %p137
    %p140 = scmp.ne.s32.totalorder %s123, %s139
    %p141 = scmp.eq.s32.totalorder %s16, 0
    %p142 = por %p140, %p141
    %p143 = scmp.le.s32.totalorder 1, %s10
    %p144 = scmp.lt.s32.totalorder %s10, 3
    %p145 = pnand %p143, %p144
    %p146 = pneg %p145
    // Predicated region
    $region9: #{transformer_forward.28} parent=5 // pred_check
      _
    $region10: #{transformer_forward.28} parent=5 // pred_check_branch
      %148 = sbr.rel (%p145) target = $region12
    $region11: #{transformer_forward.28} parent=5 // pred_region
      %s149 = ssub.s32 %s10, 1
      // Predicated region
      $region13: #{transformer_forward.28} parent=11 // pred_check
        %p150 = pneg %p109
      $region14: #{transformer_forward.28} parent=11 // pred_check_branch
        %152 = sbr.rel (%p150) target = $region16
      $region15: #{transformer_forward.28} parent=11 // pred_region
        _
      $region16: #{transformer_forward.28} parent=11 // pred_fallthru
        _
    $region12: #{transformer_forward.28} parent=5 // pred_fallthru
      _
    %p153 = scmp.lt.s32.totalorder %s10, 2
    // Predicated region
    $region17: #{transformer_forward.28} parent=5 // pred_check
      %p154 = pneg %p153
    $region18: #{transformer_forward.28} parent=5 // pred_check_branch
      %156 = sbr.rel (%p154) target = $region20
    $region19: #{transformer_forward.28} parent=5 // pred_region
      // Predicated region
      $region21: #{transformer_forward.28} parent=19 // pred_check
        %p157 = pneg %p30
      $region22: #{transformer_forward.28} parent=19 // pred_check_branch
        %159 = sbr.rel (%p157) target = $region24
      $region23: #{transformer_forward.28} parent=19 // pred_region
        %p160 = scmp.lt.s32.totalorder %s10, 1
        %s161 = scalar_select %p160, %s10, 1
        %s162 = smul.addr %s161, 4
        %s163 = smul.addr %s162, 8
        %s164 = scalar_lea.vmem %s0, %s163
      $region24: #{transformer_forward.28} parent=19 // pred_fallthru
        _
      // Predicated region
      $region25: #{transformer_forward.28} parent=19 // pred_check
        %p165 = pneg %p56
      $region26: #{transformer_forward.28} parent=19 // pred_check_branch
        %167 = sbr.rel (%p165) target = $region28
      $region27: #{transformer_forward.28} parent=19 // pred_region
        %p168 = scmp.lt.s32.totalorder %s10, 1
        %s169 = scalar_select %p168, %s10, 1
        %s170 = smul.addr %s169, 4
        %s171 = smul.addr %s170, 8
        %s172 = scalar_lea.vmem %s1, %s171
      $region28: #{transformer_forward.28} parent=19 // pred_fallthru
        _
      // Predicated region
      $region29: #{transformer_forward.28} parent=19 // pred_check
        %p173 = pneg %p82
      $region30: #{transformer_forward.28} parent=19 // pred_check_branch
        %175 = sbr.rel (%p173) target = $region32
      $region31: #{transformer_forward.28} parent=19 // pred_region
        %p176 = scmp.lt.s32.totalorder %s10, 1
        %s177 = scalar_select %p176, %s10, 1
        %s178 = smul.addr %s177, 4
        %s179 = smul.addr %s178, 8
        %s180 = scalar_lea.vmem %s2, %s179
      $region32: #{transformer_forward.28} parent=19 // pred_fallthru
        _
    $region20: #{transformer_forward.28} parent=5 // pred_fallthru
      _
    %p181 = scmp.le.s32.totalorder 1, %s10
    %p182 = scmp.lt.s32.totalorder %s10, 3
    %p183 = pnand %p181, %p182
    %p184 = pneg %p183
    // Predicated region
    $region33: #{transformer_forward.28} parent=5 // pred_check
      _
    $region34: #{transformer_forward.28} parent=5 // pred_check_branch
      %186 = sbr.rel (%p183) target = $region36
    $region35: #{transformer_forward.28} parent=5 // pred_region
      %s187 = ssub.s32 %s10, 1
      %p188 = scmp.lt.s32.totalorder %s15, 1
      %s189 = scalar_select %p188, %s15, 1
      %s190 = smul.addr %s189, 4
      %s191 = smul.addr %s190, 8
      %s192 = scalar_lea.vmem %s0, %s191
      %p193 = pneg %p36
      %p194 = pneg %p33
      %p195 = scmp.lt.s32.totalorder %s15, 1
      %s196 = scalar_select %p195, %s15, 1
      %s197 = smul.addr %s196, 4
      %s198 = smul.addr %s197, 8
      %s199 = scalar_lea.vmem %s1, %s198
      %p200 = pneg %p62
      %p201 = pneg %p59
      %p202 = scmp.lt.s32.totalorder %s15, 1
      %s203 = scalar_select %p202, %s15, 1
      %s204 = smul.addr %s203, 4
      %s205 = smul.addr %s204, 8
      %s206 = scalar_lea.vmem %s2, %s205
      %p207 = pneg %p88
      %p208 = pneg %p85
      %p209 = pneg %p109
      %p210 = pneg %p106
      %p211 = pneg %p135
      %p212 = pneg %p132
      %p213 = scmp.lt.s32.totalorder %s15, 1
      %s214 = scalar_select %p213, %s15, 1
      %s215 = smul.addr %s214, 4
      %s216 = smul.addr %s215, 8
      %s217 = scalar_lea.vmem %s4, %s216
      %p218 = scmp.lt.s32.totalorder %s15, 1
      %s219 = scalar_select %p218, %s15, 1
      %s220 = smul.addr %s219, 4
      %s221 = smul.addr %s220, 8
      %s222 = scalar_lea.vmem %s0, %s221
      %p223 = scmp.lt.s32.totalorder %s15, 1
      %s224 = scalar_select %p223, %s15, 1
      %s225 = smul.addr %s224, 4
      %s226 = smul.addr %s225, 8
      %s227 = scalar_lea.vmem %s1, %s226
      %p228 = scmp.lt.s32.totalorder %s15, 1
      %s229 = scalar_select %p228, %s15, 1
      %s230 = smul.addr %s229, 4
      %s231 = smul.addr %s230, 8
      %s232 = scalar_lea.vmem %s2, %s231
      %p233 = scmp.lt.s32.totalorder %s15, 1
      %s234 = scalar_select %p233, %s15, 1
      %s235 = smul.addr %s234, 4
      %s236 = smul.addr %s235, 8
      %s237 = scalar_lea.vmem %s4, %s236
      %v238 = vld [vmem:[%s222] sm:$0xff]
      %v239 = vld [vmem:[%s222 + $0x8] sm:$0xff]
      %v240 = vld [vmem:[%s222 + $0x10] sm:$0xff]
      %v241 = vld [vmem:[%s222 + $0x18] sm:$0xff]
      %v242 = vmul.f32 %v238, 0.17677669
      %v243 = vmul.f32 %v239, 0.17677669
      %v244 = vmul.f32 %v240, 0.17677669
      %v245 = vmul.f32 %v241, 0.17677669
      %v246 = vld [vmem:[%s227] sm:$0xff]
      %v247 = vld [vmem:[%s227 + $0x8] sm:$0xff]
      %v248 = vld [vmem:[%s227 + $0x10] sm:$0xff]
      %v249 = vld [vmem:[%s227 + $0x18] sm:$0xff]
      %v250 = vld [vmem:[%s232] sm:$0xff]
      %v251 = vld [vmem:[%s232 + $0x8] sm:$0xff]
      %v252 = vld [vmem:[%s232 + $0x10] sm:$0xff]
      %v253 = vld [vmem:[%s232 + $0x18] sm:$0xff]
      %v254 = vld [vmem:[%s3] sm:$0xff]
      %vm255 = vcmask 64512
      %v257 = vsel %vm255, %v242, 0
      %v260 = vsel %vm255, %v246, 0
      %262 = vmatprep.subr.mxu0 0.0
      %263 = vmatpush1.xpose.msra.mxu0 %v260
      %264 = vmatprep.subr.mxu0 0.0
      %265 = vmatpush1.xpose.msra.mxu0 0.0
      %266 = vmatprep.subr.mxu0 0.0
      %267 = vmatpush1.xpose.msra.mxu0 0.0
      %268 = vmatprep.subr.mxu0 0.0
      %269 = vmatpush1.xpose.msra.mxu0 0.0
      %270 = vmatprep.subr.mxu0 0.0
      %271 = vmatpush1.xpose.msra.mxu0 0.0
      %272 = vmatprep.subr.mxu0 0.0
      %273 = vmatpush1.xpose.msra.mxu0 0.0
      %274 = vmatprep.subr.mxu0 0.0
      %275 = vmatpush1.xpose.msra.mxu0 0.0
      %276 = vmatprep.subr.mxu0 0.0
      %277 = vmatpush1.xpose.msra.mxu0 0.0
      %278 = vmatprep.subr.mxu0 0.0
      %279 = vmatpush1.xpose.msra.mxu0 0.0
      %280 = vmatprep.subr.mxu0 0.0
      %281 = vmatpush1.xpose.msra.mxu0 0.0
      %282 = vmatprep.subr.mxu0 0.0
      %283 = vmatpush1.xpose.msra.mxu0 0.0
      %284 = vmatprep.subr.mxu0 0.0
      %285 = vmatpush1.xpose.msra.mxu0 0.0
      %286 = vmatprep.subr.mxu0 0.0
      %287 = vmatpush1.xpose.msra.mxu0 0.0
      %288 = vmatprep.subr.mxu0 0.0
      %289 = vmatpush1.xpose.msra.mxu0 0.0
      %290 = vmatprep.subr.mxu0 0.0
      %291 = vmatpush1.xpose.msra.mxu0 0.0
      %292 = vmatprep.subr.mxu0 0.0
      %293 = vmatpush1.xpose.msra.mxu0 0.0
      %294 = vmatprep.subr.mxu0 0.0
      %295 = vmatpush1.xpose.msra.mxu0 0.0
      %296 = vmatprep.subr.mxu0 0.0
      %297 = vmatpush1.xpose.msra.mxu0 0.0
      %298 = vmatprep.subr.mxu0 0.0
      %299 = vmatpush1.xpose.msra.mxu0 0.0
      %300 = vmatprep.subr.mxu0 0.0
      %301 = vmatpush1.xpose.msra.mxu0 0.0
      %302 = vmatprep.subr.mxu0 0.0
      %303 = vmatpush1.xpose.msra.mxu0 0.0
      %304 = vmatprep.subr.mxu0 0.0
      %305 = vmatpush1.xpose.msra.mxu0 0.0
      %306 = vmatprep.subr.mxu0 0.0
      %307 = vmatpush1.xpose.msra.mxu0 0.0
      %308 = vmatprep.subr.mxu0 0.0
      %309 = vmatpush1.xpose.msra.mxu0 0.0
      %310 = vmatprep.subr.mxu0 0.0
      %311 = vmatpush1.xpose.msra.mxu0 0.0
      %312 = vmatprep.subr.mxu0 0.0
      %313 = vmatpush1.xpose.msra.mxu0 0.0
      %314 = vmatprep.subr.mxu0 0.0
      %315 = vmatpush1.xpose.msra.mxu0 0.0
      %316 = vmatprep.subr.mxu0 0.0
      %317 = vmatpush1.xpose.msra.mxu0 0.0
      %318 = vmatprep.subr.mxu0 0.0
      %319 = vmatpush1.xpose.msra.mxu0 0.0
      %320 = vmatprep.subr.mxu0 0.0
      %321 = vmatpush1.xpose.msra.mxu0 0.0
      %322 = vmatprep.subr.mxu0 0.0
      %323 = vmatpush1.xpose.msra.mxu0 0.0
      %324 = vmatprep.subr.mxu0 0.0
      %325 = vmatpush1.xpose.msra.mxu0 0.0
      %326 = vmatprep.mubr.f32.mxu0 0.0
      %327 = vmatmul.mubr.f32.gmra.mrb[0].mxu0 %v257
      %v328 = vpop.f32.mrb[0].mxu0
      %v329 = vadd.f32 0.0, %v328
      %v330 = vpop.f32.mrb[0].mxu0
      %331 = vdwg.mxu0
      %v333 = vsel %vm255, %v243, 0
      %v336 = vsel %vm255, %v247, 0
      %338 = vmatprep.subr.mxu0 0.0
      %339 = vmatpush1.xpose.msra.mxu0 %v336
      %340 = vmatprep.subr.mxu0 0.0
      %341 = vmatpush1.xpose.msra.mxu0 0.0
      %342 = vmatprep.subr.mxu0 0.0
      %343 = vmatpush1.xpose.msra.mxu0 0.0
      %344 = vmatprep.subr.mxu0 0.0
      %345 = vmatpush1.xpose.msra.mxu0 0.0
      %346 = vmatprep.subr.mxu0 0.0
      %347 = vmatpush1.xpose.msra.mxu0 0.0
      %348 = vmatprep.subr.mxu0 0.0
      %349 = vmatpush1.xpose.msra.mxu0 0.0
      %350 = vmatprep.subr.mxu0 0.0
      %351 = vmatpush1.xpose.msra.mxu0 0.0
      %352 = vmatprep.subr.mxu0 0.0
      %353 = vmatpush1.xpose.msra.mxu0 0.0
      %354 = vmatprep.subr.mxu0 0.0
      %355 = vmatpush1.xpose.msra.mxu0 0.0
      %356 = vmatprep.subr.mxu0 0.0
      %357 = vmatpush1.xpose.msra.mxu0 0.0
      %358 = vmatprep.subr.mxu0 0.0
      %359 = vmatpush1.xpose.msra.mxu0 0.0
      %360 = vmatprep.subr.mxu0 0.0
      %361 = vmatpush1.xpose.msra.mxu0 0.0
      %362 = vmatprep.subr.mxu0 0.0
      %363 = vmatpush1.xpose.msra.mxu0 0.0
      %364 = vmatprep.subr.mxu0 0.0
      %365 = vmatpush1.xpose.msra.mxu0 0.0
      %366 = vmatprep.subr.mxu0 0.0
      %367 = vmatpush1.xpose.msra.mxu0 0.0
      %368 = vmatprep.subr.mxu0 0.0
      %369 = vmatpush1.xpose.msra.mxu0 0.0
      %370 = vmatprep.subr.mxu0 0.0
      %371 = vmatpush1.xpose.msra.mxu0 0.0
      %372 = vmatprep.subr.mxu0 0.0
      %373 = vmatpush1.xpose.msra.mxu0 0.0
      %374 = vmatprep.subr.mxu0 0.0
      %375 = vmatpush1.xpose.msra.mxu0 0.0
      %376 = vmatprep.subr.mxu0 0.0
      %377 = vmatpush1.xpose.msra.mxu0 0.0
      %378 = vmatprep.subr.mxu0 0.0
      %379 = vmatpush1.xpose.msra.mxu0 0.0
      %380 = vmatprep.subr.mxu0 0.0
      %381 = vmatpush1.xpose.msra.mxu0 0.0
      %382 = vmatprep.subr.mxu0 0.0
      %383 = vmatpush1.xpose.msra.mxu0 0.0
      %384 = vmatprep.subr.mxu0 0.0
      %385 = vmatpush1.xpose.msra.mxu0 0.0
      %386 = vmatprep.subr.mxu0 0.0
      %387 = vmatpush1.xpose.msra.mxu0 0.0
      %388 = vmatprep.subr.mxu0 0.0
      %389 = vmatpush1.xpose.msra.mxu0 0.0
      %390 = vmatprep.subr.mxu0 0.0
      %391 = vmatpush1.xpose.msra.mxu0 0.0
      %392 = vmatprep.subr.mxu0 0.0
      %393 = vmatpush1.xpose.msra.mxu0 0.0
      %394 = vmatprep.subr.mxu0 0.0
      %395 = vmatpush1.xpose.msra.mxu0 0.0
      %396 = vmatprep.subr.mxu0 0.0
      %397 = vmatpush1.xpose.msra.mxu0 0.0
      %398 = vmatprep.subr.mxu0 0.0
      %399 = vmatpush1.xpose.msra.mxu0 0.0
      %400 = vmatprep.subr.mxu0 0.0
      %401 = vmatpush1.xpose.msra.mxu0 0.0
      %402 = vmatprep.mubr.f32.mxu0 0.0
      %403 = vmatmul.mubr.f32.gmra.mrb[0].mxu0 %v333
      %v404 = vpop.f32.mrb[0].mxu0
      %v405 = vadd.f32 0.0, %v404
      %v406 = vpop.f32.mrb[0].mxu0
      %407 = vdwg.mxu0
      %v409 = vsel %vm255, %v244, 0
      %v412 = vsel %vm255, %v248, 0
      %414 = vmatprep.subr.mxu0 0.0
      %415 = vmatpush1.xpose.msra.mxu0 %v412
      %416 = vmatprep.subr.mxu0 0.0
      %417 = vmatpush1.xpose.msra.mxu0 0.0
      %418 = vmatprep.subr.mxu0 0.0
      %419 = vmatpush1.xpose.msra.mxu0 0.0
      %420 = vmatprep.subr.mxu0 0.0
      %421 = vmatpush1.xpose.msra.mxu0 0.0
      %422 = vmatprep.subr.mxu0 0.0
      %423 = vmatpush1.xpose.msra.mxu0 0.0
      %424 = vmatprep.subr.mxu0 0.0
      %425 = vmatpush1.xpose.msra.mxu0 0.0
      %426 = vmatprep.subr.mxu0 0.0
      %427 = vmatpush1.xpose.msra.mxu0 0.0
      %428 = vmatprep.subr.mxu0 0.0
      %429 = vmatpush1.xpose.msra.mxu0 0.0
      %430 = vmatprep.subr.mxu0 0.0
      %431 = vmatpush1.xpose.msra.mxu0 0.0
      %432 = vmatprep.subr.mxu0 0.0
      %433 = vmatpush1.xpose.msra.mxu0 0.0
      %434 = vmatprep.subr.mxu0 0.0
      %435 = vmatpush1.xpose.msra.mxu0 0.0
      %436 = vmatprep.subr.mxu0 0.0
      %437 = vmatpush1.xpose.msra.mxu0 0.0
      %438 = vmatprep.subr.mxu0 0.0
      %439 = vmatpush1.xpose.msra.mxu0 0.0
      %440 = vmatprep.subr.mxu0 0.0
      %441 = vmatpush1.xpose.msra.mxu0 0.0
      %442 = vmatprep.subr.mxu0 0.0
      %443 = vmatpush1.xpose.msra.mxu0 0.0
      %444 = vmatprep.subr.mxu0 0.0
      %445 = vmatpush1.xpose.msra.mxu0 0.0
      %446 = vmatprep.subr.mxu0 0.0
      %447 = vmatpush1.xpose.msra.mxu0 0.0
      %448 = vmatprep.subr.mxu0 0.0
      %449 = vmatpush1.xpose.msra.mxu0 0.0
      %450 = vmatprep.subr.mxu0 0.0
      %451 = vmatpush1.xpose.msra.mxu0 0.0
      %452 = vmatprep.subr.mxu0 0.0
      %453 = vmatpush1.xpose.msra.mxu0 0.0
      %454 = vmatprep.subr.mxu0 0.0
      %455 = vmatpush1.xpose.msra.mxu0 0.0
      %456 = vmatprep.subr.mxu0 0.0
      %457 = vmatpush1.xpose.msra.mxu0 0.0
      %458 = vmatprep.subr.mxu0 0.0
      %459 = vmatpush1.xpose.msra.mxu0 0.0
      %460 = vmatprep.subr.mxu0 0.0
      %461 = vmatpush1.xpose.msra.mxu0 0.0
      %462 = vmatprep.subr.mxu0 0.0
      %463 = vmatpush1.xpose.msra.mxu0 0.0
      %464 = vmatprep.subr.mxu0 0.0
      %465 = vmatpush1.xpose.msra.mxu0 0.0
      %466 = vmatprep.subr.mxu0 0.0
      %467 = vmatpush1.xpose.msra.mxu0 0.0
      %468 = vmatprep.subr.mxu0 0.0
      %469 = vmatpush1.xpose.msra.mxu0 0.0
      %470 = vmatprep.subr.mxu0 0.0
      %471 = vmatpush1.xpose.msra.mxu0 0.0
      %472 = vmatprep.subr.mxu0 0.0
      %473 = vmatpush1.xpose.msra.mxu0 0.0
      %474 = vmatprep.subr.mxu0 0.0
      %475 = vmatpush1.xpose.msra.mxu0 0.0
      %476 = vmatprep.subr.mxu0 0.0
      %477 = vmatpush1.xpose.msra.mxu0 0.0
      %478 = vmatprep.mubr.f32.mxu0 0.0
      %479 = vmatmul.mubr.f32.gmra.mrb[0].mxu0 %v409
      %v480 = vpop.f32.mrb[0].mxu0
      %v481 = vadd.f32 0.0, %v480
      %v482 = vpop.f32.mrb[0].mxu0
      %483 = vdwg.mxu0
      %v485 = vsel %vm255, %v245, 0
      %v488 = vsel %vm255, %v249, 0
      %490 = vmatprep.subr.mxu0 0.0
      %491 = vmatpush1.xpose.msra.mxu0 %v488
      %492 = vmatprep.subr.mxu0 0.0
      %493 = vmatpush1.xpose.msra.mxu0 0.0
      %494 = vmatprep.subr.mxu0 0.0
      %495 = vmatpush1.xpose.msra.mxu0 0.0
      %496 = vmatprep.subr.mxu0 0.0
      %497 = vmatpush1.xpose.msra.mxu0 0.0
      %498 = vmatprep.subr.mxu0 0.0
      %499 = vmatpush1.xpose.msra.mxu0 0.0
      %500 = vmatprep.subr.mxu0 0.0
      %501 = vmatpush1.xpose.msra.mxu0 0.0
      %502 = vmatprep.subr.mxu0 0.0
      %503 = vmatpush1.xpose.msra.mxu0 0.0
      %504 = vmatprep.subr.mxu0 0.0
      %505 = vmatpush1.xpose.msra.mxu0 0.0
      %506 = vmatprep.subr.mxu0 0.0
      %507 = vmatpush1.xpose.msra.mxu0 0.0
      %508 = vmatprep.subr.mxu0 0.0
      %509 = vmatpush1.xpose.msra.mxu0 0.0
      %510 = vmatprep.subr.mxu0 0.0
      %511 = vmatpush1.xpose.msra.mxu0 0.0
      %512 = vmatprep.subr.mxu0 0.0
      %513 = vmatpush1.xpose.msra.mxu0 0.0
      %514 = vmatprep.subr.mxu0 0.0
      %515 = vmatpush1.xpose.msra.mxu0 0.0
      %516 = vmatprep.subr.mxu0 0.0
      %517 = vmatpush1.xpose.msra.mxu0 0.0
      %518 = vmatprep.subr.mxu0 0.0
      %519 = vmatpush1.xpose.msra.mxu0 0.0
      %520 = vmatprep.subr.mxu0 0.0
      %521 = vmatpush1.xpose.msra.mxu0 0.0
      %522 = vmatprep.subr.mxu0 0.0
      %523 = vmatpush1.xpose.msra.mxu0 0.0
      %524 = vmatprep.subr.mxu0 0.0
      %525 = vmatpush1.xpose.msra.mxu0 0.0
      %526 = vmatprep.subr.mxu0 0.0
      %527 = vmatpush1.xpose.msra.mxu0 0.0
      %528 = vmatprep.subr.mxu0 0.0
      %529 = vmatpush1.xpose.msra.mxu0 0.0
      %530 = vmatprep.subr.mxu0 0.0
      %531 = vmatpush1.xpose.msra.mxu0 0.0
      %532 = vmatprep.subr.mxu0 0.0
      %533 = vmatpush1.xpose.msra.mxu0 0.0
      %534 = vmatprep.subr.mxu0 0.0
      %535 = vmatpush1.xpose.msra.mxu0 0.0
      %536 = vmatprep.subr.mxu0 0.0
      %537 = vmatpush1.xpose.msra.mxu0 0.0
      %538 = vmatprep.subr.mxu0 0.0
      %539 = vmatpush1.xpose.msra.mxu0 0.0
      %540 = vmatprep.subr.mxu0 0.0
      %541 = vmatpush1.xpose.msra.mxu0 0.0
      %542 = vmatprep.subr.mxu0 0.0
      %543 = vmatpush1.xpose.msra.mxu0 0.0
      %544 = vmatprep.subr.mxu0 0.0
      %545 = vmatpush1.xpose.msra.mxu0 0.0
      %546 = vmatprep.subr.mxu0 0.0
      %547 = vmatpush1.xpose.msra.mxu0 0.0
      %548 = vmatprep.subr.mxu0 0.0
      %549 = vmatpush1.xpose.msra.mxu0 0.0
      %550 = vmatprep.subr.mxu0 0.0
      %551 = vmatpush1.xpose.msra.mxu0 0.0
      %552 = vmatprep.subr.mxu0 0.0
      %553 = vmatpush1.xpose.msra.mxu0 0.0
      %554 = vmatprep.mubr.f32.mxu0 0.0
      %555 = vmatmul.mubr.f32.gmra.mrb[0].mxu0 %v485
      %v556 = vpop.f32.mrb[0].mxu0
      %v557 = vadd.f32 0.0, %v556
      %v558 = vpop.f32.mrb[0].mxu0
      %559 = vdwg.mxu0
      %vm560 = vcmp.eq.f32.partialorder %v254, 0.0
      %v561 = vsel %vm560, 1, 0
      %vm562 = vcmp.eq.s32.totalorder %v561, 1
      %v563 = vsel %vm562, -1e+20, %v329
      %v564 = vsel %vm562, -1e+20, %v405
      %v565 = vsel %vm562, -1e+20, %v481
      %v566 = vsel %vm562, -1e+20, %v557
      %v567 = vsel %vm255, %v563, -inf
      %568 = vmax.xlane.f32.xlu0 %v567
      %v569 = vpop.xlane.xlu0 %568
      %v570 = vsel %vm255, %v564, -inf
      %571 = vmax.xlane.f32.xlu0 %v570
      %v572 = vpop.xlane.xlu0 %571
      %v573 = vsel %vm255, %v565, -inf
      %574 = vmax.xlane.f32.xlu0 %v573
      %v575 = vpop.xlane.xlu0 %574
      %v576 = vsel %vm255, %v566, -inf
      %577 = vmax.xlane.f32.xlu0 %v576
      %v578 = vpop.xlane.xlu0 %577
      %v579 = vsub.f32 %v563, %v569
      %v580 = vsub.f32 %v564, %v572
      %v581 = vsub.f32 %v565, %v575
      %v582 = vsub.f32 %v566, %v578
      %v583 = vmul.f32 %v579, 1.442695
      %v584 = vpow.pop %v583
      %v585 = vmul.f32 %v580, 1.442695
      %v586 = vpow.pop %v585
      %v587 = vmul.f32 %v581, 1.442695
      %v588 = vpow.pop %v587
      %v589 = vmul.f32 %v582, 1.442695
      %v590 = vpow.pop %v589
      %v591 = vsel %vm255, %v584, 0.0
      %592 = vadd.xlane.f32.xlu0 %v591
      %v593 = vpop.xlane.xlu0 %592
      %v594 = vsel %vm255, %v586, 0.0
      %595 = vadd.xlane.f32.xlu0 %v594
      %v596 = vpop.xlane.xlu0 %595
      %v597 = vsel %vm255, %v588, 0.0
      %598 = vadd.xlane.f32.xlu0 %v597
      %v599 = vpop.xlane.xlu0 %598
      %v600 = vsel %vm255, %v590, 0.0
      %601 = vadd.xlane.f32.xlu0 %v600
      %v602 = vpop.xlane.xlu0 %601
      %v603 = vrcp.pop %v593
      %v604 = vrcp.pop %v596
      %v605 = vrcp.pop %v599
      %v606 = vrcp.pop %v602
      %v607 = vmul.f32 %v584, %v603
      %v608 = vmul.f32 %v586, %v604
      %v609 = vmul.f32 %v588, %v605
      %v610 = vmul.f32 %v590, %v606
      %v612 = vsel %vm255, %v607, 0
      %614 = vmatprep.subr.mxu0 0.0
      %615 = vmatpush1.msra.mxu0 %v250
      %616 = vmatprep.subr.mxu0 0.0
      %617 = vmatpush1.msra.mxu0 0.0
      %618 = vmatprep.subr.mxu0 0.0
      %619 = vmatpush1.msra.mxu0 0.0
      %620 = vmatprep.subr.mxu0 0.0
      %621 = vmatpush1.msra.mxu0 0.0
      %622 = vmatprep.subr.mxu0 0.0
      %623 = vmatpush1.msra.mxu0 0.0
      %624 = vmatprep.subr.mxu0 0.0
      %625 = vmatpush1.msra.mxu0 0.0
      %626 = vmatprep.subr.mxu0 0.0
      %627 = vmatpush1.msra.mxu0 0.0
      %628 = vmatprep.subr.mxu0 0.0
      %629 = vmatpush1.msra.mxu0 0.0
      %630 = vmatprep.subr.mxu0 0.0
      %631 = vmatpush1.msra.mxu0 0.0
      %632 = vmatprep.subr.mxu0 0.0
      %633 = vmatpush1.msra.mxu0 0.0
      %634 = vmatprep.subr.mxu0 0.0
      %635 = vmatpush1.msra.mxu0 0.0
      %636 = vmatprep.subr.mxu0 0.0
      %637 = vmatpush1.msra.mxu0 0.0
      %638 = vmatprep.subr.mxu0 0.0
      %639 = vmatpush1.msra.mxu0 0.0
      %640 = vmatprep.subr.mxu0 0.0
      %641 = vmatpush1.msra.mxu0 0.0
      %642 = vmatprep.subr.mxu0 0.0
      %643 = vmatpush1.msra.mxu0 0.0
      %644 = vmatprep.subr.mxu0 0.0
      %645 = vmatpush1.msra.mxu0 0.0
      %646 = vmatprep.subr.mxu0 0.0
      %647 = vmatpush1.msra.mxu0 0.0
      %648 = vmatprep.subr.mxu0 0.0
      %649 = vmatpush1.msra.mxu0 0.0
      %650 = vmatprep.subr.mxu0 0.0
      %651 = vmatpush1.msra.mxu0 0.0
      %652 = vmatprep.subr.mxu0 0.0
      %653 = vmatpush1.msra.mxu0 0.0
      %654 = vmatprep.subr.mxu0 0.0
      %655 = vmatpush1.msra.mxu0 0.0
      %656 = vmatprep.subr.mxu0 0.0
      %657 = vmatpush1.msra.mxu0 0.0
      %658 = vmatprep.subr.mxu0 0.0
      %659 = vmatpush1.msra.mxu0 0.0
      %660 = vmatprep.subr.mxu0 0.0
      %661 = vmatpush1.msra.mxu0 0.0
      %662 = vmatprep.subr.mxu0 0.0
      %663 = vmatpush1.msra.mxu0 0.0
      %664 = vmatprep.subr.mxu0 0.0
      %665 = vmatpush1.msra.mxu0 0.0
      %666 = vmatprep.subr.mxu0 0.0
      %667 = vmatpush1.msra.mxu0 0.0
      %668 = vmatprep.subr.mxu0 0.0
      %669 = vmatpush1.msra.mxu0 0.0
      %670 = vmatprep.subr.mxu0 0.0
      %671 = vmatpush1.msra.mxu0 0.0
      %672 = vmatprep.subr.mxu0 0.0
      %673 = vmatpush1.msra.mxu0 0.0
      %674 = vmatprep.subr.mxu0 0.0
      %675 = vmatpush1.msra.mxu0 0.0
      %676 = vmatprep.subr.mxu0 0.0
      %677 = vmatpush1.msra.mxu0 0.0
      %678 = vmatprep.mubr.f32.mxu0 0.0
      %679 = vmatmul.mubr.f32.gmra.mrb[0].mxu0 %v612
      %v680 = vpop.f32.mrb[0].mxu0
      %v681 = vadd.f32 0.0, %v680
      %v682 = vpop.f32.mrb[0].mxu0
      %683 = vdwg.mxu0
      %v685 = vsel %vm255, %v608, 0
      %687 = vmatprep.subr.mxu0 0.0
      %688 = vmatpush1.msra.mxu0 %v251
      %689 = vmatprep.subr.mxu0 0.0
      %690 = vmatpush1.msra.mxu0 0.0
      %691 = vmatprep.subr.mxu0 0.0
      %692 = vmatpush1.msra.mxu0 0.0
      %693 = vmatprep.subr.mxu0 0.0
      %694 = vmatpush1.msra.mxu0 0.0
      %695 = vmatprep.subr.mxu0 0.0
      %696 = vmatpush1.msra.mxu0 0.0
      %697 = vmatprep.subr.mxu0 0.0
      %698 = vmatpush1.msra.mxu0 0.0
      %699 = vmatprep.subr.mxu0 0.0
      %700 = vmatpush1.msra.mxu0 0.0
      %701 = vmatprep.subr.mxu0 0.0
      %702 = vmatpush1.msra.mxu0 0.0
      %703 = vmatprep.subr.mxu0 0.0
      %704 = vmatpush1.msra.mxu0 0.0
      %705 = vmatprep.subr.mxu0 0.0
      %706 = vmatpush1.msra.mxu0 0.0
      %707 = vmatprep.subr.mxu0 0.0
      %708 = vmatpush1.msra.mxu0 0.0
      %709 = vmatprep.subr.mxu0 0.0
      %710 = vmatpush1.msra.mxu0 0.0
      %711 = vmatprep.subr.mxu0 0.0
      %712 = vmatpush1.msra.mxu0 0.0
      %713 = vmatprep.subr.mxu0 0.0
      %714 = vmatpush1.msra.mxu0 0.0
      %715 = vmatprep.subr.mxu0 0.0
      %716 = vmatpush1.msra.mxu0 0.0
      %717 = vmatprep.subr.mxu0 0.0
      %718 = vmatpush1.msra.mxu0 0.0
      %719 = vmatprep.subr.mxu0 0.0
      %720 = vmatpush1.msra.mxu0 0.0
      %721 = vmatprep.subr.mxu0 0.0
      %722 = vmatpush1.msra.mxu0 0.0
      %723 = vmatprep.subr.mxu0 0.0
      %724 = vmatpush1.msra.mxu0 0.0
      %725 = vmatprep.subr.mxu0 0.0
      %726 = vmatpush1.msra.mxu0 0.0
      %727 = vmatprep.subr.mxu0 0.0
      %728 = vmatpush1.msra.mxu0 0.0
      %729 = vmatprep.subr.mxu0 0.0
      %730 = vmatpush1.msra.mxu0 0.0
      %731 = vmatprep.subr.mxu0 0.0
      %732 = vmatpush1.msra.mxu0 0.0
      %733 = vmatprep.subr.mxu0 0.0
      %734 = vmatpush1.msra.mxu0 0.0
      %735 = vmatprep.subr.mxu0 0.0
      %736 = vmatpush1.msra.mxu0 0.0
      %737 = vmatprep.subr.mxu0 0.0
      %738 = vmatpush1.msra.mxu0 0.0
      %739 = vmatprep.subr.mxu0 0.0
      %740 = vmatpush1.msra.mxu0 0.0
      %741 = vmatprep.subr.mxu0 0.0
      %742 = vmatpush1.msra.mxu0 0.0
      %743 = vmatprep.subr.mxu0 0.0
      %744 = vmatpush1.msra.mxu0 0.0
      %745 = vmatprep.subr.mxu0 0.0
      %746 = vmatpush1.msra.mxu0 0.0
      %747 = vmatprep.subr.mxu0 0.0
      %748 = vmatpush1.msra.mxu0 0.0
      %749 = vmatprep.subr.mxu0 0.0
      %750 = vmatpush1.msra.mxu0 0.0
      %751 = vmatprep.mubr.f32.mxu0 0.0
      %752 = vmatmul.mubr.f32.gmra.mrb[0].mxu0 %v685
      %v753 = vpop.f32.mrb[0].mxu0
      %v754 = vadd.f32 0.0, %v753
      %v755 = vpop.f32.mrb[0].mxu0
      %756 = vdwg.mxu0
      %v758 = vsel %vm255, %v609, 0
      %760 = vmatprep.subr.mxu0 0.0
      %761 = vmatpush1.msra.mxu0 %v252
      %762 = vmatprep.subr.mxu0 0.0
      %763 = vmatpush1.msra.mxu0 0.0
      %764 = vmatprep.subr.mxu0 0.0
      %765 = vmatpush1.msra.mxu0 0.0
      %766 = vmatprep.subr.mxu0 0.0
      %767 = vmatpush1.msra.mxu0 0.0
      %768 = vmatprep.subr.mxu0 0.0
      %769 = vmatpush1.msra.mxu0 0.0
      %770 = vmatprep.subr.mxu0 0.0
      %771 = vmatpush1.msra.mxu0 0.0
      %772 = vmatprep.subr.mxu0 0.0
      %773 = vmatpush1.msra.mxu0 0.0
      %774 = vmatprep.subr.mxu0 0.0
      %775 = vmatpush1.msra.mxu0 0.0
      %776 = vmatprep.subr.mxu0 0.0
      %777 = vmatpush1.msra.mxu0 0.0
      %778 = vmatprep.subr.mxu0 0.0
      %779 = vmatpush1.msra.mxu0 0.0
      %780 = vmatprep.subr.mxu0 0.0
      %781 = vmatpush1.msra.mxu0 0.0
      %782 = vmatprep.subr.mxu0 0.0
      %783 = vmatpush1.msra.mxu0 0.0
      %784 = vmatprep.subr.mxu0 0.0
      %785 = vmatpush1.msra.mxu0 0.0
      %786 = vmatprep.subr.mxu0 0.0
      %787 = vmatpush1.msra.mxu0 0.0
      %788 = vmatprep.subr.mxu0 0.0
      %789 = vmatpush1.msra.mxu0 0.0
      %790 = vmatprep.subr.mxu0 0.0
      %791 = vmatpush1.msra.mxu0 0.0
      %792 = vmatprep.subr.mxu0 0.0
      %793 = vmatpush1.msra.mxu0 0.0
      %794 = vmatprep.subr.mxu0 0.0
      %795 = vmatpush1.msra.mxu0 0.0
      %796 = vmatprep.subr.mxu0 0.0
      %797 = vmatpush1.msra.mxu0 0.0
      %798 = vmatprep.subr.mxu0 0.0
      %799 = vmatpush1.msra.mxu0 0.0
      %800 = vmatprep.subr.mxu0 0.0
      %801 = vmatpush1.msra.mxu0 0.0
      %802 = vmatprep.subr.mxu0 0.0
      %803 = vmatpush1.msra.mxu0 0.0
      %804 = vmatprep.subr.mxu0 0.0
      %805 = vmatpush1.msra.mxu0 0.0
      %806 = vmatprep.subr.mxu0 0.0
      %807 = vmatpush1.msra.mxu0 0.0
      %808 = vmatprep.subr.mxu0 0.0
      %809 = vmatpush1.msra.mxu0 0.0
      %810 = vmatprep.subr.mxu0 0.0
      %811 = vmatpush1.msra.mxu0 0.0
      %812 = vmatprep.subr.mxu0 0.0
      %813 = vmatpush1.msra.mxu0 0.0
      %814 = vmatprep.subr.mxu0 0.0
      %815 = vmatpush1.msra.mxu0 0.0
      %816 = vmatprep.subr.mxu0 0.0
      %817 = vmatpush1.msra.mxu0 0.0
      %818 = vmatprep.subr.mxu0 0.0
      %819 = vmatpush1.msra.mxu0 0.0
      %820 = vmatprep.subr.mxu0 0.0
      %821 = vmatpush1.msra.mxu0 0.0
      %822 = vmatprep.subr.mxu0 0.0
      %823 = vmatpush1.msra.mxu0 0.0
      %824 = vmatprep.mubr.f32.mxu0 0.0
      %825 = vmatmul.mubr.f32.gmra.mrb[0].mxu0 %v758
      %v826 = vpop.f32.mrb[0].mxu0
      %v827 = vadd.f32 0.0, %v826
      %v828 = vpop.f32.mrb[0].mxu0
      %829 = vdwg.mxu0
      %v831 = vsel %vm255, %v610, 0
      %833 = vmatprep.subr.mxu0 0.0
      %834 = vmatpush1.msra.mxu0 %v253
      %835 = vmatprep.subr.mxu0 0.0
      %836 = vmatpush1.msra.mxu0 0.0
      %837 = vmatprep.subr.mxu0 0.0
      %838 = vmatpush1.msra.mxu0 0.0
      %839 = vmatprep.subr.mxu0 0.0
      %840 = vmatpush1.msra.mxu0 0.0
      %841 = vmatprep.subr.mxu0 0.0
      %842 = vmatpush1.msra.mxu0 0.0
      %843 = vmatprep.subr.mxu0 0.0
      %844 = vmatpush1.msra.mxu0 0.0
      %845 = vmatprep.subr.mxu0 0.0
      %846 = vmatpush1.msra.mxu0 0.0
      %847 = vmatprep.subr.mxu0 0.0
      %848 = vmatpush1.msra.mxu0 0.0
      %849 = vmatprep.subr.mxu0 0.0
      %850 = vmatpush1.msra.mxu0 0.0
      %851 = vmatprep.subr.mxu0 0.0
      %852 = vmatpush1.msra.mxu0 0.0
      %853 = vmatprep.subr.mxu0 0.0
      %854 = vmatpush1.msra.mxu0 0.0
      %855 = vmatprep.subr.mxu0 0.0
      %856 = vmatpush1.msra.mxu0 0.0
      %857 = vmatprep.subr.mxu0 0.0
      %858 = vmatpush1.msra.mxu0 0.0
      %859 = vmatprep.subr.mxu0 0.0
      %860 = vmatpush1.msra.mxu0 0.0
      %861 = vmatprep.subr.mxu0 0.0
      %862 = vmatpush1.msra.mxu0 0.0
      %863 = vmatprep.subr.mxu0 0.0
      %864 = vmatpush1.msra.mxu0 0.0
      %865 = vmatprep.subr.mxu0 0.0
      %866 = vmatpush1.msra.mxu0 0.0
      %867 = vmatprep.subr.mxu0 0.0
      %868 = vmatpush1.msra.mxu0 0.0
      %869 = vmatprep.subr.mxu0 0.0
      %870 = vmatpush1.msra.mxu0 0.0
      %871 = vmatprep.subr.mxu0 0.0
      %872 = vmatpush1.msra.mxu0 0.0
      %873 = vmatprep.subr.mxu0 0.0
      %874 = vmatpush1.msra.mxu0 0.0
      %875 = vmatprep.subr.mxu0 0.0
      %876 = vmatpush1.msra.mxu0 0.0
      %877 = vmatprep.subr.mxu0 0.0
      %878 = vmatpush1.msra.mxu0 0.0
      %879 = vmatprep.subr.mxu0 0.0
      %880 = vmatpush1.msra.mxu0 0.0
      %881 = vmatprep.subr.mxu0 0.0
      %882 = vmatpush1.msra.mxu0 0.0
      %883 = vmatprep.subr.mxu0 0.0
      %884 = vmatpush1.msra.mxu0 0.0
      %885 = vmatprep.subr.mxu0 0.0
      %886 = vmatpush1.msra.mxu0 0.0
      %887 = vmatprep.subr.mxu0 0.0
      %888 = vmatpush1.msra.mxu0 0.0
      %889 = vmatprep.subr.mxu0 0.0
      %890 = vmatpush1.msra.mxu0 0.0
      %891 = vmatprep.subr.mxu0 0.0
      %892 = vmatpush1.msra.mxu0 0.0
      %893 = vmatprep.subr.mxu0 0.0
      %894 = vmatpush1.msra.mxu0 0.0
      %895 = vmatprep.subr.mxu0 0.0
      %896 = vmatpush1.msra.mxu0 0.0
      %897 = vmatprep.mubr.f32.mxu0 0.0
      %898 = vmatmul.mubr.f32.gmra.mrb[0].mxu0 %v831
      %v899 = vpop.f32.mrb[0].mxu0
      %v900 = vadd.f32 0.0, %v899
      %v901 = vpop.f32.mrb[0].mxu0
      %902 = vdwg.mxu0
      %903 = vst.msk [vmem:[%s237] sm:$0xff] %vm255, %v681
      %904 = vst.msk [vmem:[%s237 + $0x8] sm:$0xff] %vm255, %v754
      %905 = vst.msk [vmem:[%s237 + $0x10] sm:$0xff] %vm255, %v827
      %906 = vst.msk [vmem:[%s237 + $0x18] sm:$0xff] %vm255, %v900
      %p907 = scmp.lt.s32.totalorder %s15, 1
      %s908 = scalar_select %p907, %s15, 1
      %s909 = smul.addr %s908, 4
      %s910 = smul.addr %s909, 8
      %s911 = scalar_lea.vmem %s4, %s910
      // Predicated region
      $region37: #{transformer_forward.28} parent=35 // pred_check
        %p912 = pneg %p132
      $region38: #{transformer_forward.28} parent=35 // pred_check_branch
        %914 = sbr.rel (%p912) target = $region40
      $region39: #{transformer_forward.28} parent=35 // pred_region
        _
      $region40: #{transformer_forward.28} parent=35 // pred_fallthru
        _
    $region36: #{transformer_forward.28} parent=5 // pred_fallthru
      _
    %p915 = scmp.le.s32.totalorder 2, %s10
    // Predicated region
    $region41: #{transformer_forward.28} parent=5 // pred_check
      %p916 = pneg %p915
    $region42: #{transformer_forward.28} parent=5 // pred_check_branch
      %918 = sbr.rel (%p916) target = $region44
    $region43: #{transformer_forward.28} parent=5 // pred_region
      %s919 = ssub.s32 %s10, 2
      // Predicated region
      $region45: #{transformer_forward.28} parent=43 // pred_check
        %p920 = pneg %p138
      $region46: #{transformer_forward.28} parent=43 // pred_check_branch
        %922 = sbr.rel (%p920) target = $region48
      $region47: #{transformer_forward.28} parent=43 // pred_region
        %p923 = scmp.lt.s32.totalorder %s16, 1
        %s924 = scalar_select %p923, %s16, 1
        %s925 = smul.addr %s924, 4
        %s926 = smul.addr %s925, 8
        %s927 = scalar_lea.vmem %s4, %s926
      $region48: #{transformer_forward.28} parent=43 // pred_fallthru
        _
    $region44: #{transformer_forward.28} parent=5 // pred_fallthru
      _
  $region6: #{transformer_forward.28} parent=0 // loop_footer
    %s14 = sadd.s32 1, %s10
  $region7: #{transformer_forward.28} parent=0 // loop_footer_branch
    %9 = sbr.rel target = $region3
  $region8: #{transformer_forward.28} parent=0 // loop_exit
    _

// kernel: transformer_forward.31
$region0: #{transformer_forward.31}
  #allocation0 [shape = 'u32[]', space=smem, size = 0x4, offset = 0x4, fixed_abs, tag = 'smem constant byte address 0x4 - core index']
  #allocation1 [shape = 'u32[144,128]{1,0:T(1,128)}', space=vmem, size = 0x12000, scoped, tag = 'internal scratch']
  %s0 = inlined_call_operand.vmem [shape: f32[16,32], index: 0, kind: input, shape index: {}]
  %s1 = inlined_call_operand.vmem [shape: f32[32,64], index: 1, kind: input, shape index: {}]
  %s2 = inlined_call_operand.vmem [shape: f32[1,64], index: 2, kind: input, shape index: {}]
  %s3 = inlined_call_operand.vmem [shape: f32[16,64], index: 3, kind: output, shape index: {}]
  %s4 = sld [smem:[#allocation0]]
  $region22: #{transformer_forward.31} parent=0
    _
  %s6 = ssub.s32 1, %s4
  %s7 = scalar_select 0, %s6, %s4
  // Predicated region
  $region2: #{transformer_forward.31} parent=0 // pred_check
    _
  $region3: #{transformer_forward.31} parent=0 // pred_check_branch
    %9 = sbr.rel (0) target = $region5
  $region4: #{transformer_forward.31} parent=0 // pred_region
    _
  $region5: #{transformer_forward.31} parent=0 // pred_fallthru
    _
  // Predicated region
  $region6: #{transformer_forward.31} parent=0 // pred_check
    _
  $region7: #{transformer_forward.31} parent=0 // pred_check_branch
    %11 = sbr.rel (0) target = $region9
  $region8: #{transformer_forward.31} parent=0 // pred_region
    _
  $region9: #{transformer_forward.31} parent=0 // pred_fallthru
    _
  // Predicated region
  $region10: #{transformer_forward.31} parent=0 // pred_check
    _
  $region11: #{transformer_forward.31} parent=0 // pred_check_branch
    %13 = sbr.rel (0) target = $region13
  $region12: #{transformer_forward.31} parent=0 // pred_region
    _
  $region13: #{transformer_forward.31} parent=0 // pred_fallthru
    _
  %v14 = vld [vmem:[%s0] sm:$0xff]
  %v15 = vld [vmem:[%s0 + $0x8] sm:$0xff]
  %v16 = vld [vmem:[%s1] sm:$0xff]
  %v17 = vld [vmem:[%s1 + $0x8] sm:$0xff]
  %v18 = vld [vmem:[%s1 + $0x10] sm:$0xff]
  %v19 = vld [vmem:[%s1 + $0x18] sm:$0xff]
  %v20 = vld [vmem:[%s2] sm:$0x1]
  %v22 = vlaneseq
  %v23 = vshrl.u32 %v22, 7
  %v24 = vsub.s32 0, %v23
  %v25 = vrot.slane %v20, %v24
  %vm27 = vcmask 261120
  %v29 = vsel %vm27, %v14, 0
  %v32 = vsel %vm27, %v15, 0
  %34 = vmatprep.subr.mxu0 0.0
  %35 = vmatpush1.msra.mxu0 %v16
  %36 = vmatprep.subr.mxu0 0.0
  %37 = vmatpush1.msra.mxu0 %v17
  %38 = vmatprep.subr.mxu0 0.0
  %39 = vmatpush1.msra.mxu0 %v18
  %40 = vmatprep.subr.mxu0 0.0
  %41 = vmatpush1.msra.mxu0 %v19
  %42 = vmatprep.subr.mxu0 0.0
  %43 = vmatpush1.msra.mxu0 0.0
  %44 = vmatprep.subr.mxu0 0.0
  %45 = vmatpush1.msra.mxu0 0.0
  %46 = vmatprep.subr.mxu0 0.0
  %47 = vmatpush1.msra.mxu0 0.0
  %48 = vmatprep.subr.mxu0 0.0
  %49 = vmatpush1.msra.mxu0 0.0
  %50 = vmatprep.subr.mxu0 0.0
  %51 = vmatpush1.msra.mxu0 0.0
  %52 = vmatprep.subr.mxu0 0.0
  %53 = vmatpush1.msra.mxu0 0.0
  %54 = vmatprep.subr.mxu0 0.0
  %55 = vmatpush1.msra.mxu0 0.0
  %56 = vmatprep.subr.mxu0 0.0
  %57 = vmatpush1.msra.mxu0 0.0
  %58 = vmatprep.subr.mxu0 0.0
  %59 = vmatpush1.msra.mxu0 0.0
  %60 = vmatprep.subr.mxu0 0.0
  %61 = vmatpush1.msra.mxu0 0.0
  %62 = vmatprep.subr.mxu0 0.0
  %63 = vmatpush1.msra.mxu0 0.0
  %64 = vmatprep.subr.mxu0 0.0
  %65 = vmatpush1.msra.mxu0 0.0
  %66 = vmatprep.subr.mxu0 0.0
  %67 = vmatpush1.msra.mxu0 0.0
  %68 = vmatprep.subr.mxu0 0.0
  %69 = vmatpush1.msra.mxu0 0.0
  %70 = vmatprep.subr.mxu0 0.0
  %71 = vmatpush1.msra.mxu0 0.0
  %72 = vmatprep.subr.mxu0 0.0
  %73 = vmatpush1.msra.mxu0 0.0
  %74 = vmatprep.subr.mxu0 0.0
  %75 = vmatpush1.msra.mxu0 0.0
  %76 = vmatprep.subr.mxu0 0.0
  %77 = vmatpush1.msra.mxu0 0.0
  %78 = vmatprep.subr.mxu0 0.0
  %79 = vmatpush1.msra.mxu0 0.0
  %80 = vmatprep.subr.mxu0 0.0
  %81 = vmatpush1.msra.mxu0 0.0
  %82 = vmatprep.subr.mxu0 0.0
  %83 = vmatpush1.msra.mxu0 0.0
  %84 = vmatprep.subr.mxu0 0.0
  %85 = vmatpush1.msra.mxu0 0.0
  %86 = vmatprep.subr.mxu0 0.0
  %87 = vmatpush1.msra.mxu0 0.0
  %88 = vmatprep.subr.mxu0 0.0
  %89 = vmatpush1.msra.mxu0 0.0
  %90 = vmatprep.subr.mxu0 0.0
  %91 = vmatpush1.msra.mxu0 0.0
  %92 = vmatprep.subr.mxu0 0.0
  %93 = vmatpush1.msra.mxu0 0.0
  %94 = vmatprep.subr.mxu0 0.0
  %95 = vmatpush1.msra.mxu0 0.0
  %96 = vmatprep.subr.mxu0 0.0
  %97 = vmatpush1.msra.mxu0 0.0
  %98 = vmatprep.mubr.f32.mxu0 0.0
  %99 = vmatmul.mubr.f32.gmra.mrb[0].mxu0 %v29
  %v100 = vpop.f32.mrb[0].mxu0
  %v101 = vadd.f32 %v25, %v100
  %v102 = vpop.f32.mrb[0].mxu0
  %103 = vmatprep.mubr.f32.mxu0 0.0
  %104 = vmatmul.mubr.f32.gmra.mrb[0].mxu0 %v32
  %v105 = vpop.f32.mrb[0].mxu0
  %v106 = vadd.f32 %v25, %v105
  %v107 = vpop.f32.mrb[0].mxu0
  %108 = vdwg.mxu0
  %vm109 = vcmask 523264
  %110 = vst.msk [vmem:[%s3] sm:$0xff] %vm109, %v101
  %111 = vst.msk [vmem:[%s3 + $0x8] sm:$0xff] %vm109, %v106
  // Predicated region
  $region14: #{transformer_forward.31} parent=0 // pred_check
    _
  $region15: #{transformer_forward.31} parent=0 // pred_check_branch
    %113 = sbr.rel (0) target = $region17
  $region16: #{transformer_forward.31} parent=0 // pred_region
    _
  $region17: #{transformer_forward.31} parent=0 // pred_fallthru
    _
  // Predicated region
  $region18: #{transformer_forward.31} parent=0 // pred_check
    _
  $region19: #{transformer_forward.31} parent=0 // pred_check_branch
    %115 = sbr.rel (0) target = $region21
  $region20: #{transformer_forward.31} parent=0 // pred_region
    _
  $region21: #{transformer_forward.31} parent=0 // pred_fallthru
    _

// kernel: transformer_forward.23
$region0: #{transformer_forward.23}
  #allocation0 [shape = 'u32[]', space=smem, size = 0x4, offset = 0x4, fixed_abs, tag = 'smem constant byte address 0x4 - core index']
  #allocation1 [shape = 'u32[144,128]{1,0:T(1,128)}', space=vmem, size = 0x12000, scoped, tag = 'internal scratch']
  %s0 = inlined_call_operand.vmem [shape: f32[16,32], index: 0, kind: input, shape index: {}]
  %s1 = inlined_call_operand.vmem [shape: f32[16,32], index: 1, kind: input, shape index: {}]
  %s2 = inlined_call_operand.vmem [shape: f32[32,32], index: 2, kind: input, shape index: {}]
  %s3 = inlined_call_operand.vmem [shape: f32[1,32], index: 3, kind: input, shape index: {}]
  %s4 = inlined_call_operand.vmem [shape: f32[1,32], index: 4, kind: input, shape index: {}]
  %s5 = inlined_call_operand.vmem [shape: f32[1,32], index: 5, kind: input, shape index: {}]
  %s6 = inlined_call_operand.vmem [shape: f32[32,64], index: 6, kind: input, shape index: {}]
  %s7 = inlined_call_operand.vmem [shape: f32[1,64], index: 7, kind: input, shape index: {}]
  %s8 = inlined_call_operand.vmem [shape: f32[64,32], index: 8, kind: input, shape index: {}]
  %s9 = inlined_call_operand.vmem [shape: f32[1,32], index: 9, kind: input, shape index: {}]
  %s10 = inlined_call_operand.vmem [shape: f32[1,32], index: 10, kind: input, shape index: {}]
  %s11 = inlined_call_operand.vmem [shape: f32[1,32], index: 11, kind: input, shape index: {}]
  %s12 = inlined_call_operand.vmem [shape: f32[16,32], index: 12, kind: output, shape index: {}]
  %s13 = sld [smem:[#allocation0]]
  $region58: #{transformer_forward.23} parent=0
    _
  %s15 = ssub.s32 1, %s13
  %s16 = scalar_select 0, %s15, %s13
  // Predicated region
  $region2: #{transformer_forward.23} parent=0 // pred_check
    _
  $region3: #{transformer_forward.23} parent=0 // pred_check_branch
    %18 = sbr.rel (0) target = $region5
  $region4: #{transformer_forward.23} parent=0 // pred_region
    _
  $region5: #{transformer_forward.23} parent=0 // pred_fallthru
    _
  // Predicated region
  $region6: #{transformer_forward.23} parent=0 // pred_check
    _
  $region7: #{transformer_forward.23} parent=0 // pred_check_branch
    %20 = sbr.rel (0) target = $region9
  $region8: #{transformer_forward.23} parent=0 // pred_region
    _
  $region9: #{transformer_forward.23} parent=0 // pred_fallthru
    _
  // Predicated region
  $region10: #{transformer_forward.23} parent=0 // pred_check
    _
  $region11: #{transformer_forward.23} parent=0 // pred_check_branch
    %22 = sbr.rel (0) target = $region13
  $region12: #{transformer_forward.23} parent=0 // pred_region
    _
  $region13: #{transformer_forward.23} parent=0 // pred_fallthru
    _
  // Predicated region
  $region14: #{transformer_forward.23} parent=0 // pred_check
    _
  $region15: #{transformer_forward.23} parent=0 // pred_check_branch
    %24 = sbr.rel (0) target = $region17
  $region16: #{transformer_forward.23} parent=0 // pred_region
    _
  $region17: #{transformer_forward.23} parent=0 // pred_fallthru
    _
  // Predicated region
  $region18: #{transformer_forward.23} parent=0 // pred_check
    _
  $region19: #{transformer_forward.23} parent=0 // pred_check_branch
    %26 = sbr.rel (0) target = $region21
  $region20: #{transformer_forward.23} parent=0 // pred_region
    _
  $region21: #{transformer_forward.23} parent=0 // pred_fallthru
    _
  // Predicated region
  $region22: #{transformer_forward.23} parent=0 // pred_check
    _
  $region23: #{transformer_forward.23} parent=0 // pred_check_branch
    %28 = sbr.rel (0) target = $region25
  $region24: #{transformer_forward.23} parent=0 // pred_region
    _
  $region25: #{transformer_forward.23} parent=0 // pred_fallthru
    _
  // Predicated region
  $region26: #{transformer_forward.23} parent=0 // pred_check
    _
  $region27: #{transformer_forward.23} parent=0 // pred_check_branch
    %30 = sbr.rel (0) target = $region29
  $region28: #{transformer_forward.23} parent=0 // pred_region
    _
  $region29: #{transformer_forward.23} parent=0 // pred_fallthru
    _
  // Predicated region
  $region30: #{transformer_forward.23} parent=0 // pred_check
    _
  $region31: #{transformer_forward.23} parent=0 // pred_check_branch
    %32 = sbr.rel (0) target = $region33
  $region32: #{transformer_forward.23} parent=0 // pred_region
    _
  $region33: #{transformer_forward.23} parent=0 // pred_fallthru
    _
  // Predicated region
  $region34: #{transformer_forward.23} parent=0 // pred_check
    _
  $region35: #{transformer_forward.23} parent=0 // pred_check_branch
    %34 = sbr.rel (0) target = $region37
  $region36: #{transformer_forward.23} parent=0 // pred_region
    _
  $region37: #{transformer_forward.23} parent=0 // pred_fallthru
    _
  // Predicated region
  $region38: #{transformer_forward.23} parent=0 // pred_check
    _
  $region39: #{transformer_forward.23} parent=0 // pred_check_branch
    %36 = sbr.rel (0) target = $region41
  $region40: #{transformer_forward.23} parent=0 // pred_region
    _
  $region41: #{transformer_forward.23} parent=0 // pred_fallthru
    _
  // Predicated region
  $region42: #{transformer_forward.23} parent=0 // pred_check
    _
  $region43: #{transformer_forward.23} parent=0 // pred_check_branch
    %38 = sbr.rel (0) target = $region45
  $region44: #{transformer_forward.23} parent=0 // pred_region
    _
  $region45: #{transformer_forward.23} parent=0 // pred_fallthru
    _
  // Predicated region
  $region46: #{transformer_forward.23} parent=0 // pred_check
    _
  $region47: #{transformer_forward.23} parent=0 // pred_check_branch
    %40 = sbr.rel (0) target = $region49
  $region48: #{transformer_forward.23} parent=0 // pred_region
    _
  $region49: #{transformer_forward.23} parent=0 // pred_fallthru
    _
  %v41 = vld [vmem:[%s0] sm:$0xff]
  %v42 = vld [vmem:[%s0 + $0x8] sm:$0xff]
  %v43 = vld [vmem:[%s2] sm:$0xff]
  %v44 = vld [vmem:[%s2 + $0x8] sm:$0xff]
  %v45 = vld [vmem:[%s2 + $0x10] sm:$0xff]
  %v46 = vld [vmem:[%s2 + $0x18] sm:$0xff]
  %v47 = vld [vmem:[%s3] sm:$0x1]
  %v49 = vlaneseq
  %v50 = vshrl.u32 %v49, 7
  %v51 = vsub.s32 0, %v50
  %v52 = vrot.slane %v47, %v51
  %vm54 = vcmask 261120
  %v56 = vsel %vm54, %v41, 0
  %v59 = vsel %vm54, %v42, 0
  %61 = vmatprep.subr.mxu0 0.0
  %62 = vmatpush1.msra.mxu0 %v43
  %63 = vmatprep.subr.mxu0 0.0
  %64 = vmatpush1.msra.mxu0 %v44
  %65 = vmatprep.subr.mxu0 0.0
  %66 = vmatpush1.msra.mxu0 %v45
  %67 = vmatprep.subr.mxu0 0.0
  %68 = vmatpush1.msra.mxu0 %v46
  %69 = vmatprep.subr.mxu0 0.0
  %70 = vmatpush1.msra.mxu0 0.0
  %71 = vmatprep.subr.mxu0 0.0
  %72 = vmatpush1.msra.mxu0 0.0
  %73 = vmatprep.subr.mxu0 0.0
  %74 = vmatpush1.msra.mxu0 0.0
  %75 = vmatprep.subr.mxu0 0.0
  %76 = vmatpush1.msra.mxu0 0.0
  %77 = vmatprep.subr.mxu0 0.0
  %78 = vmatpush1.msra.mxu0 0.0
  %79 = vmatprep.subr.mxu0 0.0
  %80 = vmatpush1.msra.mxu0 0.0
  %81 = vmatprep.subr.mxu0 0.0
  %82 = vmatpush1.msra.mxu0 0.0
  %83 = vmatprep.subr.mxu0 0.0
  %84 = vmatpush1.msra.mxu0 0.0
  %85 = vmatprep.subr.mxu0 0.0
  %86 = vmatpush1.msra.mxu0 0.0
  %87 = vmatprep.subr.mxu0 0.0
  %88 = vmatpush1.msra.mxu0 0.0
  %89 = vmatprep.subr.mxu0 0.0
  %90 = vmatpush1.msra.mxu0 0.0
  %91 = vmatprep.subr.mxu0 0.0
  %92 = vmatpush1.msra.mxu0 0.0
  %93 = vmatprep.subr.mxu0 0.0
  %94 = vmatpush1.msra.mxu0 0.0
  %95 = vmatprep.subr.mxu0 0.0
  %96 = vmatpush1.msra.mxu0 0.0
  %97 = vmatprep.subr.mxu0 0.0
  %98 = vmatpush1.msra.mxu0 0.0
  %99 = vmatprep.subr.mxu0 0.0
  %100 = vmatpush1.msra.mxu0 0.0
  %101 = vmatprep.subr.mxu0 0.0
  %102 = vmatpush1.msra.mxu0 0.0
  %103 = vmatprep.subr.mxu0 0.0
  %104 = vmatpush1.msra.mxu0 0.0
  %105 = vmatprep.subr.mxu0 0.0
  %106 = vmatpush1.msra.mxu0 0.0
  %107 = vmatprep.subr.mxu0 0.0
  %108 = vmatpush1.msra.mxu0 0.0
  %109 = vmatprep.subr.mxu0 0.0
  %110 = vmatpush1.msra.mxu0 0.0
  %111 = vmatprep.subr.mxu0 0.0
  %112 = vmatpush1.msra.mxu0 0.0
  %113 = vmatprep.subr.mxu0 0.0
  %114 = vmatpush1.msra.mxu0 0.0
  %115 = vmatprep.subr.mxu0 0.0
  %116 = vmatpush1.msra.mxu0 0.0
  %117 = vmatprep.subr.mxu0 0.0
  %118 = vmatpush1.msra.mxu0 0.0
  %119 = vmatprep.subr.mxu0 0.0
  %120 = vmatpush1.msra.mxu0 0.0
  %121 = vmatprep.subr.mxu0 0.0
  %122 = vmatpush1.msra.mxu0 0.0
  %123 = vmatprep.subr.mxu0 0.0
  %124 = vmatpush1.msra.mxu0 0.0
  %125 = vmatprep.mubr.f32.mxu0 0.0
  %126 = vmatmul.mubr.f32.gmra.mrb[0].mxu0 %v56
  %v127 = vpop.f32.mrb[0].mxu0
  %v128 = vadd.f32 %v52, %v127
  %v129 = vpop.f32.mrb[0].mxu0
  %130 = vmatprep.mubr.f32.mxu0 0.0
  %131 = vmatmul.mubr.f32.gmra.mrb[0].mxu0 %v59
  %v132 = vpop.f32.mrb[0].mxu0
  %v133 = vadd.f32 %v52, %v132
  %v134 = vpop.f32.mrb[0].mxu0
  %135 = vdwg.mxu0
  %v136 = vld [vmem:[%s1] sm:$0xff]
  %v137 = vld [vmem:[%s1 + $0x8] sm:$0xff]
  %v138 = vadd.f32 %v128, %v136
  %v139 = vadd.f32 %v133, %v137
  %v140 = vld [vmem:[%s4] sm:$0x1]
  %v141 = vld [vmem:[%s5] sm:$0x1]
  %v142 = vsel %vm54, %v138, 0.0
  %143 = vadd.xlane.f32.xlu0 %v142
  %v144 = vpop.xlane.xlu0 %143
  %v145 = vsel %vm54, %v139, 0.0
  %146 = vadd.xlane.f32.xlu0 %v145
  %v147 = vpop.xlane.xlu0 %146
  %v148 = vrcp.pop 32.0
  %v149 = vmul.f32 %v144, %v148
  %v150 = vmul.f32 %v147, %v148
  %v151 = vsub.f32 %v138, %v149
  %v152 = vsub.f32 %v139, %v150
  %v153 = vmul.f32 %v151, %v151
  %v154 = vmul.f32 %v152, %v152
  %v155 = vsel %vm54, %v153, 0.0
  %156 = vadd.xlane.f32.xlu0 %v155
  %v157 = vpop.xlane.xlu0 %156
  %v158 = vsel %vm54, %v154, 0.0
  %159 = vadd.xlane.f32.xlu0 %v158
  %v160 = vpop.xlane.xlu0 %159
  %v161 = vmul.f32 %v157, %v148
  %v162 = vmul.f32 %v160, %v148
  %v163 = vadd.f32 %v161, 1e-05
  %v164 = vadd.f32 %v162, 1e-05
  %v165 = vrsqrt.pop %v163
  %v166 = vrsqrt.pop %v164
  %v167 = vmul.f32 %v151, %v165
  %v168 = vmul.f32 %v152, %v166
  %v170 = vlaneseq
  %v171 = vshrl.u32 %v170, 7
  %v172 = vsub.s32 0, %v171
  %v173 = vrot.slane %v140, %v172
  %v175 = vmul.f32 %v167, %v173
  %v176 = vmul.f32 %v168, %v173
  %v178 = vlaneseq
  %v179 = vshrl.u32 %v178, 7
  %v180 = vsub.s32 0, %v179
  %v181 = vrot.slane %v141, %v180
  %v183 = vadd.f32 %v175, %v181
  %v184 = vadd.f32 %v176, %v181
  %v185 = vld [vmem:[%s6] sm:$0xff]
  %v186 = vld [vmem:[%s6 + $0x8] sm:$0xff]
  %v187 = vld [vmem:[%s6 + $0x10] sm:$0xff]
  %v188 = vld [vmem:[%s6 + $0x18] sm:$0xff]
  %v189 = vld [vmem:[%s7] sm:$0x1]
  %v191 = vlaneseq
  %v192 = vshrl.u32 %v191, 7
  %v193 = vsub.s32 0, %v192
  %v194 = vrot.slane %v189, %v193
  %v197 = vsel %vm54, %v183, 0
  %v200 = vsel %vm54, %v184, 0
  %202 = vmatprep.subr.mxu0 0.0
  %203 = vmatpush1.msra.mxu0 %v185
  %204 = vmatprep.subr.mxu0 0.0
  %205 = vmatpush1.msra.mxu0 %v186
  %206 = vmatprep.subr.mxu0 0.0
  %207 = vmatpush1.msra.mxu0 %v187
  %208 = vmatprep.subr.mxu0 0.0
  %209 = vmatpush1.msra.mxu0 %v188
  %210 = vmatprep.subr.mxu0 0.0
  %211 = vmatpush1.msra.mxu0 0.0
  %212 = vmatprep.subr.mxu0 0.0
  %213 = vmatpush1.msra.mxu0 0.0
  %214 = vmatprep.subr.mxu0 0.0
  %215 = vmatpush1.msra.mxu0 0.0
  %216 = vmatprep.subr.mxu0 0.0
  %217 = vmatpush1.msra.mxu0 0.0
  %218 = vmatprep.subr.mxu0 0.0
  %219 = vmatpush1.msra.mxu0 0.0
  %220 = vmatprep.subr.mxu0 0.0
  %221 = vmatpush1.msra.mxu0 0.0
  %222 = vmatprep.subr.mxu0 0.0
  %223 = vmatpush1.msra.mxu0 0.0
  %224 = vmatprep.subr.mxu0 0.0
  %225 = vmatpush1.msra.mxu0 0.0
  %226 = vmatprep.subr.mxu0 0.0
  %227 = vmatpush1.msra.mxu0 0.0
  %228 = vmatprep.subr.mxu0 0.0
  %229 = vmatpush1.msra.mxu0 0.0
  %230 = vmatprep.subr.mxu0 0.0
  %231 = vmatpush1.msra.mxu0 0.0
  %232 = vmatprep.subr.mxu0 0.0
  %233 = vmatpush1.msra.mxu0 0.0
  %234 = vmatprep.subr.mxu0 0.0
  %235 = vmatpush1.msra.mxu0 0.0
  %236 = vmatprep.subr.mxu0 0.0
  %237 = vmatpush1.msra.mxu0 0.0
  %238 = vmatprep.subr.mxu0 0.0
  %239 = vmatpush1.msra.mxu0 0.0
  %240 = vmatprep.subr.mxu0 0.0
  %241 = vmatpush1.msra.mxu0 0.0
  %242 = vmatprep.subr.mxu0 0.0
  %243 = vmatpush1.msra.mxu0 0.0
  %244 = vmatprep.subr.mxu0 0.0
  %245 = vmatpush1.msra.mxu0 0.0
  %246 = vmatprep.subr.mxu0 0.0
  %247 = vmatpush1.msra.mxu0 0.0
  %248 = vmatprep.subr.mxu0 0.0
  %249 = vmatpush1.msra.mxu0 0.0
  %250 = vmatprep.subr.mxu0 0.0
  %251 = vmatpush1.msra.mxu0 0.0
  %252 = vmatprep.subr.mxu0 0.0
  %253 = vmatpush1.msra.mxu0 0.0
  %254 = vmatprep.subr.mxu0 0.0
  %255 = vmatpush1.msra.mxu0 0.0
  %256 = vmatprep.subr.mxu0 0.0
  %257 = vmatpush1.msra.mxu0 0.0
  %258 = vmatprep.subr.mxu0 0.0
  %259 = vmatpush1.msra.mxu0 0.0
  %260 = vmatprep.subr.mxu0 0.0
  %261 = vmatpush1.msra.mxu0 0.0
  %262 = vmatprep.subr.mxu0 0.0
  %263 = vmatpush1.msra.mxu0 0.0
  %264 = vmatprep.subr.mxu0 0.0
  %265 = vmatpush1.msra.mxu0 0.0
  %266 = vmatprep.mubr.f32.mxu0 0.0
  %267 = vmatmul.mubr.f32.gmra.mrb[0].mxu0 %v197
  %v268 = vpop.f32.mrb[0].mxu0
  %v269 = vadd.f32 %v194, %v268
  %v270 = vpop.f32.mrb[0].mxu0
  %271 = vmatprep.mubr.f32.mxu0 0.0
  %272 = vmatmul.mubr.f32.gmra.mrb[0].mxu0 %v200
  %v273 = vpop.f32.mrb[0].mxu0
  %v274 = vadd.f32 %v194, %v273
  %v275 = vpop.f32.mrb[0].mxu0
  %276 = vdwg.mxu0
  %v277 = vmax.f32 %v269, 0.0
  %v278 = vmax.f32 %v274, 0.0
  %v279 = vld [vmem:[%s8] sm:$0xff]
  %v280 = vld [vmem:[%s8 + $0x8] sm:$0xff]
  %v281 = vld [vmem:[%s8 + $0x10] sm:$0xff]
  %v282 = vld [vmem:[%s8 + $0x18] sm:$0xff]
  %v283 = vld [vmem:[%s8 + $0x20] sm:$0xff]
  %v284 = vld [vmem:[%s8 + $0x28] sm:$0xff]
  %v285 = vld [vmem:[%s8 + $0x30] sm:$0xff]
  %v286 = vld [vmem:[%s8 + $0x38] sm:$0xff]
  %v287 = vld [vmem:[%s9] sm:$0x1]
  %v289 = vlaneseq
  %v290 = vshrl.u32 %v289, 7
  %v291 = vsub.s32 0, %v290
  %v292 = vrot.slane %v287, %v291
  %vm294 = vcmask 523264
  %v296 = vsel %vm294, %v277, 0
  %v299 = vsel %vm294, %v278, 0
  %301 = vmatprep.subr.mxu0 0.0
  %302 = vmatpush1.msra.mxu0 %v279
  %303 = vmatprep.subr.mxu0 0.0
  %304 = vmatpush1.msra.mxu0 %v280
  %305 = vmatprep.subr.mxu0 0.0
  %306 = vmatpush1.msra.mxu0 %v281
  %307 = vmatprep.subr.mxu0 0.0
  %308 = vmatpush1.msra.mxu0 %v282
  %309 = vmatprep.subr.mxu0 0.0
  %310 = vmatpush1.msra.mxu0 %v283
  %311 = vmatprep.subr.mxu0 0.0
  %312 = vmatpush1.msra.mxu0 %v284
  %313 = vmatprep.subr.mxu0 0.0
  %314 = vmatpush1.msra.mxu0 %v285
  %315 = vmatprep.subr.mxu0 0.0
  %316 = vmatpush1.msra.mxu0 %v286
  %317 = vmatprep.subr.mxu0 0.0
  %318 = vmatpush1.msra.mxu0 0.0
  %319 = vmatprep.subr.mxu0 0.0
  %320 = vmatpush1.msra.mxu0 0.0
  %321 = vmatprep.subr.mxu0 0.0
  %322 = vmatpush1.msra.mxu0 0.0
  %323 = vmatprep.subr.mxu0 0.0
  %324 = vmatpush1.msra.mxu0 0.0
  %325 = vmatprep.subr.mxu0 0.0
  %326 = vmatpush1.msra.mxu0 0.0
  %327 = vmatprep.subr.mxu0 0.0
  %328 = vmatpush1.msra.mxu0 0.0
  %329 = vmatprep.subr.mxu0 0.0
  %330 = vmatpush1.msra.mxu0 0.0
  %331 = vmatprep.subr.mxu0 0.0
  %332 = vmatpush1.msra.mxu0 0.0
  %333 = vmatprep.subr.mxu0 0.0
  %334 = vmatpush1.msra.mxu0 0.0
  %335 = vmatprep.subr.mxu0 0.0
  %336 = vmatpush1.msra.mxu0 0.0
  %337 = vmatprep.subr.mxu0 0.0
  %338 = vmatpush1.msra.mxu0 0.0
  %339 = vmatprep.subr.mxu0 0.0
  %340 = vmatpush1.msra.mxu0 0.0
  %341 = vmatprep.subr.mxu0 0.0
  %342 = vmatpush1.msra.mxu0 0.0
  %343 = vmatprep.subr.mxu0 0.0
  %344 = vmatpush1.msra.mxu0 0.0
  %345 = vmatprep.subr.mxu0 0.0
  %346 = vmatpush1.msra.mxu0 0.0
  %347 = vmatprep.subr.mxu0 0.0
  %348 = vmatpush1.msra.mxu0 0.0
  %349 = vmatprep.subr.mxu0 0.0
  %350 = vmatpush1.msra.mxu0 0.0
  %351 = vmatprep.subr.mxu0 0.0
  %352 = vmatpush1.msra.mxu0 0.0
  %353 = vmatprep.subr.mxu0 0.0
  %354 = vmatpush1.msra.mxu0 0.0
  %355 = vmatprep.subr.mxu0 0.0
  %356 = vmatpush1.msra.mxu0 0.0
  %357 = vmatprep.subr.mxu0 0.0
  %358 = vmatpush1.msra.mxu0 0.0
  %359 = vmatprep.subr.mxu0 0.0
  %360 = vmatpush1.msra.mxu0 0.0
  %361 = vmatprep.subr.mxu0 0.0
  %362 = vmatpush1.msra.mxu0 0.0
  %363 = vmatprep.subr.mxu0 0.0
  %364 = vmatpush1.msra.mxu0 0.0
  %365 = vmatprep.mubr.f32.mxu0 0.0
  %366 = vmatmul.mubr.f32.gmra.mrb[0].mxu0 %v296
  %v367 = vpop.f32.mrb[0].mxu0
  %v368 = vadd.f32 %v292, %v367
  %v369 = vpop.f32.mrb[0].mxu0
  %370 = vmatprep.mubr.f32.mxu0 0.0
  %371 = vmatmul.mubr.f32.gmra.mrb[0].mxu0 %v299
  %v372 = vpop.f32.mrb[0].mxu0
  %v373 = vadd.f32 %v292, %v372
  %v374 = vpop.f32.mrb[0].mxu0
  %375 = vdwg.mxu0
  %v376 = vadd.f32 %v368, %v183
  %v377 = vadd.f32 %v373, %v184
  %v378 = vld [vmem:[%s10] sm:$0x1]
  %v379 = vld [vmem:[%s11] sm:$0x1]
  %v380 = vsel %vm54, %v376, 0.0
  %381 = vadd.xlane.f32.xlu0 %v380
  %v382 = vpop.xlane.xlu0 %381
  %v383 = vsel %vm54, %v377, 0.0
  %384 = vadd.xlane.f32.xlu0 %v383
  %v385 = vpop.xlane.xlu0 %384
  %v386 = vmul.f32 %v382, %v148
  %v387 = vmul.f32 %v385, %v148
  %v388 = vsub.f32 %v376, %v386
  %v389 = vsub.f32 %v377, %v387
  %v390 = vmul.f32 %v388, %v388
  %v391 = vmul.f32 %v389, %v389
  %v392 = vsel %vm54, %v390, 0.0
  %393 = vadd.xlane.f32.xlu0 %v392
  %v394 = vpop.xlane.xlu0 %393
  %v395 = vsel %vm54, %v391, 0.0
  %396 = vadd.xlane.f32.xlu0 %v395
  %v397 = vpop.xlane.xlu0 %396
  %v398 = vmul.f32 %v394, %v148
  %v399 = vmul.f32 %v397, %v148
  %v400 = vadd.f32 %v398, 1e-05
  %v401 = vadd.f32 %v399, 1e-05
  %v402 = vrsqrt.pop %v400
  %v403 = vrsqrt.pop %v401
  %v404 = vmul.f32 %v388, %v402
  %v405 = vmul.f32 %v389, %v403
  %v407 = vlaneseq
  %v408 = vshrl.u32 %v407, 7
  %v409 = vsub.s32 0, %v408
  %v410 = vrot.slane %v378, %v409
  %v412 = vmul.f32 %v404, %v410
  %v413 = vmul.f32 %v405, %v410
  %v415 = vlaneseq
  %v416 = vshrl.u32 %v415, 7
  %v417 = vsub.s32 0, %v416
  %v418 = vrot.slane %v379, %v417
  %v420 = vadd.f32 %v412, %v418
  %v421 = vadd.f32 %v413, %v418
  %422 = vst.msk [vmem:[%s12] sm:$0xff] %vm54, %v420
  %423 = vst.msk [vmem:[%s12 + $0x8] sm:$0xff] %vm54, %v421
  // Predicated region
  $region50: #{transformer_forward.23} parent=0 // pred_check
    _
  $region51: #{transformer_forward.23} parent=0 // pred_check_branch
    %425 = sbr.rel (0) target = $region53
  $region52: #{transformer_forward.23} parent=0 // pred_region
    _
  $region53: #{transformer_forward.23} parent=0 // pred_fallthru
    _
  // Predicated region
  $region54: #{transformer_forward.23} parent=0 // pred_check
    _
  $region55: #{transformer_forward.23} parent=0 // pred_check_branch
    %427 = sbr.rel (0) target = $region57
  $region56: #{transformer_forward.23} parent=0 // pred_region
    _
  $region57: #{transformer_forward.23} parent=0 // pred_fallthru
    _

// kernel: transformer_forward.41
$region0: #{transformer_forward.41}
  #allocation0 [shape = 'u32[]', space=smem, size = 0x4, offset = 0x4, fixed_abs, tag = 'smem constant byte address 0x4 - core index']
  #allocation1 [shape = 'u32[144,128]{1,0:T(1,128)}', space=vmem, size = 0x12000, scoped, tag = 'internal scratch']
  %s0 = inlined_call_operand.vmem [shape: f32[16,32], index: 0, kind: input, shape index: {}]
  %s1 = inlined_call_operand.vmem [shape: f32[32,128], index: 1, kind: input, shape index: {}]
  %s2 = inlined_call_operand.vmem [shape: f32[1,128], index: 2, kind: input, shape index: {}]
  %s3 = inlined_call_operand.vmem [shape: f32[16,128], index: 3, kind: output, shape index: {}]
  %s4 = sld [smem:[#allocation0]]
  $region22: #{transformer_forward.41} parent=0
    _
  %s6 = ssub.s32 1, %s4
  %s7 = scalar_select 0, %s6, %s4
  // Predicated region
  $region2: #{transformer_forward.41} parent=0 // pred_check
    _
  $region3: #{transformer_forward.41} parent=0 // pred_check_branch
    %9 = sbr.rel (0) target = $region5
  $region4: #{transformer_forward.41} parent=0 // pred_region
    _
  $region5: #{transformer_forward.41} parent=0 // pred_fallthru
    _
  // Predicated region
  $region6: #{transformer_forward.41} parent=0 // pred_check
    _
  $region7: #{transformer_forward.41} parent=0 // pred_check_branch
    %11 = sbr.rel (0) target = $region9
  $region8: #{transformer_forward.41} parent=0 // pred_region
    _
  $region9: #{transformer_forward.41} parent=0 // pred_fallthru
    _
  // Predicated region
  $region10: #{transformer_forward.41} parent=0 // pred_check
    _
  $region11: #{transformer_forward.41} parent=0 // pred_check_branch
    %13 = sbr.rel (0) target = $region13
  $region12: #{transformer_forward.41} parent=0 // pred_region
    _
  $region13: #{transformer_forward.41} parent=0 // pred_fallthru
    _
  %v14 = vld [vmem:[%s0] sm:$0xff]
  %v15 = vld [vmem:[%s0 + $0x8] sm:$0xff]
  %v16 = vld [vmem:[%s1] sm:$0xff]
  %v17 = vld [vmem:[%s1 + $0x8] sm:$0xff]
  %v18 = vld [vmem:[%s1 + $0x10] sm:$0xff]
  %v19 = vld [vmem:[%s1 + $0x18] sm:$0xff]
  %v20 = vld [vmem:[%s2] sm:$0x1]
  %v22 = vlaneseq
  %v23 = vshrl.u32 %v22, 7
  %v24 = vsub.s32 0, %v23
  %v25 = vrot.slane %v20, %v24
  %vm27 = vcmask 261120
  %v29 = vsel %vm27, %v14, 0
  %v32 = vsel %vm27, %v15, 0
  %34 = vmatprep.subr.mxu0 0.0
  %35 = vmatpush1.msra.mxu0 %v16
  %36 = vmatprep.subr.mxu0 0.0
  %37 = vmatpush1.msra.mxu0 %v17
  %38 = vmatprep.subr.mxu0 0.0
  %39 = vmatpush1.msra.mxu0 %v18
  %40 = vmatprep.subr.mxu0 0.0
  %41 = vmatpush1.msra.mxu0 %v19
  %42 = vmatprep.subr.mxu0 0.0
  %43 = vmatpush1.msra.mxu0 0.0
  %44 = vmatprep.subr.mxu0 0.0
  %45 = vmatpush1.msra.mxu0 0.0
  %46 = vmatprep.subr.mxu0 0.0
  %47 = vmatpush1.msra.mxu0 0.0
  %48 = vmatprep.subr.mxu0 0.0
  %49 = vmatpush1.msra.mxu0 0.0
  %50 = vmatprep.subr.mxu0 0.0
  %51 = vmatpush1.msra.mxu0 0.0
  %52 = vmatprep.subr.mxu0 0.0
  %53 = vmatpush1.msra.mxu0 0.0
  %54 = vmatprep.subr.mxu0 0.0
  %55 = vmatpush1.msra.mxu0 0.0
  %56 = vmatprep.subr.mxu0 0.0
  %57 = vmatpush1.msra.mxu0 0.0
  %58 = vmatprep.subr.mxu0 0.0
  %59 = vmatpush1.msra.mxu0 0.0
  %60 = vmatprep.subr.mxu0 0.0
  %61 = vmatpush1.msra.mxu0 0.0
  %62 = vmatprep.subr.mxu0 0.0
  %63 = vmatpush1.msra.mxu0 0.0
  %64 = vmatprep.subr.mxu0 0.0
  %65 = vmatpush1.msra.mxu0 0.0
  %66 = vmatprep.subr.mxu0 0.0
  %67 = vmatpush1.msra.mxu0 0.0
  %68 = vmatprep.subr.mxu0 0.0
  %69 = vmatpush1.msra.mxu0 0.0
  %70 = vmatprep.subr.mxu0 0.0
  %71 = vmatpush1.msra.mxu0 0.0
  %72 = vmatprep.subr.mxu0 0.0
  %73 = vmatpush1.msra.mxu0 0.0
  %74 = vmatprep.subr.mxu0 0.0
  %75 = vmatpush1.msra.mxu0 0.0
  %76 = vmatprep.subr.mxu0 0.0
  %77 = vmatpush1.msra.mxu0 0.0
  %78 = vmatprep.subr.mxu0 0.0
  %79 = vmatpush1.msra.mxu0 0.0
  %80 = vmatprep.subr.mxu0 0.0
  %81 = vmatpush1.msra.mxu0 0.0
  %82 = vmatprep.subr.mxu0 0.0
  %83 = vmatpush1.msra.mxu0 0.0
  %84 = vmatprep.subr.mxu0 0.0
  %85 = vmatpush1.msra.mxu0 0.0
  %86 = vmatprep.subr.mxu0 0.0
  %87 = vmatpush1.msra.mxu0 0.0
  %88 = vmatprep.subr.mxu0 0.0
  %89 = vmatpush1.msra.mxu0 0.0
  %90 = vmatprep.subr.mxu0 0.0
  %91 = vmatpush1.msra.mxu0 0.0
  %92 = vmatprep.subr.mxu0 0.0
  %93 = vmatpush1.msra.mxu0 0.0
  %94 = vmatprep.subr.mxu0 0.0
  %95 = vmatpush1.msra.mxu0 0.0
  %96 = vmatprep.subr.mxu0 0.0
  %97 = vmatpush1.msra.mxu0 0.0
  %98 = vmatprep.mubr.f32.mxu0 0.0
  %99 = vmatmul.mubr.f32.gmra.mrb[0].mxu0 %v29
  %v100 = vpop.f32.mrb[0].mxu0
  %v101 = vadd.f32 %v25, %v100
  %v102 = vpop.f32.mrb[0].mxu0
  %103 = vmatprep.mubr.f32.mxu0 0.0
  %104 = vmatmul.mubr.f32.gmra.mrb[0].mxu0 %v32
  %v105 = vpop.f32.mrb[0].mxu0
  %v106 = vadd.f32 %v25, %v105
  %v107 = vpop.f32.mrb[0].mxu0
  %108 = vdwg.mxu0
  %109 = vst [vmem:[%s3] sm:$0xff] %v101
  %110 = vst [vmem:[%s3 + $0x8] sm:$0xff] %v106
  // Predicated region
  $region14: #{transformer_forward.41} parent=0 // pred_check
    _
  $region15: #{transformer_forward.41} parent=0 // pred_check_branch
    %112 = sbr.rel (0) target = $region17
  $region16: #{transformer_forward.41} parent=0 // pred_region
    _
  $region17: #{transformer_forward.41} parent=0 // pred_fallthru
    _
  // Predicated region
  $region18: #{transformer_forward.41} parent=0 // pred_check
    _
  $region19: #{transformer_forward.41} parent=0 // pred_check_branch
    %114 = sbr.rel (0) target = $region21
  $region20: #{transformer_forward.41} parent=0 // pred_region
    _
  $region21: #{transformer_forward.41} parent=0 // pred_fallthru
    _

// kernel: transformer_forward.22
$region0: #{transformer_forward.22}
  #allocation0 [shape = 'u32[]', space=smem, size = 0x4, offset = 0x4, fixed_abs, tag = 'smem constant byte address 0x4 - core index']
  #allocation1 [shape = 'u32[144,128]{1,0:T(1,128)}', space=vmem, size = 0x12000, scoped, tag = 'internal scratch']
  %s0 = inlined_call_operand.vmem [shape: f32[2,4,8,8], index: 0, kind: input, shape index: {}]
  %s1 = inlined_call_operand.vmem [shape: f32[2,4,8,8], index: 1, kind: input, shape index: {}]
  %s2 = inlined_call_operand.vmem [shape: f32[2,4,8,8], index: 2, kind: input, shape index: {}]
  %s3 = inlined_call_operand.vmem [shape: f32[2,1,8], index: 3, kind: input, shape index: {}]
  %s4 = inlined_call_operand.vmem [shape: f32[2,4,8,8], index: 4, kind: output, shape index: {}]
  %s5 = sld [smem:[#allocation0]]
  $region49: #{transformer_forward.22} parent=0
    _
  %s7 = ssub.s32 1, %s5
  %s8 = scalar_select 0, %s7, %s5
  loop: start=0, step=1, limit=4
  $region2: #{transformer_forward.22} parent=0 // loop_pre_header
    _
  $region3: #{transformer_forward.22} parent=0 // loop_header
    %s10 = sphi 0, %s14
    %p11 = scmp.ge.s32.totalorder %s10, 4
    %s20 = sphi 0, %s22
    %s23 = sphi 0, %s20
    %s24 = sphi 0, %s23
    %s40 = sphi 0, %s24
    %s46 = sphi 0, %s48
    %s49 = sphi 0, %s46
    %s50 = sphi 0, %s49
    %s66 = sphi 0, %s50
    %s72 = sphi 0, %s74
    %s75 = sphi 0, %s72
    %s76 = sphi 0, %s75
    %s92 = sphi 0, %s76
    %s98 = sphi 0, %s100
    %s101 = sphi 0, %s98
    %s102 = sphi 0, %s101
    %s118 = sphi 0, %s102
    %s124 = sphi 0, %s126
    %s127 = sphi 0, %s124
    %s128 = sphi 0, %s127
    %s144 = sphi 0, %s128
  $region4: #{transformer_forward.22} parent=0 // loop_header_branch
    %13 = sbr.rel (%p11) target = $region8
  $region5: #{transformer_forward.22} parent=0 // loop_body
    %s15 = ssub.s32 %s10, 1
    %s16 = ssub.s32 %s10, 2
    %s17 = sadd.s32 %s10, 1
    %s18 = ssub.s32 %s10, %s17
    %p19 = scmp.eq.s32.totalorder %s18, 0
    %s21 = sadd.s32 %s20, 1
    %s22 = scalar_select %p19, %s20, %s21
    %p25 = pneg %p19
    %p26 = scmp.eq.s32.totalorder %s10, 1
    %p27 = por %p25, %p26
    %p28 = scmp.ne.s32.totalorder %s20, %s23
    %p29 = scmp.eq.s32.totalorder %s10, 0
    %p30 = por %p28, %p29
    %p31 = scmp.ne.s32.totalorder %s20, %s23
    %p32 = scmp.eq.s32.totalorder %s15, 1
    %p33 = por %p31, %p32
    %p34 = scmp.ne.s32.totalorder %s23, %s24
    %p35 = scmp.eq.s32.totalorder %s15, 0
    %p36 = por %p34, %p35
    %p37 = scmp.ne.s32.totalorder %s23, %s24
    %p38 = scmp.eq.s32.totalorder %s16, 1
    %p39 = por %p37, %p38
    %p41 = scmp.ne.s32.totalorder %s24, %s40
    %p42 = scmp.eq.s32.totalorder %s16, 0
    %p43 = por %p41, %p42
    %s44 = ssub.s32 %s10, %s17
    %p45 = scmp.eq.s32.totalorder %s44, 0
    %s47 = sadd.s32 %s46, 1
    %s48 = scalar_select %p45, %s46, %s47
    %p51 = pneg %p45
    %p52 = scmp.eq.s32.totalorder %s10, 1
    %p53 = por %p51, %p52
    %p54 = scmp.ne.s32.totalorder %s46, %s49
    %p55 = scmp.eq.s32.totalorder %s10, 0
    %p56 = por %p54, %p55
    %p57 = scmp.ne.s32.totalorder %s46, %s49
    %p58 = scmp.eq.s32.totalorder %s15, 1
    %p59 = por %p57, %p58
    %p60 = scmp.ne.s32.totalorder %s49, %s50
    %p61 = scmp.eq.s32.totalorder %s15, 0
    %p62 = por %p60, %p61
    %p63 = scmp.ne.s32.totalorder %s49, %s50
    %p64 = scmp.eq.s32.totalorder %s16, 1
    %p65 = por %p63, %p64
    %p67 = scmp.ne.s32.totalorder %s50, %s66
    %p68 = scmp.eq.s32.totalorder %s16, 0
    %p69 = por %p67, %p68
    %s70 = ssub.s32 %s10, %s17
    %p71 = scmp.eq.s32.totalorder %s70, 0
    %s73 = sadd.s32 %s72, 1
    %s74 = scalar_select %p71, %s72, %s73
    %p77 = pneg %p71
    %p78 = scmp.eq.s32.totalorder %s10, 1
    %p79 = por %p77, %p78
    %p80 = scmp.ne.s32.totalorder %s72, %s75
    %p81 = scmp.eq.s32.totalorder %s10, 0
    %p82 = por %p80, %p81
    %p83 = scmp.ne.s32.totalorder %s72, %s75
    %p84 = scmp.eq.s32.totalorder %s15, 1
    %p85 = por %p83, %p84
    %p86 = scmp.ne.s32.totalorder %s75, %s76
    %p87 = scmp.eq.s32.totalorder %s15, 0
    %p88 = por %p86, %p87
    %p89 = scmp.ne.s32.totalorder %s75, %s76
    %p90 = scmp.eq.s32.totalorder %s16, 1
    %p91 = por %p89, %p90
    %p93 = scmp.ne.s32.totalorder %s76, %s92
    %p94 = scmp.eq.s32.totalorder %s16, 0
    %p95 = por %p93, %p94
    %s96 = ssub.s32 %s10, %s17
    %p97 = scmp.eq.s32.totalorder %s96, 0
    %s99 = sadd.s32 %s98, 1
    %s100 = scalar_select %p97, %s98, %s99
    %p103 = pneg %p97
    %p104 = scmp.eq.s32.totalorder %s10, 1
    %p105 = por %p103, %p104
    %p106 = scmp.ne.s32.totalorder %s98, %s101
    %p107 = scmp.eq.s32.totalorder %s10, 0
    %p108 = por %p106, %p107
    %p109 = scmp.ne.s32.totalorder %s98, %s101
    %p110 = scmp.eq.s32.totalorder %s15, 1
    %p111 = por %p109, %p110
    %p112 = scmp.ne.s32.totalorder %s101, %s102
    %p113 = scmp.eq.s32.totalorder %s15, 0
    %p114 = por %p112, %p113
    %p115 = scmp.ne.s32.totalorder %s101, %s102
    %p116 = scmp.eq.s32.totalorder %s16, 1
    %p117 = por %p115, %p116
    %p119 = scmp.ne.s32.totalorder %s102, %s118
    %p120 = scmp.eq.s32.totalorder %s16, 0
    %p121 = por %p119, %p120
    %s122 = ssub.s32 %s10, %s17
    %p123 = scmp.eq.s32.totalorder %s122, 0
    %s125 = sadd.s32 %s124, 1
    %s126 = scalar_select %p123, %s124, %s125
    %p129 = pneg %p123
    %p130 = scmp.eq.s32.totalorder %s10, 1
    %p131 = por %p129, %p130
    %p132 = scmp.ne.s32.totalorder %s124, %s127
    %p133 = scmp.eq.s32.totalorder %s10, 0
    %p134 = por %p132, %p133
    %p135 = scmp.ne.s32.totalorder %s124, %s127
    %p136 = scmp.eq.s32.totalorder %s15, 1
    %p137 = por %p135, %p136
    %p138 = scmp.ne.s32.totalorder %s127, %s128
    %p139 = scmp.eq.s32.totalorder %s15, 0
    %p140 = por %p138, %p139
    %p141 = scmp.ne.s32.totalorder %s127, %s128
    %p142 = scmp.eq.s32.totalorder %s16, 1
    %p143 = por %p141, %p142
    %p145 = scmp.ne.s32.totalorder %s128, %s144
    %p146 = scmp.eq.s32.totalorder %s16, 0
    %p147 = por %p145, %p146
    %p148 = scmp.le.s32.totalorder 1, %s10
    %p149 = scmp.lt.s32.totalorder %s10, 3
    %p150 = pnand %p148, %p149
    %p151 = pneg %p150
    // Predicated region
    $region9: #{transformer_forward.22} parent=5 // pred_check
      _
    $region10: #{transformer_forward.22} parent=5 // pred_check_branch
      %153 = sbr.rel (%p150) target = $region12
    $region11: #{transformer_forward.22} parent=5 // pred_region
      %s154 = ssub.s32 %s10, 1
    $region12: #{transformer_forward.22} parent=5 // pred_fallthru
      _
    %p155 = scmp.lt.s32.totalorder %s10, 2
    // Predicated region
    $region13: #{transformer_forward.22} parent=5 // pred_check
      %p156 = pneg %p155
    $region14: #{transformer_forward.22} parent=5 // pred_check_branch
      %158 = sbr.rel (%p156) target = $region16
    $region15: #{transformer_forward.22} parent=5 // pred_region
      // Predicated region
      $region17: #{transformer_forward.22} parent=15 // pred_check
        %p159 = pneg %p30
      $region18: #{transformer_forward.22} parent=15 // pred_check_branch
        %161 = sbr.rel (%p159) target = $region20
      $region19: #{transformer_forward.22} parent=15 // pred_region
        %p162 = scmp.lt.s32.totalorder %s10, 1
        %s163 = scalar_select %p162, %s10, 1
        %s164 = smul.addr %s163, 4
        %s165 = smul.addr %s164, 8
        %s166 = scalar_lea.vmem %s0, %s165
      $region20: #{transformer_forward.22} parent=15 // pred_fallthru
        _
      // Predicated region
      $region21: #{transformer_forward.22} parent=15 // pred_check
        %p167 = pneg %p56
      $region22: #{transformer_forward.22} parent=15 // pred_check_branch
        %169 = sbr.rel (%p167) target = $region24
      $region23: #{transformer_forward.22} parent=15 // pred_region
        %p170 = scmp.lt.s32.totalorder %s10, 1
        %s171 = scalar_select %p170, %s10, 1
        %s172 = smul.addr %s171, 4
        %s173 = smul.addr %s172, 8
        %s174 = scalar_lea.vmem %s1, %s173
      $region24: #{transformer_forward.22} parent=15 // pred_fallthru
        _
      // Predicated region
      $region25: #{transformer_forward.22} parent=15 // pred_check
        %p175 = pneg %p82
      $region26: #{transformer_forward.22} parent=15 // pred_check_branch
        %177 = sbr.rel (%p175) target = $region28
      $region27: #{transformer_forward.22} parent=15 // pred_region
        %p178 = scmp.lt.s32.totalorder %s10, 1
        %s179 = scalar_select %p178, %s10, 1
        %s180 = smul.addr %s179, 4
        %s181 = smul.addr %s180, 8
        %s182 = scalar_lea.vmem %s2, %s181
      $region28: #{transformer_forward.22} parent=15 // pred_fallthru
        _
      // Predicated region
      $region29: #{transformer_forward.22} parent=15 // pred_check
        %p183 = pneg %p108
      $region30: #{transformer_forward.22} parent=15 // pred_check_branch
        %185 = sbr.rel (%p183) target = $region32
      $region31: #{transformer_forward.22} parent=15 // pred_region
        %p186 = scmp.lt.s32.totalorder %s10, 1
        %s187 = scalar_select %p186, %s10, 1
        %s188 = scalar_lea.vmem %s3, %s187
      $region32: #{transformer_forward.22} parent=15 // pred_fallthru
        _
    $region16: #{transformer_forward.22} parent=5 // pred_fallthru
      _
    %p189 = scmp.le.s32.totalorder 1, %s10
    %p190 = scmp.lt.s32.totalorder %s10, 3
    %p191 = pnand %p189, %p190
    %p192 = pneg %p191
    // Predicated region
    $region33: #{transformer_forward.22} parent=5 // pred_check
      _
    $region34: #{transformer_forward.22} parent=5 // pred_check_branch
      %194 = sbr.rel (%p191) target = $region36
    $region35: #{transformer_forward.22} parent=5 // pred_region
      %s195 = ssub.s32 %s10, 1
      %p196 = scmp.lt.s32.totalorder %s15, 1
      %s197 = scalar_select %p196, %s15, 1
      %s198 = smul.addr %s197, 4
      %s199 = smul.addr %s198, 8
      %s200 = scalar_lea.vmem %s0, %s199
      %p201 = pneg %p36
      %p202 = pneg %p33
      %p203 = scmp.lt.s32.totalorder %s15, 1
      %s204 = scalar_select %p203, %s15, 1
      %s205 = smul.addr %s204, 4
      %s206 = smul.addr %s205, 8
      %s207 = scalar_lea.vmem %s1, %s206
      %p208 = pneg %p62
      %p209 = pneg %p59
      %p210 = scmp.lt.s32.totalorder %s15, 1
      %s211 = scalar_select %p210, %s15, 1
      %s212 = smul.addr %s211, 4
      %s213 = smul.addr %s212, 8
      %s214 = scalar_lea.vmem %s2, %s213
      %p215 = pneg %p88
      %p216 = pneg %p85
      %p217 = scmp.lt.s32.totalorder %s15, 1
      %s218 = scalar_select %p217, %s15, 1
      %s219 = scalar_lea.vmem %s3, %s218
      %p220 = pneg %p114
      %p221 = pneg %p111
      %p222 = pneg %p140
      %p223 = pneg %p137
      %p224 = scmp.lt.s32.totalorder %s15, 1
      %s225 = scalar_select %p224, %s15, 1
      %s226 = smul.addr %s225, 4
      %s227 = smul.addr %s226, 8
      %s228 = scalar_lea.vmem %s4, %s227
      %p229 = scmp.lt.s32.totalorder %s15, 1
      %s230 = scalar_select %p229, %s15, 1
      %s231 = smul.addr %s230, 4
      %s232 = smul.addr %s231, 8
      %s233 = scalar_lea.vmem %s0, %s232
      %p234 = scmp.lt.s32.totalorder %s15, 1
      %s235 = scalar_select %p234, %s15, 1
      %s236 = smul.addr %s235, 4
      %s237 = smul.addr %s236, 8
      %s238 = scalar_lea.vmem %s1, %s237
      %p239 = scmp.lt.s32.totalorder %s15, 1
      %s240 = scalar_select %p239, %s15, 1
      %s241 = smul.addr %s240, 4
      %s242 = smul.addr %s241, 8
      %s243 = scalar_lea.vmem %s2, %s242
      %p244 = scmp.lt.s32.totalorder %s15, 1
      %s245 = scalar_select %p244, %s15, 1
      %s246 = scalar_lea.vmem %s3, %s245
      %p247 = scmp.lt.s32.totalorder %s15, 1
      %s248 = scalar_select %p247, %s15, 1
      %s249 = smul.addr %s248, 4
      %s250 = smul.addr %s249, 8
      %s251 = scalar_lea.vmem %s4, %s250
      %v252 = vld [vmem:[%s233] sm:$0xff]
      %v253 = vld [vmem:[%s233 + $0x8] sm:$0xff]
      %v254 = vld [vmem:[%s233 + $0x10] sm:$0xff]
      %v255 = vld [vmem:[%s233 + $0x18] sm:$0xff]
      %v256 = vmul.f32 %v252, 0.17677669
      %v257 = vmul.f32 %v253, 0.17677669
      %v258 = vmul.f32 %v254, 0.17677669
      %v259 = vmul.f32 %v255, 0.17677669
      %v260 = vld [vmem:[%s238] sm:$0xff]
      %v261 = vld [vmem:[%s238 + $0x8] sm:$0xff]
      %v262 = vld [vmem:[%s238 + $0x10] sm:$0xff]
      %v263 = vld [vmem:[%s238 + $0x18] sm:$0xff]
      %v264 = vld [vmem:[%s243] sm:$0xff]
      %v265 = vld [vmem:[%s243 + $0x8] sm:$0xff]
      %v266 = vld [vmem:[%s243 + $0x10] sm:$0xff]
      %v267 = vld [vmem:[%s243 + $0x18] sm:$0xff]
      %v268 = vld [vmem:[%s246] sm:$0x1]
      %vm269 = vcmask 64512
      %v271 = vsel %vm269, %v256, 0
      %v274 = vsel %vm269, %v260, 0
      %276 = vmatprep.subr.mxu0 0.0
      %277 = vmatpush1.xpose.msra.mxu0 %v274
      %278 = vmatprep.subr.mxu0 0.0
      %279 = vmatpush1.xpose.msra.mxu0 0.0
      %280 = vmatprep.subr.mxu0 0.0
      %281 = vmatpush1.xpose.msra.mxu0 0.0
      %282 = vmatprep.subr.mxu0 0.0
      %283 = vmatpush1.xpose.msra.mxu0 0.0
      %284 = vmatprep.subr.mxu0 0.0
      %285 = vmatpush1.xpose.msra.mxu0 0.0
      %286 = vmatprep.subr.mxu0 0.0
      %287 = vmatpush1.xpose.msra.mxu0 0.0
      %288 = vmatprep.subr.mxu0 0.0
      %289 = vmatpush1.xpose.msra.mxu0 0.0
      %290 = vmatprep.subr.mxu0 0.0
      %291 = vmatpush1.xpose.msra.mxu0 0.0
      %292 = vmatprep.subr.mxu0 0.0
      %293 = vmatpush1.xpose.msra.mxu0 0.0
      %294 = vmatprep.subr.mxu0 0.0
      %295 = vmatpush1.xpose.msra.mxu0 0.0
      %296 = vmatprep.subr.mxu0 0.0
      %297 = vmatpush1.xpose.msra.mxu0 0.0
      %298 = vmatprep.subr.mxu0 0.0
      %299 = vmatpush1.xpose.msra.mxu0 0.0
      %300 = vmatprep.subr.mxu0 0.0
      %301 = vmatpush1.xpose.msra.mxu0 0.0
      %302 = vmatprep.subr.mxu0 0.0
      %303 = vmatpush1.xpose.msra.mxu0 0.0
      %304 = vmatprep.subr.mxu0 0.0
      %305 = vmatpush1.xpose.msra.mxu0 0.0
      %306 = vmatprep.subr.mxu0 0.0
      %307 = vmatpush1.xpose.msra.mxu0 0.0
      %308 = vmatprep.subr.mxu0 0.0
      %309 = vmatpush1.xpose.msra.mxu0 0.0
      %310 = vmatprep.subr.mxu0 0.0
      %311 = vmatpush1.xpose.msra.mxu0 0.0
      %312 = vmatprep.subr.mxu0 0.0
      %313 = vmatpush1.xpose.msra.mxu0 0.0
      %314 = vmatprep.subr.mxu0 0.0
      %315 = vmatpush1.xpose.msra.mxu0 0.0
      %316 = vmatprep.subr.mxu0 0.0
      %317 = vmatpush1.xpose.msra.mxu0 0.0
      %318 = vmatprep.subr.mxu0 0.0
      %319 = vmatpush1.xpose.msra.mxu0 0.0
      %320 = vmatprep.subr.mxu0 0.0
      %321 = vmatpush1.xpose.msra.mxu0 0.0
      %322 = vmatprep.subr.mxu0 0.0
      %323 = vmatpush1.xpose.msra.mxu0 0.0
      %324 = vmatprep.subr.mxu0 0.0
      %325 = vmatpush1.xpose.msra.mxu0 0.0
      %326 = vmatprep.subr.mxu0 0.0
      %327 = vmatpush1.xpose.msra.mxu0 0.0
      %328 = vmatprep.subr.mxu0 0.0
      %329 = vmatpush1.xpose.msra.mxu0 0.0
      %330 = vmatprep.subr.mxu0 0.0
      %331 = vmatpush1.xpose.msra.mxu0 0.0
      %332 = vmatprep.subr.mxu0 0.0
      %333 = vmatpush1.xpose.msra.mxu0 0.0
      %334 = vmatprep.subr.mxu0 0.0
      %335 = vmatpush1.xpose.msra.mxu0 0.0
      %336 = vmatprep.subr.mxu0 0.0
      %337 = vmatpush1.xpose.msra.mxu0 0.0
      %338 = vmatprep.subr.mxu0 0.0
      %339 = vmatpush1.xpose.msra.mxu0 0.0
      %340 = vmatprep.mubr.f32.mxu0 0.0
      %341 = vmatmul.mubr.f32.gmra.mrb[0].mxu0 %v271
      %v342 = vpop.f32.mrb[0].mxu0
      %v343 = vadd.f32 0.0, %v342
      %v344 = vpop.f32.mrb[0].mxu0
      %345 = vdwg.mxu0
      %v347 = vsel %vm269, %v257, 0
      %v350 = vsel %vm269, %v261, 0
      %352 = vmatprep.subr.mxu0 0.0
      %353 = vmatpush1.xpose.msra.mxu0 %v350
      %354 = vmatprep.subr.mxu0 0.0
      %355 = vmatpush1.xpose.msra.mxu0 0.0
      %356 = vmatprep.subr.mxu0 0.0
      %357 = vmatpush1.xpose.msra.mxu0 0.0
      %358 = vmatprep.subr.mxu0 0.0
      %359 = vmatpush1.xpose.msra.mxu0 0.0
      %360 = vmatprep.subr.mxu0 0.0
      %361 = vmatpush1.xpose.msra.mxu0 0.0
      %362 = vmatprep.subr.mxu0 0.0
      %363 = vmatpush1.xpose.msra.mxu0 0.0
      %364 = vmatprep.subr.mxu0 0.0
      %365 = vmatpush1.xpose.msra.mxu0 0.0
      %366 = vmatprep.subr.mxu0 0.0
      %367 = vmatpush1.xpose.msra.mxu0 0.0
      %368 = vmatprep.subr.mxu0 0.0
      %369 = vmatpush1.xpose.msra.mxu0 0.0
      %370 = vmatprep.subr.mxu0 0.0
      %371 = vmatpush1.xpose.msra.mxu0 0.0
      %372 = vmatprep.subr.mxu0 0.0
      %373 = vmatpush1.xpose.msra.mxu0 0.0
      %374 = vmatprep.subr.mxu0 0.0
      %375 = vmatpush1.xpose.msra.mxu0 0.0
      %376 = vmatprep.subr.mxu0 0.0
      %377 = vmatpush1.xpose.msra.mxu0 0.0
      %378 = vmatprep.subr.mxu0 0.0
      %379 = vmatpush1.xpose.msra.mxu0 0.0
      %380 = vmatprep.subr.mxu0 0.0
      %381 = vmatpush1.xpose.msra.mxu0 0.0
      %382 = vmatprep.subr.mxu0 0.0
      %383 = vmatpush1.xpose.msra.mxu0 0.0
      %384 = vmatprep.subr.mxu0 0.0
      %385 = vmatpush1.xpose.msra.mxu0 0.0
      %386 = vmatprep.subr.mxu0 0.0
      %387 = vmatpush1.xpose.msra.mxu0 0.0
      %388 = vmatprep.subr.mxu0 0.0
      %389 = vmatpush1.xpose.msra.mxu0 0.0
      %390 = vmatprep.subr.mxu0 0.0
      %391 = vmatpush1.xpose.msra.mxu0 0.0
      %392 = vmatprep.subr.mxu0 0.0
      %393 = vmatpush1.xpose.msra.mxu0 0.0
      %394 = vmatprep.subr.mxu0 0.0
      %395 = vmatpush1.xpose.msra.mxu0 0.0
      %396 = vmatprep.subr.mxu0 0.0
      %397 = vmatpush1.xpose.msra.mxu0 0.0
      %398 = vmatprep.subr.mxu0 0.0
      %399 = vmatpush1.xpose.msra.mxu0 0.0
      %400 = vmatprep.subr.mxu0 0.0
      %401 = vmatpush1.xpose.msra.mxu0 0.0
      %402 = vmatprep.subr.mxu0 0.0
      %403 = vmatpush1.xpose.msra.mxu0 0.0
      %404 = vmatprep.subr.mxu0 0.0
      %405 = vmatpush1.xpose.msra.mxu0 0.0
      %406 = vmatprep.subr.mxu0 0.0
      %407 = vmatpush1.xpose.msra.mxu0 0.0
      %408 = vmatprep.subr.mxu0 0.0
      %409 = vmatpush1.xpose.msra.mxu0 0.0
      %410 = vmatprep.subr.mxu0 0.0
      %411 = vmatpush1.xpose.msra.mxu0 0.0
      %412 = vmatprep.subr.mxu0 0.0
      %413 = vmatpush1.xpose.msra.mxu0 0.0
      %414 = vmatprep.subr.mxu0 0.0
      %415 = vmatpush1.xpose.msra.mxu0 0.0
      %416 = vmatprep.mubr.f32.mxu0 0.0
      %417 = vmatmul.mubr.f32.gmra.mrb[0].mxu0 %v347
      %v418 = vpop.f32.mrb[0].mxu0
      %v419 = vadd.f32 0.0, %v418
      %v420 = vpop.f32.mrb[0].mxu0
      %421 = vdwg.mxu0
      %v423 = vsel %vm269, %v258, 0
      %v426 = vsel %vm269, %v262, 0
      %428 = vmatprep.subr.mxu0 0.0
      %429 = vmatpush1.xpose.msra.mxu0 %v426
      %430 = vmatprep.subr.mxu0 0.0
      %431 = vmatpush1.xpose.msra.mxu0 0.0
      %432 = vmatprep.subr.mxu0 0.0
      %433 = vmatpush1.xpose.msra.mxu0 0.0
      %434 = vmatprep.subr.mxu0 0.0
      %435 = vmatpush1.xpose.msra.mxu0 0.0
      %436 = vmatprep.subr.mxu0 0.0
      %437 = vmatpush1.xpose.msra.mxu0 0.0
      %438 = vmatprep.subr.mxu0 0.0
      %439 = vmatpush1.xpose.msra.mxu0 0.0
      %440 = vmatprep.subr.mxu0 0.0
      %441 = vmatpush1.xpose.msra.mxu0 0.0
      %442 = vmatprep.subr.mxu0 0.0
      %443 = vmatpush1.xpose.msra.mxu0 0.0
      %444 = vmatprep.subr.mxu0 0.0
      %445 = vmatpush1.xpose.msra.mxu0 0.0
      %446 = vmatprep.subr.mxu0 0.0
      %447 = vmatpush1.xpose.msra.mxu0 0.0
      %448 = vmatprep.subr.mxu0 0.0
      %449 = vmatpush1.xpose.msra.mxu0 0.0
      %450 = vmatprep.subr.mxu0 0.0
      %451 = vmatpush1.xpose.msra.mxu0 0.0
      %452 = vmatprep.subr.mxu0 0.0
      %453 = vmatpush1.xpose.msra.mxu0 0.0
      %454 = vmatprep.subr.mxu0 0.0
      %455 = vmatpush1.xpose.msra.mxu0 0.0
      %456 = vmatprep.subr.mxu0 0.0
      %457 = vmatpush1.xpose.msra.mxu0 0.0
      %458 = vmatprep.subr.mxu0 0.0
      %459 = vmatpush1.xpose.msra.mxu0 0.0
      %460 = vmatprep.subr.mxu0 0.0
      %461 = vmatpush1.xpose.msra.mxu0 0.0
      %462 = vmatprep.subr.mxu0 0.0
      %463 = vmatpush1.xpose.msra.mxu0 0.0
      %464 = vmatprep.subr.mxu0 0.0
      %465 = vmatpush1.xpose.msra.mxu0 0.0
      %466 = vmatprep.subr.mxu0 0.0
      %467 = vmatpush1.xpose.msra.mxu0 0.0
      %468 = vmatprep.subr.mxu0 0.0
      %469 = vmatpush1.xpose.msra.mxu0 0.0
      %470 = vmatprep.subr.mxu0 0.0
      %471 = vmatpush1.xpose.msra.mxu0 0.0
      %472 = vmatprep.subr.mxu0 0.0
      %473 = vmatpush1.xpose.msra.mxu0 0.0
      %474 = vmatprep.subr.mxu0 0.0
      %475 = vmatpush1.xpose.msra.mxu0 0.0
      %476 = vmatprep.subr.mxu0 0.0
      %477 = vmatpush1.xpose.msra.mxu0 0.0
      %478 = vmatprep.subr.mxu0 0.0
      %479 = vmatpush1.xpose.msra.mxu0 0.0
      %480 = vmatprep.subr.mxu0 0.0
      %481 = vmatpush1.xpose.msra.mxu0 0.0
      %482 = vmatprep.subr.mxu0 0.0
      %483 = vmatpush1.xpose.msra.mxu0 0.0
      %484 = vmatprep.subr.mxu0 0.0
      %485 = vmatpush1.xpose.msra.mxu0 0.0
      %486 = vmatprep.subr.mxu0 0.0
      %487 = vmatpush1.xpose.msra.mxu0 0.0
      %488 = vmatprep.subr.mxu0 0.0
      %489 = vmatpush1.xpose.msra.mxu0 0.0
      %490 = vmatprep.subr.mxu0 0.0
      %491 = vmatpush1.xpose.msra.mxu0 0.0
      %492 = vmatprep.mubr.f32.mxu0 0.0
      %493 = vmatmul.mubr.f32.gmra.mrb[0].mxu0 %v423
      %v494 = vpop.f32.mrb[0].mxu0
      %v495 = vadd.f32 0.0, %v494
      %v496 = vpop.f32.mrb[0].mxu0
      %497 = vdwg.mxu0
      %v499 = vsel %vm269, %v259, 0
      %v502 = vsel %vm269, %v263, 0
      %504 = vmatprep.subr.mxu0 0.0
      %505 = vmatpush1.xpose.msra.mxu0 %v502
      %506 = vmatprep.subr.mxu0 0.0
      %507 = vmatpush1.xpose.msra.mxu0 0.0
      %508 = vmatprep.subr.mxu0 0.0
      %509 = vmatpush1.xpose.msra.mxu0 0.0
      %510 = vmatprep.subr.mxu0 0.0
      %511 = vmatpush1.xpose.msra.mxu0 0.0
      %512 = vmatprep.subr.mxu0 0.0
      %513 = vmatpush1.xpose.msra.mxu0 0.0
      %514 = vmatprep.subr.mxu0 0.0
      %515 = vmatpush1.xpose.msra.mxu0 0.0
      %516 = vmatprep.subr.mxu0 0.0
      %517 = vmatpush1.xpose.msra.mxu0 0.0
      %518 = vmatprep.subr.mxu0 0.0
      %519 = vmatpush1.xpose.msra.mxu0 0.0
      %520 = vmatprep.subr.mxu0 0.0
      %521 = vmatpush1.xpose.msra.mxu0 0.0
      %522 = vmatprep.subr.mxu0 0.0
      %523 = vmatpush1.xpose.msra.mxu0 0.0
      %524 = vmatprep.subr.mxu0 0.0
      %525 = vmatpush1.xpose.msra.mxu0 0.0
      %526 = vmatprep.subr.mxu0 0.0
      %527 = vmatpush1.xpose.msra.mxu0 0.0
      %528 = vmatprep.subr.mxu0 0.0
      %529 = vmatpush1.xpose.msra.mxu0 0.0
      %530 = vmatprep.subr.mxu0 0.0
      %531 = vmatpush1.xpose.msra.mxu0 0.0
      %532 = vmatprep.subr.mxu0 0.0
      %533 = vmatpush1.xpose.msra.mxu0 0.0
      %534 = vmatprep.subr.mxu0 0.0
      %535 = vmatpush1.xpose.msra.mxu0 0.0
      %536 = vmatprep.subr.mxu0 0.0
      %537 = vmatpush1.xpose.msra.mxu0 0.0
      %538 = vmatprep.subr.mxu0 0.0
      %539 = vmatpush1.xpose.msra.mxu0 0.0
      %540 = vmatprep.subr.mxu0 0.0
      %541 = vmatpush1.xpose.msra.mxu0 0.0
      %542 = vmatprep.subr.mxu0 0.0
      %543 = vmatpush1.xpose.msra.mxu0 0.0
      %544 = vmatprep.subr.mxu0 0.0
      %545 = vmatpush1.xpose.msra.mxu0 0.0
      %546 = vmatprep.subr.mxu0 0.0
      %547 = vmatpush1.xpose.msra.mxu0 0.0
      %548 = vmatprep.subr.mxu0 0.0
      %549 = vmatpush1.xpose.msra.mxu0 0.0
      %550 = vmatprep.subr.mxu0 0.0
      %551 = vmatpush1.xpose.msra.mxu0 0.0
      %552 = vmatprep.subr.mxu0 0.0
      %553 = vmatpush1.xpose.msra.mxu0 0.0
      %554 = vmatprep.subr.mxu0 0.0
      %555 = vmatpush1.xpose.msra.mxu0 0.0
      %556 = vmatprep.subr.mxu0 0.0
      %557 = vmatpush1.xpose.msra.mxu0 0.0
      %558 = vmatprep.subr.mxu0 0.0
      %559 = vmatpush1.xpose.msra.mxu0 0.0
      %560 = vmatprep.subr.mxu0 0.0
      %561 = vmatpush1.xpose.msra.mxu0 0.0
      %562 = vmatprep.subr.mxu0 0.0
      %563 = vmatpush1.xpose.msra.mxu0 0.0
      %564 = vmatprep.subr.mxu0 0.0
      %565 = vmatpush1.xpose.msra.mxu0 0.0
      %566 = vmatprep.subr.mxu0 0.0
      %567 = vmatpush1.xpose.msra.mxu0 0.0
      %568 = vmatprep.mubr.f32.mxu0 0.0
      %569 = vmatmul.mubr.f32.gmra.mrb[0].mxu0 %v499
      %v570 = vpop.f32.mrb[0].mxu0
      %v571 = vadd.f32 0.0, %v570
      %v572 = vpop.f32.mrb[0].mxu0
      %573 = vdwg.mxu0
      %vm574 = vcmp.eq.f32.partialorder %v268, 0.0
      %v575 = vsel %vm574, 1, 0
      %v576 = vlaneseq
      %v577 = vshrl.u32 %v576, 7
      %v578 = vsub.s32 0, %v577
      %v579 = vrot.slane %v575, %v578
      %vm580 = vcmp.eq.s32.totalorder %v579, 1
      %v581 = vsel %vm580, -1e+20, %v343
      %v582 = vsel %vm580, -1e+20, %v419
      %v583 = vsel %vm580, -1e+20, %v495
      %v584 = vsel %vm580, -1e+20, %v571
      %v585 = vsel %vm269, %v581, -inf
      %586 = vmax.xlane.f32.xlu0 %v585
      %v587 = vpop.xlane.xlu0 %586
      %v588 = vsel %vm269, %v582, -inf
      %589 = vmax.xlane.f32.xlu0 %v588
      %v590 = vpop.xlane.xlu0 %589
      %v591 = vsel %vm269, %v583, -inf
      %592 = vmax.xlane.f32.xlu0 %v591
      %v593 = vpop.xlane.xlu0 %592
      %v594 = vsel %vm269, %v584, -inf
      %595 = vmax.xlane.f32.xlu0 %v594
      %v596 = vpop.xlane.xlu0 %595
      %v597 = vsub.f32 %v581, %v587
      %v598 = vsub.f32 %v582, %v590
      %v599 = vsub.f32 %v583, %v593
      %v600 = vsub.f32 %v584, %v596
      %v601 = vmul.f32 %v597, 1.442695
      %v602 = vpow.pop %v601
      %v603 = vmul.f32 %v598, 1.442695
      %v604 = vpow.pop %v603
      %v605 = vmul.f32 %v599, 1.442695
      %v606 = vpow.pop %v605
      %v607 = vmul.f32 %v600, 1.442695
      %v608 = vpow.pop %v607
      %v609 = vsel %vm269, %v602, 0.0
      %610 = vadd.xlane.f32.xlu0 %v609
      %v611 = vpop.xlane.xlu0 %610
      %v612 = vsel %vm269, %v604, 0.0
      %613 = vadd.xlane.f32.xlu0 %v612
      %v614 = vpop.xlane.xlu0 %613
      %v615 = vsel %vm269, %v606, 0.0
      %616 = vadd.xlane.f32.xlu0 %v615
      %v617 = vpop.xlane.xlu0 %616
      %v618 = vsel %vm269, %v608, 0.0
      %619 = vadd.xlane.f32.xlu0 %v618
      %v620 = vpop.xlane.xlu0 %619
      %v621 = vrcp.pop %v611
      %v622 = vrcp.pop %v614
      %v623 = vrcp.pop %v617
      %v624 = vrcp.pop %v620
      %v625 = vmul.f32 %v602, %v621
      %v626 = vmul.f32 %v604, %v622
      %v627 = vmul.f32 %v606, %v623
      %v628 = vmul.f32 %v608, %v624
      %v630 = vsel %vm269, %v625, 0
      %632 = vmatprep.subr.mxu0 0.0
      %633 = vmatpush1.msra.mxu0 %v264
      %634 = vmatprep.subr.mxu0 0.0
      %635 = vmatpush1.msra.mxu0 0.0
      %636 = vmatprep.subr.mxu0 0.0
      %637 = vmatpush1.msra.mxu0 0.0
      %638 = vmatprep.subr.mxu0 0.0
      %639 = vmatpush1.msra.mxu0 0.0
      %640 = vmatprep.subr.mxu0 0.0
      %641 = vmatpush1.msra.mxu0 0.0
      %642 = vmatprep.subr.mxu0 0.0
      %643 = vmatpush1.msra.mxu0 0.0
      %644 = vmatprep.subr.mxu0 0.0
      %645 = vmatpush1.msra.mxu0 0.0
      %646 = vmatprep.subr.mxu0 0.0
      %647 = vmatpush1.msra.mxu0 0.0
      %648 = vmatprep.subr.mxu0 0.0
      %649 = vmatpush1.msra.mxu0 0.0
      %650 = vmatprep.subr.mxu0 0.0
      %651 = vmatpush1.msra.mxu0 0.0
      %652 = vmatprep.subr.mxu0 0.0
      %653 = vmatpush1.msra.mxu0 0.0
      %654 = vmatprep.subr.mxu0 0.0
      %655 = vmatpush1.msra.mxu0 0.0
      %656 = vmatprep.subr.mxu0 0.0
      %657 = vmatpush1.msra.mxu0 0.0
      %658 = vmatprep.subr.mxu0 0.0
      %659 = vmatpush1.msra.mxu0 0.0
      %660 = vmatprep.subr.mxu0 0.0
      %661 = vmatpush1.msra.mxu0 0.0
      %662 = vmatprep.subr.mxu0 0.0
      %663 = vmatpush1.msra.mxu0 0.0
      %664 = vmatprep.subr.mxu0 0.0
      %665 = vmatpush1.msra.mxu0 0.0
      %666 = vmatprep.subr.mxu0 0.0
      %667 = vmatpush1.msra.mxu0 0.0
      %668 = vmatprep.subr.mxu0 0.0
      %669 = vmatpush1.msra.mxu0 0.0
      %670 = vmatprep.subr.mxu0 0.0
      %671 = vmatpush1.msra.mxu0 0.0
      %672 = vmatprep.subr.mxu0 0.0
      %673 = vmatpush1.msra.mxu0 0.0
      %674 = vmatprep.subr.mxu0 0.0
      %675 = vmatpush1.msra.mxu0 0.0
      %676 = vmatprep.subr.mxu0 0.0
      %677 = vmatpush1.msra.mxu0 0.0
      %678 = vmatprep.subr.mxu0 0.0
      %679 = vmatpush1.msra.mxu0 0.0
      %680 = vmatprep.subr.mxu0 0.0
      %681 = vmatpush1.msra.mxu0 0.0
      %682 = vmatprep.subr.mxu0 0.0
      %683 = vmatpush1.msra.mxu0 0.0
      %684 = vmatprep.subr.mxu0 0.0
      %685 = vmatpush1.msra.mxu0 0.0
      %686 = vmatprep.subr.mxu0 0.0
      %687 = vmatpush1.msra.mxu0 0.0
      %688 = vmatprep.subr.mxu0 0.0
      %689 = vmatpush1.msra.mxu0 0.0
      %690 = vmatprep.subr.mxu0 0.0
      %691 = vmatpush1.msra.mxu0 0.0
      %692 = vmatprep.subr.mxu0 0.0
      %693 = vmatpush1.msra.mxu0 0.0
      %694 = vmatprep.subr.mxu0 0.0
      %695 = vmatpush1.msra.mxu0 0.0
      %696 = vmatprep.mubr.f32.mxu0 0.0
      %697 = vmatmul.mubr.f32.gmra.mrb[0].mxu0 %v630
      %v698 = vpop.f32.mrb[0].mxu0
      %v699 = vadd.f32 0.0, %v698
      %v700 = vpop.f32.mrb[0].mxu0
      %701 = vdwg.mxu0
      %v703 = vsel %vm269, %v626, 0
      %705 = vmatprep.subr.mxu0 0.0
      %706 = vmatpush1.msra.mxu0 %v265
      %707 = vmatprep.subr.mxu0 0.0
      %708 = vmatpush1.msra.mxu0 0.0
      %709 = vmatprep.subr.mxu0 0.0
      %710 = vmatpush1.msra.mxu0 0.0
      %711 = vmatprep.subr.mxu0 0.0
      %712 = vmatpush1.msra.mxu0 0.0
      %713 = vmatprep.subr.mxu0 0.0
      %714 = vmatpush1.msra.mxu0 0.0
      %715 = vmatprep.subr.mxu0 0.0
      %716 = vmatpush1.msra.mxu0 0.0
      %717 = vmatprep.subr.mxu0 0.0
      %718 = vmatpush1.msra.mxu0 0.0
      %719 = vmatprep.subr.mxu0 0.0
      %720 = vmatpush1.msra.mxu0 0.0
      %721 = vmatprep.subr.mxu0 0.0
      %722 = vmatpush1.msra.mxu0 0.0
      %723 = vmatprep.subr.mxu0 0.0
      %724 = vmatpush1.msra.mxu0 0.0
      %725 = vmatprep.subr.mxu0 0.0
      %726 = vmatpush1.msra.mxu0 0.0
      %727 = vmatprep.subr.mxu0 0.0
      %728 = vmatpush1.msra.mxu0 0.0
      %729 = vmatprep.subr.mxu0 0.0
      %730 = vmatpush1.msra.mxu0 0.0
      %731 = vmatprep.subr.mxu0 0.0
      %732 = vmatpush1.msra.mxu0 0.0
      %733 = vmatprep.subr.mxu0 0.0
      %734 = vmatpush1.msra.mxu0 0.0
      %735 = vmatprep.subr.mxu0 0.0
      %736 = vmatpush1.msra.mxu0 0.0
      %737 = vmatprep.subr.mxu0 0.0
      %738 = vmatpush1.msra.mxu0 0.0
      %739 = vmatprep.subr.mxu0 0.0
      %740 = vmatpush1.msra.mxu0 0.0
      %741 = vmatprep.subr.mxu0 0.0
      %742 = vmatpush1.msra.mxu0 0.0
      %743 = vmatprep.subr.mxu0 0.0
      %744 = vmatpush1.msra.mxu0 0.0
      %745 = vmatprep.subr.mxu0 0.0
      %746 = vmatpush1.msra.mxu0 0.0
      %747 = vmatprep.subr.mxu0 0.0
      %748 = vmatpush1.msra.mxu0 0.0
      %749 = vmatprep.subr.mxu0 0.0
      %750 = vmatpush1.msra.mxu0 0.0
      %751 = vmatprep.subr.mxu0 0.0
      %752 = vmatpush1.msra.mxu0 0.0
      %753 = vmatprep.subr.mxu0 0.0
      %754 = vmatpush1.msra.mxu0 0.0
      %755 = vmatprep.subr.mxu0 0.0
      %756 = vmatpush1.msra.mxu0 0.0
      %757 = vmatprep.subr.mxu0 0.0
      %758 = vmatpush1.msra.mxu0 0.0
      %759 = vmatprep.subr.mxu0 0.0
      %760 = vmatpush1.msra.mxu0 0.0
      %761 = vmatprep.subr.mxu0 0.0
      %762 = vmatpush1.msra.mxu0 0.0
      %763 = vmatprep.subr.mxu0 0.0
      %764 = vmatpush1.msra.mxu0 0.0
      %765 = vmatprep.subr.mxu0 0.0
      %766 = vmatpush1.msra.mxu0 0.0
      %767 = vmatprep.subr.mxu0 0.0
      %768 = vmatpush1.msra.mxu0 0.0
      %769 = vmatprep.mubr.f32.mxu0 0.0
      %770 = vmatmul.mubr.f32.gmra.mrb[0].mxu0 %v703
      %v771 = vpop.f32.mrb[0].mxu0
      %v772 = vadd.f32 0.0, %v771
      %v773 = vpop.f32.mrb[0].mxu0
      %774 = vdwg.mxu0
      %v776 = vsel %vm269, %v627, 0
      %778 = vmatprep.subr.mxu0 0.0
      %779 = vmatpush1.msra.mxu0 %v266
      %780 = vmatprep.subr.mxu0 0.0
      %781 = vmatpush1.msra.mxu0 0.0
      %782 = vmatprep.subr.mxu0 0.0
      %783 = vmatpush1.msra.mxu0 0.0
      %784 = vmatprep.subr.mxu0 0.0
      %785 = vmatpush1.msra.mxu0 0.0
      %786 = vmatprep.subr.mxu0 0.0
      %787 = vmatpush1.msra.mxu0 0.0
      %788 = vmatprep.subr.mxu0 0.0
      %789 = vmatpush1.msra.mxu0 0.0
      %790 = vmatprep.subr.mxu0 0.0
      %791 = vmatpush1.msra.mxu0 0.0
      %792 = vmatprep.subr.mxu0 0.0
      %793 = vmatpush1.msra.mxu0 0.0
      %794 = vmatprep.subr.mxu0 0.0
      %795 = vmatpush1.msra.mxu0 0.0
      %796 = vmatprep.subr.mxu0 0.0
      %797 = vmatpush1.msra.mxu0 0.0
      %798 = vmatprep.subr.mxu0 0.0
      %799 = vmatpush1.msra.mxu0 0.0
      %800 = vmatprep.subr.mxu0 0.0
      %801 = vmatpush1.msra.mxu0 0.0
      %802 = vmatprep.subr.mxu0 0.0
      %803 = vmatpush1.msra.mxu0 0.0
      %804 = vmatprep.subr.mxu0 0.0
      %805 = vmatpush1.msra.mxu0 0.0
      %806 = vmatprep.subr.mxu0 0.0
      %807 = vmatpush1.msra.mxu0 0.0
      %808 = vmatprep.subr.mxu0 0.0
      %809 = vmatpush1.msra.mxu0 0.0
      %810 = vmatprep.subr.mxu0 0.0
      %811 = vmatpush1.msra.mxu0 0.0
      %812 = vmatprep.subr.mxu0 0.0
      %813 = vmatpush1.msra.mxu0 0.0
      %814 = vmatprep.subr.mxu0 0.0
      %815 = vmatpush1.msra.mxu0 0.0
      %816 = vmatprep.subr.mxu0 0.0
      %817 = vmatpush1.msra.mxu0 0.0
      %818 = vmatprep.subr.mxu0 0.0
      %819 = vmatpush1.msra.mxu0 0.0
      %820 = vmatprep.subr.mxu0 0.0
      %821 = vmatpush1.msra.mxu0 0.0
      %822 = vmatprep.subr.mxu0 0.0
      %823 = vmatpush1.msra.mxu0 0.0
      %824 = vmatprep.subr.mxu0 0.0
      %825 = vmatpush1.msra.mxu0 0.0
      %826 = vmatprep.subr.mxu0 0.0
      %827 = vmatpush1.msra.mxu0 0.0
      %828 = vmatprep.subr.mxu0 0.0
      %829 = vmatpush1.msra.mxu0 0.0
      %830 = vmatprep.subr.mxu0 0.0
      %831 = vmatpush1.msra.mxu0 0.0
      %832 = vmatprep.subr.mxu0 0.0
      %833 = vmatpush1.msra.mxu0 0.0
      %834 = vmatprep.subr.mxu0 0.0
      %835 = vmatpush1.msra.mxu0 0.0
      %836 = vmatprep.subr.mxu0 0.0
      %837 = vmatpush1.msra.mxu0 0.0
      %838 = vmatprep.subr.mxu0 0.0
      %839 = vmatpush1.msra.mxu0 0.0
      %840 = vmatprep.subr.mxu0 0.0
      %841 = vmatpush1.msra.mxu0 0.0
      %842 = vmatprep.mubr.f32.mxu0 0.0
      %843 = vmatmul.mubr.f32.gmra.mrb[0].mxu0 %v776
      %v844 = vpop.f32.mrb[0].mxu0
      %v845 = vadd.f32 0.0, %v844
      %v846 = vpop.f32.mrb[0].mxu0
      %847 = vdwg.mxu0
      %v849 = vsel %vm269, %v628, 0
      %851 = vmatprep.subr.mxu0 0.0
      %852 = vmatpush1.msra.mxu0 %v267
      %853 = vmatprep.subr.mxu0 0.0
      %854 = vmatpush1.msra.mxu0 0.0
      %855 = vmatprep.subr.mxu0 0.0
      %856 = vmatpush1.msra.mxu0 0.0
      %857 = vmatprep.subr.mxu0 0.0
      %858 = vmatpush1.msra.mxu0 0.0
      %859 = vmatprep.subr.mxu0 0.0
      %860 = vmatpush1.msra.mxu0 0.0
      %861 = vmatprep.subr.mxu0 0.0
      %862 = vmatpush1.msra.mxu0 0.0
      %863 = vmatprep.subr.mxu0 0.0
      %864 = vmatpush1.msra.mxu0 0.0
      %865 = vmatprep.subr.mxu0 0.0
      %866 = vmatpush1.msra.mxu0 0.0
      %867 = vmatprep.subr.mxu0 0.0
      %868 = vmatpush1.msra.mxu0 0.0
      %869 = vmatprep.subr.mxu0 0.0
      %870 = vmatpush1.msra.mxu0 0.0
      %871 = vmatprep.subr.mxu0 0.0
      %872 = vmatpush1.msra.mxu0 0.0
      %873 = vmatprep.subr.mxu0 0.0
      %874 = vmatpush1.msra.mxu0 0.0
      %875 = vmatprep.subr.mxu0 0.0
      %876 = vmatpush1.msra.mxu0 0.0
      %877 = vmatprep.subr.mxu0 0.0
      %878 = vmatpush1.msra.mxu0 0.0
      %879 = vmatprep.subr.mxu0 0.0
      %880 = vmatpush1.msra.mxu0 0.0
      %881 = vmatprep.subr.mxu0 0.0
      %882 = vmatpush1.msra.mxu0 0.0
      %883 = vmatprep.subr.mxu0 0.0
      %884 = vmatpush1.msra.mxu0 0.0
      %885 = vmatprep.subr.mxu0 0.0
      %886 = vmatpush1.msra.mxu0 0.0
      %887 = vmatprep.subr.mxu0 0.0
      %888 = vmatpush1.msra.mxu0 0.0
      %889 = vmatprep.subr.mxu0 0.0
      %890 = vmatpush1.msra.mxu0 0.0
      %891 = vmatprep.subr.mxu0 0.0
      %892 = vmatpush1.msra.mxu0 0.0
      %893 = vmatprep.subr.mxu0 0.0
      %894 = vmatpush1.msra.mxu0 0.0
      %895 = vmatprep.subr.mxu0 0.0
      %896 = vmatpush1.msra.mxu0 0.0
      %897 = vmatprep.subr.mxu0 0.0
      %898 = vmatpush1.msra.mxu0 0.0
      %899 = vmatprep.subr.mxu0 0.0
      %900 = vmatpush1.msra.mxu0 0.0
      %901 = vmatprep.subr.mxu0 0.0
      %902 = vmatpush1.msra.mxu0 0.0
      %903 = vmatprep.subr.mxu0 0.0
      %904 = vmatpush1.msra.mxu0 0.0
      %905 = vmatprep.subr.mxu0 0.0
      %906 = vmatpush1.msra.mxu0 0.0
      %907 = vmatprep.subr.mxu0 0.0
      %908 = vmatpush1.msra.mxu0 0.0
      %909 = vmatprep.subr.mxu0 0.0
      %910 = vmatpush1.msra.mxu0 0.0
      %911 = vmatprep.subr.mxu0 0.0
      %912 = vmatpush1.msra.mxu0 0.0
      %913 = vmatprep.subr.mxu0 0.0
      %914 = vmatpush1.msra.mxu0 0.0
      %915 = vmatprep.mubr.f32.mxu0 0.0
      %916 = vmatmul.mubr.f32.gmra.mrb[0].mxu0 %v849
      %v917 = vpop.f32.mrb[0].mxu0
      %v918 = vadd.f32 0.0, %v917
      %v919 = vpop.f32.mrb[0].mxu0
      %920 = vdwg.mxu0
      %921 = vst.msk [vmem:[%s251] sm:$0xff] %vm269, %v699
      %922 = vst.msk [vmem:[%s251 + $0x8] sm:$0xff] %vm269, %v772
      %923 = vst.msk [vmem:[%s251 + $0x10] sm:$0xff] %vm269, %v845
      %924 = vst.msk [vmem:[%s251 + $0x18] sm:$0xff] %vm269, %v918
      %p925 = scmp.lt.s32.totalorder %s15, 1
      %s926 = scalar_select %p925, %s15, 1
      %s927 = smul.addr %s926, 4
      %s928 = smul.addr %s927, 8
      %s929 = scalar_lea.vmem %s4, %s928
      // Predicated region
      $region37: #{transformer_forward.22} parent=35 // pred_check
        %p930 = pneg %p137
      $region38: #{transformer_forward.22} parent=35 // pred_check_branch
        %932 = sbr.rel (%p930) target = $region40
      $region39: #{transformer_forward.22} parent=35 // pred_region
        _
      $region40: #{transformer_forward.22} parent=35 // pred_fallthru
        _
    $region36: #{transformer_forward.22} parent=5 // pred_fallthru
      _
    %p933 = scmp.le.s32.totalorder 2, %s10
    // Predicated region
    $region41: #{transformer_forward.22} parent=5 // pred_check
      %p934 = pneg %p933
    $region42: #{transformer_forward.22} parent=5 // pred_check_branch
      %936 = sbr.rel (%p934) target = $region44
    $region43: #{transformer_forward.22} parent=5 // pred_region
      %s937 = ssub.s32 %s10, 2
      // Predicated region
      $region45: #{transformer_forward.22} parent=43 // pred_check
        %p938 = pneg %p143
      $region46: #{transformer_forward.22} parent=43 // pred_check_branch
        %940 = sbr.rel (%p938) target = $region48
      $region47: #{transformer_forward.22} parent=43 // pred_region
        %p941 = scmp.lt.s32.totalorder %s16, 1
        %s942 = scalar_select %p941, %s16, 1
        %s943 = smul.addr %s942, 4
        %s944 = smul.addr %s943, 8
        %s945 = scalar_lea.vmem %s4, %s944
      $region48: #{transformer_forward.22} parent=43 // pred_fallthru
        _
    $region44: #{transformer_forward.22} parent=5 // pred_fallthru
      _
  $region6: #{transformer_forward.22} parent=0 // loop_footer
    %s14 = sadd.s32 1, %s10
  $region7: #{transformer_forward.22} parent=0 // loop_footer_branch
    %9 = sbr.rel target = $region3
  $region8: #{transformer_forward.22} parent=0 // loop_exit
    _

</llo_original>
